<compile_context>
chip_gen: v7x
topology: tpu7x:2x2x1
jax: 0.10.0
libtpu: 0.0.40
codegen_flags: <defaults>
</compile_context>

<pallas_src>
import functools

import jax
import jax.numpy as jnp
from jax.experimental import pallas as pl
from jax.experimental.pallas import tpu as pltpu


def _round_up(x, m):
    return ((x + m - 1) // m) * m


def _tpu_generation():
    """Best-effort (vmem_bytes_per_core, bf16_vpu_ok) for the local accelerator."""
    vmem = None
    try:
        vmem = int(pltpu.get_tpu_info().vmem_capacity_bytes)
    except Exception:
        vmem = None
    kind = ""
    try:
        kind = jax.devices()[0].device_kind.lower()
    except Exception:
        kind = ""
    if vmem is None:
        if "v2" in kind or "v3" in kind:
            vmem = 16 * 1024 * 1024
        elif "7" in kind:                       # v7x: 64 MiB per TensorCore
            vmem = 64 * 1024 * 1024
        elif "v4" in kind or "v5" in kind or "v6" in kind:
            vmem = 128 * 1024 * 1024
        else:
            vmem = 64 * 1024 * 1024             # conservative default
    # bf16 VPU/EUP only on v6e and newer: keep the f32 tanh path on v5e & older.
    bf16_ok = not any(t in kind for t in ("v2", "v3", "v4", "v5"))
    return vmem, bf16_ok


def _per_pair_bytes(H, bf16_epilogue):
    """Rough peak VMEM bytes of in-kernel temporaries per (class, query) pair."""
    h1_b = 2 if bf16_epilogue else 4
    return (2 * H            # prod (bf16)
            + 8 * H          # prod_proj f32 (2H * 4B)
            + 2 * h1_b * H   # h1 (2H elems)
            + 4 * H          # layer-2 f32 accumulator
            + 2 * 4)         # double-buffered f32 output element


def _choose_tiles(C, B, H, vmem_bytes, bf16_epilogue):
    """Pick (CT, C_pad, TB, B_pad) so intermediates fit the per-generation VMEM."""
    # Query tile: multiple of 128 so the (CT, TB) output store is lane-dense.
    tb_target = 128 if vmem_bytes <= 64 * 1024 * 1024 else 256   # v7x vs v5e/v6e
    TB = min(tb_target, _round_up(max(B, 1), 128))
    B_pad = _round_up(B, TB)

    per_pair = _per_pair_bytes(H, bf16_epilogue)
    # Fixed VMEM: single-buffered bf16 weights + double-buffered query tile
    # + qry_proj f32 temp + slack.
    fixed = 12 * H * H + 4 * TB * H + 8 * TB * H + (2 << 20)
    budget = int(vmem_bytes * 0.40)
    per_ct = per_pair * TB + 20 * H            # + cls / cls_proj buffers per class row
    ct_cap = max((budget - fixed) // per_ct, 8)

    if C <= ct_cap:
        CT = C                                  # no class chunking / padding needed
    else:
        CT = max(8, (ct_cap // 8) * 8)
    C_pad = _round_up(C, CT)

    # v7x has 2 TensorCores: guarantee >=2 parallel grid steps when the class
    # axis is big enough to split cheaply.
    if (C_pad // CT) * (B_pad // TB) == 1 and C > 8:
        CT = max(8, _round_up((C + 1) // 2, 8))
        C_pad = _round_up(C, CT)
    return CT, C_pad, TB, B_pad


def _prototype_kernel(cls_ref, clsp_ref, qry_ref,
                      w1q_ref, w1p_ref, w2_ref, b2_ref, w3_ref, b3_ref,
                      out_ref, *, bf16_epilogue):
    f32 = jnp.float32
    bf16 = jnp.bfloat16
    cls = cls_ref[...]                        # (CT, H)  bf16
    qry = qry_ref[...]                        # (TB, H)  bf16
    CT, H = cls.shape
    TB = qry.shape[0]

    # ---- Layer 1, factorised Linear(3H -> 2H) ----------------------------
    # cls @ W1c + b1 comes in precomputed (clsp_ref): resident, never recomputed.
    qry_proj = jnp.dot(qry, w1q_ref[...], preferred_element_type=f32)        # (TB, 2H)

    # Product term: the only per-pair matmul (class-major / query-minor rows).
    prod = (cls[:, None, :] * qry[None, :, :]).reshape(CT * TB, H)           # bf16
    prod_proj = jnp.dot(prod, w1p_ref[...], preferred_element_type=f32)
    prod_proj = prod_proj.reshape(CT, TB, 2 * H)

    pre1 = prod_proj + qry_proj[None, :, :] + clsp_ref[...][:, None, :]      # f32
    # TODO(synk): nn.Dropout(0.1) is identity in eval mode; training-mode RNG
    # dropout (pltpu.prng_seed / prng_random_bits masking) is not reproduced.
    if bf16_epilogue:                         # v6e / v7x: bf16 EUP & VPU
        h1 = jnp.tanh(pre1.astype(bf16))
    else:                                     # v5e and older: f32 tanh, bf16 for MXU
        h1 = jnp.tanh(pre1).astype(bf16)

    # ---- Layer 2: Linear(2H -> H) + tanh ----------------------------------
    pre2 = jnp.dot(h1.reshape(CT * TB, 2 * H), w2_ref[...],
                   preferred_element_type=f32) + b2_ref[...]
    h2 = jnp.tanh(pre2.astype(bf16) if bf16_epilogue else pre2)
    h2 = h2.reshape(CT, TB, H)

    # ---- Layer 3: Linear(H -> 1) + sigmoid as VPU mul + lane reduction ----
    logits = jnp.sum(h2 * w3_ref[...], axis=-1) + b3_ref[0, 0]               # (CT, TB)
    out_ref[...] = jax.nn.sigmoid(logits).astype(out_ref.dtype)


def prepare_params(params):
    """One-time parameter prep: (in, out) layout, bf16 MXU weights, f32 biases."""
    w1c, w1q, w1p, b1, w2, b2, w3, b3 = params
    return {
        "w1c": jnp.asarray(w1c, jnp.float32),               # (H, 2H), used wrapper-side
        "b1": jnp.asarray(b1, jnp.float32).reshape(1, -1),   # (1, 2H)
        "w1q": jnp.asarray(w1q, jnp.bfloat16),               # (H, 2H)
        "w1p": jnp.asarray(w1p, jnp.bfloat16),               # (H, 2H)
        "w2": jnp.asarray(w2, jnp.bfloat16),                 # (2H, H)
        "b2": jnp.asarray(b2, jnp.float32).reshape(1, -1),   # (1, H)
        "w3": jnp.asarray(w3, jnp.float32).reshape(1, -1),   # (1, H) VPU row
        "b3": jnp.asarray(b3, jnp.float32).reshape(1, 1),    # SMEM scalar
    }


def prototype_net(rep_classes, rep_query_batch, params, *,
                  query_block=None, class_block=None):
    """rep_classes: (C, H), rep_query_batch: (B, H)  ->  score matrix (B, C)."""
    if not isinstance(params, dict):
        params = prepare_params(params)

    C, H = rep_classes.shape
    B = rep_query_batch.shape[0]

    vmem_bytes, bf16_epilogue = _tpu_generation()
    CT, C_pad, TB, B_pad = _choose_tiles(C, B, H, vmem_bytes, bf16_epilogue)
    if query_block is not None:
        TB = max(128, _round_up(query_block, 128))
        B_pad = _round_up(B, TB)
    if class_block is not None and class_block < C:
        CT = max(8, (class_block // 8) * 8)
        C_pad = _round_up(C, CT)
    n_c = C_pad // CT
    n_b = B_pad // TB

    bf16 = jnp.bfloat16
    cls_f32 = rep_classes.astype(jnp.float32)
    if C_pad != C:
        cls_f32 = jnp.pad(cls_f32, ((0, C_pad - C), (0, 0)))
    cls_bf = cls_f32.astype(bf16)
    # Fold b1 into the class projection; done once per call as a plain XLA matmul
    # instead of once per query-tile grid step inside the kernel.
    cls_proj = cls_f32 @ params["w1c"] + params["b1"]          # (C_pad, 2H) f32

    qry_bf = rep_query_batch.astype(bf16)
    if B_pad != B:
        qry_bf = jnp.pad(qry_bf, ((0, B_pad - B), (0, 0)))

    const = lambda c, b: (0, 0)
    out_spec = pl.BlockSpec((CT, TB), lambda c, b: (c, b))     # lane-dense (TB >= 128)

    def build_in_specs(single_buffer):
        single = pl.Buffered(1) if single_buffer else None
        cls_mode = single if n_c == 1 else None                # invariant only if 1 class step

        def spec(shape, index_map, mode=None):
            if mode is None:
                return pl.BlockSpec(shape, index_map)
            return pl.BlockSpec(shape, index_map, pipeline_mode=mode)

        return [
            spec((CT, H), lambda c, b: (c, 0), cls_mode),          # classes tile (bf16)
            spec((CT, 2 * H), lambda c, b: (c, 0), cls_mode),      # cls @ W1c + b1 (f32)
            spec((TB, H), lambda c, b: (b, 0)),                    # query tile (bf16)
            spec((H, 2 * H), const, single),                       # W1q
            spec((H, 2 * H), const, single),                       # W1p
            spec((2 * H, H), const, single),                       # W2
            spec((1, H), const, single),                           # b2
            spec((1, H), const, single),                           # w3 row
            pl.BlockSpec((1, 1), const,
                         memory_space=pltpu.MemorySpace.SMEM),     # b3 scalar
        ]

    # VMEM limit derived from the actual buffers (per TPU generation), not hardcoded.
    per_pair = _per_pair_bytes(H, bf16_epilogue)
    weights_bytes = (params["w1q"].size + params["w1p"].size + params["w2"].size) * 2
    resident = (weights_bytes
                + (CT * H * 2 + CT * 2 * H * 4) * (1 if n_c == 1 else 2)
                + TB * H * 2 * 2                                    # query, double-buffered
                + CT * TB * 4 * 2)                                  # output, double-buffered
    est_vmem = resident + per_pair * CT * TB + 8 * TB * H + (2 << 20)
    vmem_limit = int(min(vmem_bytes * 0.9, max(32 << 20, est_vmem * 2)))

    flops = (2 * B_pad * n_c * H * 2 * H            # qry @ W1q (once per class step)
             + 2 * B_pad * C_pad * H * 2 * H        # (cls*qry) @ W1p
             + 2 * B_pad * C_pad * 2 * H * H        # layer 2
             + 2 * B_pad * C_pad * H)               # layer 3 dot
    transcendentals = B_pad * C_pad * (3 * H + 1)   # tanh(2H) + tanh(H) + sigmoid
    bytes_accessed = (cls_bf.size * 2 + cls_proj.size * 4 + qry_bf.size * 2 * n_c
                      + weights_bytes + C_pad * B_pad * 4)

    def run(single_buffer):
        return pl.pallas_call(
            functools.partial(_prototype_kernel, bf16_epilogue=bf16_epilogue),
            out_shape=jax.ShapeDtypeStruct((C_pad, B_pad), jnp.float32),
            grid_spec=pltpu.PrefetchScalarGridSpec(
                num_scalar_prefetch=0,
                grid=(n_c, n_b),
                in_specs=build_in_specs(single_buffer),
                out_specs=out_spec,
            ),
            compiler_params=pltpu.CompilerParams(
                dimension_semantics=("parallel", "parallel"),
                vmem_limit_bytes=vmem_limit,
            ),
            cost_estimate=pl.CostEstimate(
                flops=int(flops),
                transcendentals=int(transcendentals),
                bytes_accessed=int(bytes_accessed),
            ),
        )(cls_bf, cls_proj, qry_bf, params["w1q"], params["w1p"],
          params["w2"], params["b2"], params["w3"], params["b3"])

    try:
        out = run(single_buffer=True)
    except Exception:
        # Fallback for jax builds whose TPU pipeline rejects pl.Buffered(1);
        # double-buffered constants are equally correct, just ~2x resident VMEM.
        out = run(single_buffer=False)

    # (C_pad, B_pad) lane-dense kernel output -> torch's (B, C) in the wrapper.
    return out.T[:B, :C]


def init_params(hidden_size, key):
    """Deterministic init matching the nn.Linear shapes of PrototypeNet.

    PyTorch Linear stores weight as (out, in); we pre-transpose to (in, out)
    and pre-split HiddenLayer_1's weight into the three H-wide chunks for the
    [classes | query | classes*query] blocks.
    """
    H = hidden_size
    ks = jax.random.split(key, 6)
    s1 = 1.0 / jnp.sqrt(3.0 * H)
    s2 = 1.0 / jnp.sqrt(2.0 * H)
    s3 = 1.0 / jnp.sqrt(1.0 * H)
    w1 = jax.random.uniform(ks[0], (3 * H, 2 * H), jnp.float32, -s1, s1)  # (in, out)
    b1 = jax.random.uniform(ks[1], (1, 2 * H), jnp.float32, -s1, s1)
    w2 = jax.random.uniform(ks[2], (2 * H, H), jnp.float32, -s2, s2)
    b2 = jax.random.uniform(ks[3], (1, H), jnp.float32, -s2, s2)
    w3 = jax.random.uniform(ks[4], (H, 1), jnp.float32, -s3, s3)
    b3 = jax.random.uniform(ks[5], (1, 1), jnp.float32, -s3, s3)
    w1c, w1q, w1p = w1[:H], w1[H:2 * H], w1[2 * H:]
    return (w1c, w1q, w1p, b1, w2, b2, w3, b3)


def prototype_net_ref(rep_classes, rep_query_batch, params):
    """Plain-JAX f32 reference reproducing the torch forward (eval mode)."""
    w1c, w1q, w1p, b1, w2, b2, w3, b3 = params
    C = rep_classes.shape[0]
    B = rep_query_batch.shape[0]
    rep_cls = jnp.tile(rep_classes, (B, 1))                 # repeat(B, 1)
    rep_qry = jnp.repeat(rep_query_batch, C, axis=0)        # repeat_interleave
    combined = jnp.concatenate([rep_cls, rep_qry, rep_cls * rep_qry], axis=1)
    w1 = jnp.concatenate([w1c, w1q, w1p], axis=0)
    h1 = jnp.tanh(combined @ w1 + b1)
    h2 = jnp.tanh(h1 @ w2 + b2)
    scores = jax.nn.sigmoid(h2 @ w3 + b3)
    return scores.reshape(B, C)


if __name__ == "__main__":
    hidden_size = 32
    key = jax.random.PRNGKey(0)
    k_cls, k_qry, k_par, k_cls2, k_qry2 = jax.random.split(key, 5)
    raw_params = init_params(hidden_size, k_par)
    prepared = prepare_params(raw_params)      # one-time bf16 cast of the weights

    # --- Test 1: tiny shapes (non-multiple batch -> exercises query padding) ---
    num_classes, batch_size = 3, 5
    rep_classes = jax.random.normal(k_cls, (num_classes, hidden_size), jnp.float32)
    rep_query = jax.random.normal(k_qry, (batch_size, hidden_size), jnp.float32)
    out = jax.block_until_ready(prototype_net(rep_classes, rep_query, prepared))
    ref = prototype_net_ref(rep_classes, rep_query, raw_params)
    assert out.shape == (batch_size, num_classes), out.shape
    assert jnp.allclose(out, ref, atol=2e-2, rtol=2e-2), (out, ref)

    # --- Test 2: exercises the class-chunked multi-step grid path -------------
    num_classes2, batch_size2 = 20, 130
    rep_classes2 = jax.random.normal(k_cls2, (num_classes2, hidden_size), jnp.float32)
    rep_query2 = jax.random.normal(k_qry2, (batch_size2, hidden_size), jnp.float32)
    out2 = jax.block_until_ready(
        prototype_net(rep_classes2, rep_query2, prepared,
                      query_block=128, class_block=8))
    ref2 = prototype_net_ref(rep_classes2, rep_query2, raw_params)
    assert out2.shape == (batch_size2, num_classes2), out2.shape
    # bf16 MXU operands / bf16 epilogue on v6e+ -> compare with a loose tolerance.
    assert jnp.allclose(out2, ref2, atol=2e-2, rtol=2e-2), (out2, ref2)

    print("KERNEL_OK")
</pallas_src>

<mosaic_0001>
module attributes {stable_mosaic.version = 11 : i64} {
  func.func @_prototype_kernel(%arg0: i32, %arg1: i32, %arg2: memref<3x32xbf16, #tpu.memory_space<vmem>>, %arg3: memref<3x64xf32, #tpu.memory_space<vmem>>, %arg4: memref<128x32xbf16, #tpu.memory_space<vmem>>, %arg5: memref<32x64xbf16, #tpu.memory_space<vmem>>, %arg6: memref<32x64xbf16, #tpu.memory_space<vmem>>, %arg7: memref<64x32xbf16, #tpu.memory_space<vmem>>, %arg8: memref<1x32xf32, #tpu.memory_space<vmem>>, %arg9: memref<1x32xf32, #tpu.memory_space<vmem>>, %arg10: memref<1x1xf32, #tpu.memory_space<smem>>, %arg11: memref<3x128xf32, #tpu.memory_space<vmem>>) attributes {dimension_semantics = [#tpu.dimension_semantics<parallel>, #tpu.dimension_semantics<parallel>], iteration_bounds = array<i64: 1, 1>, scalar_prefetch = 0 : i64, scratch_operands = 0 : i64, tpu.core_type = #tpu.core_type<tc>, window_params = [{pipeline_mode = #tpu.pipeline_mode<synchronous>, transform_indices = @transform_0, window_bounds = array<i64: 3, 32>}, {pipeline_mode = #tpu.pipeline_mode<synchronous>, transform_indices = @transform_1, window_bounds = array<i64: 3, 64>}, {transform_indices = @transform_2, window_bounds = array<i64: 128, 32>}, {pipeline_mode = #tpu.pipeline_mode<synchronous>, transform_indices = @transform_3, window_bounds = array<i64: 32, 64>}, {pipeline_mode = #tpu.pipeline_mode<synchronous>, transform_indices = @transform_4, window_bounds = array<i64: 32, 64>}, {pipeline_mode = #tpu.pipeline_mode<synchronous>, transform_indices = @transform_5, window_bounds = array<i64: 64, 32>}, {pipeline_mode = #tpu.pipeline_mode<synchronous>, transform_indices = @transform_6, window_bounds = array<i64: 1, 32>}, {pipeline_mode = #tpu.pipeline_mode<synchronous>, transform_indices = @transform_7, window_bounds = array<i64: 1, 32>}, {transform_indices = @transform_8, window_bounds = array<i64: 1, 1>}, {transform_indices = @transform_9, window_bounds = array<i64: 3, 128>}]} {
    %c0 = arith.constant 0 : index
    %c0_0 = arith.constant 0 : index
    %0 = vector.load %arg2[%c0, %c0_0] : memref<3x32xbf16, #tpu.memory_space<vmem>>, vector<3x32xbf16>
    %c0_1 = arith.constant 0 : index
    %c0_2 = arith.constant 0 : index
    %1 = vector.load %arg4[%c0_1, %c0_2] : memref<128x32xbf16, #tpu.memory_space<vmem>>, vector<128x32xbf16>
    %c0_3 = arith.constant 0 : index
    %c0_4 = arith.constant 0 : index
    %2 = vector.load %arg5[%c0_3, %c0_4] : memref<32x64xbf16, #tpu.memory_space<vmem>>, vector<32x64xbf16>
    %cst = arith.constant dense<0.000000e+00> : vector<128x64xf32>
    %3 = tpu.matmul %1, %2, %cst {dimension_numbers = #tpu.dot_dimension_numbers<[1], [0], [0], [1], [0, 0, 1, 1], [], []>} : vector<128x32xbf16>, vector<32x64xbf16>, vector<128x64xf32> -> vector<128x64xf32>
    %4 = vector.shape_cast %0 : vector<3x32xbf16> to vector<3x1x32xbf16>
    %5 = vector.shape_cast %1 : vector<128x32xbf16> to vector<1x128x32xbf16>
    %6 = vector.broadcast %4 : vector<3x1x32xbf16> to vector<3x128x32xbf16>
    %7 = vector.broadcast %5 : vector<1x128x32xbf16> to vector<3x128x32xbf16>
    %8 = arith.mulf %6, %7 : vector<3x128x32xbf16>
    %9 = vector.shape_cast %8 : vector<3x128x32xbf16> to vector<384x32xbf16>
    %c0_5 = arith.constant 0 : index
    %c0_6 = arith.constant 0 : index
    %10 = vector.load %arg6[%c0_5, %c0_6] : memref<32x64xbf16, #tpu.memory_space<vmem>>, vector<32x64xbf16>
    %cst_7 = arith.constant dense<0.000000e+00> : vector<384x64xf32>
    %11 = tpu.matmul %9, %10, %cst_7 {dimension_numbers = #tpu.dot_dimension_numbers<[1], [0], [0], [1], [0, 0, 1, 1], [], []>} : vector<384x32xbf16>, vector<32x64xbf16>, vector<384x64xf32> -> vector<384x64xf32>
    %12 = vector.shape_cast %11 : vector<384x64xf32> to vector<3x128x64xf32>
    %13 = vector.shape_cast %3 : vector<128x64xf32> to vector<1x128x64xf32>
    %14 = vector.broadcast %13 : vector<1x128x64xf32> to vector<3x128x64xf32>
    %15 = arith.addf %12, %14 : vector<3x128x64xf32>
    %c0_8 = arith.constant 0 : index
    %c0_9 = arith.constant 0 : index
    %16 = vector.load %arg3[%c0_8, %c0_9] : memref<3x64xf32, #tpu.memory_space<vmem>>, vector<3x64xf32>
    %17 = vector.shape_cast %16 : vector<3x64xf32> to vector<3x1x64xf32>
    %18 = vector.broadcast %17 : vector<3x1x64xf32> to vector<3x128x64xf32>
    %19 = arith.addf %15, %18 : vector<3x128x64xf32>
    %20 = arith.truncf %19 : vector<3x128x64xf32> to vector<3x128x64xbf16>
    %21 = math.tanh %20 : vector<3x128x64xbf16>
    %22 = vector.shape_cast %21 : vector<3x128x64xbf16> to vector<384x64xbf16>
    %c0_10 = arith.constant 0 : index
    %c0_11 = arith.constant 0 : index
    %23 = vector.load %arg7[%c0_10, %c0_11] : memref<64x32xbf16, #tpu.memory_space<vmem>>, vector<64x32xbf16>
    %cst_12 = arith.constant dense<0.000000e+00> : vector<384x32xf32>
    %24 = tpu.matmul %22, %23, %cst_12 {dimension_numbers = #tpu.dot_dimension_numbers<[1], [0], [0], [1], [0, 0, 1, 1], [], []>} : vector<384x64xbf16>, vector<64x32xbf16>, vector<384x32xf32> -> vector<384x32xf32>
    %c0_13 = arith.constant 0 : index
    %c0_14 = arith.constant 0 : index
    %25 = vector.load %arg8[%c0_13, %c0_14] : memref<1x32xf32, #tpu.memory_space<vmem>>, vector<1x32xf32>
    %26 = vector.broadcast %25 : vector<1x32xf32> to vector<384x32xf32>
    %27 = arith.addf %24, %26 : vector<384x32xf32>
    %28 = arith.truncf %27 : vector<384x32xf32> to vector<384x32xbf16>
    %29 = math.tanh %28 : vector<384x32xbf16>
    %30 = vector.shape_cast %29 : vector<384x32xbf16> to vector<3x128x32xbf16>
    %c0_15 = arith.constant 0 : index
    %c0_16 = arith.constant 0 : index
    %31 = vector.load %arg9[%c0_15, %c0_16] : memref<1x32xf32, #tpu.memory_space<vmem>>, vector<1x32xf32>
    %32 = arith.extf %30 : vector<3x128x32xbf16> to vector<3x128x32xf32>
    %33 = vector.shape_cast %31 : vector<1x32xf32> to vector<1x1x32xf32>
    %34 = vector.broadcast %33 : vector<1x1x32xf32> to vector<3x128x32xf32>
    %35 = arith.mulf %32, %34 : vector<3x128x32xf32>
    %cst_17 = arith.constant dense<0.000000e+00> : vector<3x128xf32>
    %36 = vector.multi_reduction <add>, %35, %cst_17 [2] : vector<3x128x32xf32> to vector<3x128xf32>
    %c0_18 = arith.constant 0 : index
    %c0_19 = arith.constant 0 : index
    %37 = memref.load %arg10[%c0_18, %c0_19] : memref<1x1xf32, #tpu.memory_space<smem>>
    %38 = vector.broadcast %37 : f32 to vector<3x128xf32>
    %39 = arith.addf %36, %38 : vector<3x128xf32>
    %40 = arith.negf %39 : vector<3x128xf32>
    %41 = math.exp %40 : vector<3x128xf32>
    %cst_20 = arith.constant 1.000000e+00 : f32
    %42 = vector.broadcast %cst_20 : f32 to vector<3x128xf32>
    %43 = arith.addf %42, %41 : vector<3x128xf32>
    %44 = arith.divf %42, %43 : vector<3x128xf32>
    %c0_21 = arith.constant 0 : index
    %c0_22 = arith.constant 0 : index
    %45 = vector.load %arg11[%c0_21, %c0_22] : memref<3x128xf32, #tpu.memory_space<vmem>>, vector<3x128xf32>
    tpu.vector_store %arg11[%c0_21, %c0_22], %44 {strides = array<i32>} : memref<3x128xf32, #tpu.memory_space<vmem>>, vector<3x128xf32>,
    return
  }
  func.func @transform_0(%arg0: i32, %arg1: i32) -> (i32, i32) {
    %c0_i32 = arith.constant 0 : i32
    %c0_i32_0 = arith.constant 0 : i32
    return %arg0, %c0_i32 : i32, i32
  }
  func.func @transform_1(%arg0: i32, %arg1: i32) -> (i32, i32) {
    %c0_i32 = arith.constant 0 : i32
    %c0_i32_0 = arith.constant 0 : i32
    return %arg0, %c0_i32 : i32, i32
  }
  func.func @transform_2(%arg0: i32, %arg1: i32) -> (i32, i32) {
    %c0_i32 = arith.constant 0 : i32
    %c0_i32_0 = arith.constant 0 : i32
    return %arg1, %c0_i32 : i32, i32
  }
  func.func @transform_3(%arg0: i32, %arg1: i32) -> (i32, i32) {
    %c0_i32 = arith.constant 0 : i32
    %c0_i32_0 = arith.constant 0 : i32
    %c0_i32_1 = arith.constant 0 : i32
    return %c0_i32, %c0_i32_0 : i32, i32
  }
  func.func @transform_4(%arg0: i32, %arg1: i32) -> (i32, i32) {
    %c0_i32 = arith.constant 0 : i32
    %c0_i32_0 = arith.constant 0 : i32
    %c0_i32_1 = arith.constant 0 : i32
    return %c0_i32, %c0_i32_0 : i32, i32
  }
  func.func @transform_5(%arg0: i32, %arg1: i32) -> (i32, i32) {
    %c0_i32 = arith.constant 0 : i32
    %c0_i32_0 = arith.constant 0 : i32
    %c0_i32_1 = arith.constant 0 : i32
    return %c0_i32, %c0_i32_0 : i32, i32
  }
  func.func @transform_6(%arg0: i32, %arg1: i32) -> (i32, i32) {
    %c0_i32 = arith.constant 0 : i32
    %c0_i32_0 = arith.constant 0 : i32
    %c0_i32_1 = arith.constant 0 : i32
    return %c0_i32, %c0_i32_0 : i32, i32
  }
  func.func @transform_7(%arg0: i32, %arg1: i32) -> (i32, i32) {
    %c0_i32 = arith.constant 0 : i32
    %c0_i32_0 = arith.constant 0 : i32
    %c0_i32_1 = arith.constant 0 : i32
    return %c0_i32, %c0_i32_0 : i32, i32
  }
  func.func @transform_8(%arg0: i32, %arg1: i32) -> (i32, i32) {
    %c0_i32 = arith.constant 0 : i32
    %c0_i32_0 = arith.constant 0 : i32
    %c0_i32_1 = arith.constant 0 : i32
    return %c0_i32, %c0_i32_0 : i32, i32
  }
  func.func @transform_9(%arg0: i32, %arg1: i32) -> (i32, i32) {
    %c0_i32 = arith.constant 0 : i32
    return %arg0, %arg1 : i32, i32
  }
}

module attributes {stable_mosaic.version = 11 : i64} {
  func.func @_prototype_kernel(%arg0: i32, %arg1: i32, %arg2: memref<3x32xbf16, #tpu.memory_space<vmem>>, %arg3: memref<3x64xf32, #tpu.memory_space<vmem>>, %arg4: memref<128x32xbf16, #tpu.memory_space<vmem>>, %arg5: memref<32x64xbf16, #tpu.memory_space<vmem>>, %arg6: memref<32x64xbf16, #tpu.memory_space<vmem>>, %arg7: memref<64x32xbf16, #tpu.memory_space<vmem>>, %arg8: memref<1x32xf32, #tpu.memory_space<vmem>>, %arg9: memref<1x32xf32, #tpu.memory_space<vmem>>, %arg10: memref<1x1xf32, #tpu.memory_space<smem>>, %arg11: memref<3x128xf32, #tpu.memory_space<vmem>>) attributes {dimension_semantics = [#tpu.dimension_semantics<parallel>, #tpu.dimension_semantics<parallel>], iteration_bounds = array<i64: 1, 1>, scalar_prefetch = 0 : i64, scratch_operands = 0 : i64, tpu.core_type = #tpu.core_type<tc>, window_params = [{transform_indices = @transform_0, window_bounds = array<i64: 3, 32>}, {transform_indices = @transform_1, window_bounds = array<i64: 3, 64>}, {transform_indices = @transform_2, window_bounds = array<i64: 128, 32>}, {pipeline_mode = #tpu.pipeline_mode<synchronous>, transform_indices = @transform_3, window_bounds = array<i64: 32, 64>}, {pipeline_mode = #tpu.pipeline_mode<synchronous>, transform_indices = @transform_4, window_bounds = array<i64: 32, 64>}, {pipeline_mode = #tpu.pipeline_mode<synchronous>, transform_indices = @transform_5, window_bounds = array<i64: 64, 32>}, {pipeline_mode = #tpu.pipeline_mode<synchronous>, transform_indices = @transform_6, window_bounds = array<i64: 1, 32>}, {pipeline_mode = #tpu.pipeline_mode<synchronous>, transform_indices = @transform_7, window_bounds = array<i64: 1, 32>}, {transform_indices = @transform_8, window_bounds = array<i64: 1, 1>}, {transform_indices = @transform_9, window_bounds = array<i64: 3, 128>}]} {
    %c0 = arith.constant 0 : index
    %c0_0 = arith.constant 0 : index
    %0 = vector.load %arg2[%c0, %c0_0] : memref<3x32xbf16, #tpu.memory_space<vmem>>, vector<3x32xbf16>
    %c0_1 = arith.constant 0 : index
    %c0_2 = arith.constant 0 : index
    %1 = vector.load %arg4[%c0_1, %c0_2] : memref<128x32xbf16, #tpu.memory_space<vmem>>, vector<128x32xbf16>
    %c0_3 = arith.constant 0 : index
    %c0_4 = arith.constant 0 : index
    %2 = vector.load %arg5[%c0_3, %c0_4] : memref<32x64xbf16, #tpu.memory_space<vmem>>, vector<32x64xbf16>
    %cst = arith.constant dense<0.000000e+00> : vector<128x64xf32>
    %3 = tpu.matmul %1, %2, %cst {dimension_numbers = #tpu.dot_dimension_numbers<[1], [0], [0], [1], [0, 0, 1, 1], [], []>} : vector<128x32xbf16>, vector<32x64xbf16>, vector<128x64xf32> -> vector<128x64xf32>
    %4 = vector.shape_cast %0 : vector<3x32xbf16> to vector<3x1x32xbf16>
    %5 = vector.shape_cast %1 : vector<128x32xbf16> to vector<1x128x32xbf16>
    %6 = vector.broadcast %4 : vector<3x1x32xbf16> to vector<3x128x32xbf16>
    %7 = vector.broadcast %5 : vector<1x128x32xbf16> to vector<3x128x32xbf16>
    %8 = arith.mulf %6, %7 : vector<3x128x32xbf16>
    %9 = vector.shape_cast %8 : vector<3x128x32xbf16> to vector<384x32xbf16>
    %c0_5 = arith.constant 0 : index
    %c0_6 = arith.constant 0 : index
    %10 = vector.load %arg6[%c0_5, %c0_6] : memref<32x64xbf16, #tpu.memory_space<vmem>>, vector<32x64xbf16>
    %cst_7 = arith.constant dense<0.000000e+00> : vector<384x64xf32>
    %11 = tpu.matmul %9, %10, %cst_7 {dimension_numbers = #tpu.dot_dimension_numbers<[1], [0], [0], [1], [0, 0, 1, 1], [], []>} : vector<384x32xbf16>, vector<32x64xbf16>, vector<384x64xf32> -> vector<384x64xf32>
    %12 = vector.shape_cast %11 : vector<384x64xf32> to vector<3x128x64xf32>
    %13 = vector.shape_cast %3 : vector<128x64xf32> to vector<1x128x64xf32>
    %14 = vector.broadcast %13 : vector<1x128x64xf32> to vector<3x128x64xf32>
    %15 = arith.addf %12, %14 : vector<3x128x64xf32>
    %c0_8 = arith.constant 0 : index
    %c0_9 = arith.constant 0 : index
    %16 = vector.load %arg3[%c0_8, %c0_9] : memref<3x64xf32, #tpu.memory_space<vmem>>, vector<3x64xf32>
    %17 = vector.shape_cast %16 : vector<3x64xf32> to vector<3x1x64xf32>
    %18 = vector.broadcast %17 : vector<3x1x64xf32> to vector<3x128x64xf32>
    %19 = arith.addf %15, %18 : vector<3x128x64xf32>
    %20 = arith.truncf %19 : vector<3x128x64xf32> to vector<3x128x64xbf16>
    %21 = math.tanh %20 : vector<3x128x64xbf16>
    %22 = vector.shape_cast %21 : vector<3x128x64xbf16> to vector<384x64xbf16>
    %c0_10 = arith.constant 0 : index
    %c0_11 = arith.constant 0 : index
    %23 = vector.load %arg7[%c0_10, %c0_11] : memref<64x32xbf16, #tpu.memory_space<vmem>>, vector<64x32xbf16>
    %cst_12 = arith.constant dense<0.000000e+00> : vector<384x32xf32>
    %24 = tpu.matmul %22, %23, %cst_12 {dimension_numbers = #tpu.dot_dimension_numbers<[1], [0], [0], [1], [0, 0, 1, 1], [], []>} : vector<384x64xbf16>, vector<64x32xbf16>, vector<384x32xf32> -> vector<384x32xf32>
    %c0_13 = arith.constant 0 : index
    %c0_14 = arith.constant 0 : index
    %25 = vector.load %arg8[%c0_13, %c0_14] : memref<1x32xf32, #tpu.memory_space<vmem>>, vector<1x32xf32>
    %26 = vector.broadcast %25 : vector<1x32xf32> to vector<384x32xf32>
    %27 = arith.addf %24, %26 : vector<384x32xf32>
    %28 = arith.truncf %27 : vector<384x32xf32> to vector<384x32xbf16>
    %29 = math.tanh %28 : vector<384x32xbf16>
    %30 = vector.shape_cast %29 : vector<384x32xbf16> to vector<3x128x32xbf16>
    %c0_15 = arith.constant 0 : index
    %c0_16 = arith.constant 0 : index
    %31 = vector.load %arg9[%c0_15, %c0_16] : memref<1x32xf32, #tpu.memory_space<vmem>>, vector<1x32xf32>
    %32 = arith.extf %30 : vector<3x128x32xbf16> to vector<3x128x32xf32>
    %33 = vector.shape_cast %31 : vector<1x32xf32> to vector<1x1x32xf32>
    %34 = vector.broadcast %33 : vector<1x1x32xf32> to vector<3x128x32xf32>
    %35 = arith.mulf %32, %34 : vector<3x128x32xf32>
    %cst_17 = arith.constant dense<0.000000e+00> : vector<3x128xf32>
    %36 = vector.multi_reduction <add>, %35, %cst_17 [2] : vector<3x128x32xf32> to vector<3x128xf32>
    %c0_18 = arith.constant 0 : index
    %c0_19 = arith.constant 0 : index
    %37 = memref.load %arg10[%c0_18, %c0_19] : memref<1x1xf32, #tpu.memory_space<smem>>
    %38 = vector.broadcast %37 : f32 to vector<3x128xf32>
    %39 = arith.addf %36, %38 : vector<3x128xf32>
    %40 = arith.negf %39 : vector<3x128xf32>
    %41 = math.exp %40 : vector<3x128xf32>
    %cst_20 = arith.constant 1.000000e+00 : f32
    %42 = vector.broadcast %cst_20 : f32 to vector<3x128xf32>
    %43 = arith.addf %42, %41 : vector<3x128xf32>
    %44 = arith.divf %42, %43 : vector<3x128xf32>
    %c0_21 = arith.constant 0 : index
    %c0_22 = arith.constant 0 : index
    %45 = vector.load %arg11[%c0_21, %c0_22] : memref<3x128xf32, #tpu.memory_space<vmem>>, vector<3x128xf32>
    tpu.vector_store %arg11[%c0_21, %c0_22], %44 {strides = array<i32>} : memref<3x128xf32, #tpu.memory_space<vmem>>, vector<3x128xf32>,
    return
  }
  func.func @transform_0(%arg0: i32, %arg1: i32) -> (i32, i32) {
    %c0_i32 = arith.constant 0 : i32
    %c0_i32_0 = arith.constant 0 : i32
    return %arg0, %c0_i32 : i32, i32
  }
  func.func @transform_1(%arg0: i32, %arg1: i32) -> (i32, i32) {
    %c0_i32 = arith.constant 0 : i32
    %c0_i32_0 = arith.constant 0 : i32
    return %arg0, %c0_i32 : i32, i32
  }
  func.func @transform_2(%arg0: i32, %arg1: i32) -> (i32, i32) {
    %c0_i32 = arith.constant 0 : i32
    %c0_i32_0 = arith.constant 0 : i32
    return %arg1, %c0_i32 : i32, i32
  }
  func.func @transform_3(%arg0: i32, %arg1: i32) -> (i32, i32) {
    %c0_i32 = arith.constant 0 : i32
    %c0_i32_0 = arith.constant 0 : i32
    %c0_i32_1 = arith.constant 0 : i32
    return %c0_i32, %c0_i32_0 : i32, i32
  }
  func.func @transform_4(%arg0: i32, %arg1: i32) -> (i32, i32) {
    %c0_i32 = arith.constant 0 : i32
    %c0_i32_0 = arith.constant 0 : i32
    %c0_i32_1 = arith.constant 0 : i32
    return %c0_i32, %c0_i32_0 : i32, i32
  }
  func.func @transform_5(%arg0: i32, %arg1: i32) -> (i32, i32) {
    %c0_i32 = arith.constant 0 : i32
    %c0_i32_0 = arith.constant 0 : i32
    %c0_i32_1 = arith.constant 0 : i32
    return %c0_i32, %c0_i32_0 : i32, i32
  }
  func.func @transform_6(%arg0: i32, %arg1: i32) -> (i32, i32) {
    %c0_i32 = arith.constant 0 : i32
    %c0_i32_0 = arith.constant 0 : i32
    %c0_i32_1 = arith.constant 0 : i32
    return %c0_i32, %c0_i32_0 : i32, i32
  }
  func.func @transform_7(%arg0: i32, %arg1: i32) -> (i32, i32) {
    %c0_i32 = arith.constant 0 : i32
    %c0_i32_0 = arith.constant 0 : i32
    %c0_i32_1 = arith.constant 0 : i32
    return %c0_i32, %c0_i32_0 : i32, i32
  }
  func.func @transform_8(%arg0: i32, %arg1: i32) -> (i32, i32) {
    %c0_i32 = arith.constant 0 : i32
    %c0_i32_0 = arith.constant 0 : i32
    %c0_i32_1 = arith.constant 0 : i32
    return %c0_i32, %c0_i32_0 : i32, i32
  }
  func.func @transform_9(%arg0: i32, %arg1: i32) -> (i32, i32) {
    %c0_i32 = arith.constant 0 : i32
    return %arg0, %arg1 : i32, i32
  }
}

</mosaic_0001>

<llo_original>
// kernel: tpu_custom_call.1
$region0: #{tpu_custom_call.1}
  #allocation0 [shape = 'u32[]', space=smem, size = 0x4, offset = 0x4, fixed_abs, tag = 'smem constant byte address 0x4 - core index']
  #allocation1 [shape = 'u32[144,128]{1,0:T(1,128)}', space=vmem, size = 0x12000, scoped, tag = 'internal scratch']
  #allocation2 [shape = 'f32[1,1]{1,0:T(1,128)S(6)}', space=smem, size = 0x200, scoped, tag = 'scoped memory for tpu_custom_call.1']
  %s0 = inlined_call_operand.vmem [shape: bf16[3,32], index: 0, kind: input, shape index: {}]
  %s1 = inlined_call_operand.vmem [shape: f32[3,64], index: 1, kind: input, shape index: {}]
  %s2 = inlined_call_operand.vmem [shape: bf16[128,32], index: 2, kind: input, shape index: {}]
  %s3 = inlined_call_operand.vmem [shape: bf16[32,64], index: 3, kind: input, shape index: {}]
  %s4 = inlined_call_operand.vmem [shape: bf16[32,64], index: 4, kind: input, shape index: {}]
  %s5 = inlined_call_operand.vmem [shape: bf16[64,32], index: 5, kind: input, shape index: {}]
  %s6 = inlined_call_operand.vmem [shape: f32[1,32], index: 6, kind: input, shape index: {}]
  %s7 = inlined_call_operand.vmem [shape: f32[1,32], index: 7, kind: input, shape index: {}]
  %s8 = inlined_call_operand.<no memory space> [shape: f32[1,1], index: 8, kind: input, shape index: {}]
  %s9 = inlined_call_operand.hbm [shape: f32[3,128], index: 9, kind: output, shape index: {}]
  %s10 = sld [smem:[#allocation0]]
  $region46: #{tpu_custom_call.1} parent=0
    _
  %s12 = ssub.s32 1, %s10
  %s13 = scalar_select 0, %s12, %s10
  %14 = sst [smem:[#allocation2]] %s8
  $region1: #{tpu_custom_call.1} parent=0
    #allocation3 [shape = 'u8[2048]{0}', space=vmem, size = 0x800, scoped, tag = 'output window, operand 0, single buffered']
    #allocation4 [shape = 's32[1]{0}', space=sflag, size = 0x4, scoped, tag = 'scoped memory for tpu_custom_call.1']
    %15 = vsyncpa [#allocation4], 0
    // Predicated region
    $region2: #{tpu_custom_call.1} parent=1 // pred_check
      _
    $region3: #{tpu_custom_call.1} parent=1 // pred_check_branch
      %17 = sbr.rel (0) target = $region5
    $region4: #{tpu_custom_call.1} parent=1 // pred_region
      _
    $region5: #{tpu_custom_call.1} parent=1 // pred_fallthru
      _
    // Predicated region
    $region6: #{tpu_custom_call.1} parent=1 // pred_check
      _
    $region7: #{tpu_custom_call.1} parent=1 // pred_check_branch
      %19 = sbr.rel (0) target = $region9
    $region8: #{tpu_custom_call.1} parent=1 // pred_region
      _
    $region9: #{tpu_custom_call.1} parent=1 // pred_fallthru
      _
    // Predicated region
    $region10: #{tpu_custom_call.1} parent=1 // pred_check
      _
    $region11: #{tpu_custom_call.1} parent=1 // pred_check_branch
      %21 = sbr.rel (0) target = $region13
    $region12: #{tpu_custom_call.1} parent=1 // pred_region
      _
    $region13: #{tpu_custom_call.1} parent=1 // pred_fallthru
      _
    // Predicated region
    $region14: #{tpu_custom_call.1} parent=1 // pred_check
      _
    $region15: #{tpu_custom_call.1} parent=1 // pred_check_branch
      %23 = sbr.rel (0) target = $region17
    $region16: #{tpu_custom_call.1} parent=1 // pred_region
      _
    $region17: #{tpu_custom_call.1} parent=1 // pred_fallthru
      _
    // Predicated region
    $region18: #{tpu_custom_call.1} parent=1 // pred_check
      _
    $region19: #{tpu_custom_call.1} parent=1 // pred_check_branch
      %25 = sbr.rel (0) target = $region21
    $region20: #{tpu_custom_call.1} parent=1 // pred_region
      _
    $region21: #{tpu_custom_call.1} parent=1 // pred_fallthru
      _
    // Predicated region
    $region22: #{tpu_custom_call.1} parent=1 // pred_check
      _
    $region23: #{tpu_custom_call.1} parent=1 // pred_check_branch
      %27 = sbr.rel (0) target = $region25
    $region24: #{tpu_custom_call.1} parent=1 // pred_region
      _
    $region25: #{tpu_custom_call.1} parent=1 // pred_fallthru
      _
    // Predicated region
    $region26: #{tpu_custom_call.1} parent=1 // pred_check
      _
    $region27: #{tpu_custom_call.1} parent=1 // pred_check_branch
      %29 = sbr.rel (0) target = $region29
    $region28: #{tpu_custom_call.1} parent=1 // pred_region
      _
    $region29: #{tpu_custom_call.1} parent=1 // pred_fallthru
      _
    // Predicated region
    $region30: #{tpu_custom_call.1} parent=1 // pred_check
      _
    $region31: #{tpu_custom_call.1} parent=1 // pred_check_branch
      %31 = sbr.rel (0) target = $region33
    $region32: #{tpu_custom_call.1} parent=1 // pred_region
      _
    $region33: #{tpu_custom_call.1} parent=1 // pred_fallthru
      _
    // Predicated region
    $region34: #{tpu_custom_call.1} parent=1 // pred_check
      _
    $region35: #{tpu_custom_call.1} parent=1 // pred_check_branch
      %33 = sbr.rel (0) target = $region37
    $region36: #{tpu_custom_call.1} parent=1 // pred_region
      _
    $region37: #{tpu_custom_call.1} parent=1 // pred_fallthru
      _
    %v35 = vld [vmem:[%s0] sm:$0x3]
    %v36 = vld [vmem:[%s2] sm:$0xf]
    %v37 = vld [vmem:[%s2 + $0x4] sm:$0xf]
    %v38 = vld [vmem:[%s2 + $0x8] sm:$0xf]
    %v39 = vld [vmem:[%s2 + $0xc] sm:$0xf]
    %v40 = vld [vmem:[%s2 + $0x10] sm:$0xf]
    %v41 = vld [vmem:[%s2 + $0x14] sm:$0xf]
    %v42 = vld [vmem:[%s2 + $0x18] sm:$0xf]
    %v43 = vld [vmem:[%s2 + $0x1c] sm:$0xf]
    %v44 = vld [vmem:[%s2 + $0x20] sm:$0xf]
    %v45 = vld [vmem:[%s2 + $0x24] sm:$0xf]
    %v46 = vld [vmem:[%s2 + $0x28] sm:$0xf]
    %v47 = vld [vmem:[%s2 + $0x2c] sm:$0xf]
    %v48 = vld [vmem:[%s2 + $0x30] sm:$0xf]
    %v49 = vld [vmem:[%s2 + $0x34] sm:$0xf]
    %v50 = vld [vmem:[%s2 + $0x38] sm:$0xf]
    %v51 = vld [vmem:[%s2 + $0x3c] sm:$0xf]
    %v52 = vld [vmem:[%s3] sm:$0xf]
    %v53 = vld [vmem:[%s3 + $0x4] sm:$0xf]
    %v54 = vld [vmem:[%s3 + $0x8] sm:$0xf]
    %v55 = vld [vmem:[%s3 + $0xc] sm:$0xf]
    %v72 = vunpack.c.l.b16 %v36
    %v73 = vunpack.c.l.b16 %v37
    %v74 = vunpack.c.l.b16 %v38
    %v75 = vunpack.c.l.b16 %v39
    %v76 = vunpack.c.l.b16 %v40
    %v77 = vunpack.c.l.b16 %v41
    %v78 = vunpack.c.l.b16 %v42
    %v79 = vunpack.c.l.b16 %v43
    %v80 = vunpack.c.l.b16 %v44
    %v81 = vunpack.c.l.b16 %v45
    %v82 = vunpack.c.l.b16 %v46
    %v83 = vunpack.c.l.b16 %v47
    %v84 = vunpack.c.l.b16 %v48
    %v85 = vunpack.c.l.b16 %v49
    %v86 = vunpack.c.l.b16 %v50
    %v87 = vunpack.c.l.b16 %v51
    %v88 = vpack.c.b16 %v73, %v72
    %v89 = vpack.c.b16 %v75, %v74
    %v90 = vpack.c.b16 %v77, %v76
    %v91 = vpack.c.b16 %v79, %v78
    %v92 = vpack.c.b16 %v81, %v80
    %v93 = vpack.c.b16 %v83, %v82
    %v94 = vpack.c.b16 %v85, %v84
    %v95 = vpack.c.b16 %v87, %v86
    %v100 = vunpack.c.l.b16 %v52
    %v101 = vunpack.c.l.b16 %v53
    %v102 = vunpack.c.l.b16 %v54
    %v103 = vunpack.c.l.b16 %v55
    %v104 = vpack.c.b16 %v101, %v100
    %v105 = vpack.c.b16 %v103, %v102
    %vm108 = vcmask 261120
    %v110 = vsel %vm108, %v88, 0
    %v113 = vsel %vm108, %v89, 0
    %v116 = vsel %vm108, %v90, 0
    %v119 = vsel %vm108, %v91, 0
    %v122 = vsel %vm108, %v92, 0
    %v125 = vsel %vm108, %v93, 0
    %v128 = vsel %vm108, %v94, 0
    %v131 = vsel %vm108, %v95, 0
    %133 = vmatprep.subr.bf16.mxu0 0
    %134 = vmatpush1.bf16.msra.mxu0 %v104
    %135 = vmatprep.subr.bf16.mxu0 0
    %136 = vmatpush1.bf16.msra.mxu0 %v105
    %137 = vmatprep.subr.bf16.mxu0 0
    %138 = vmatpush1.bf16.msra.mxu0 0
    %139 = vmatprep.subr.bf16.mxu0 0
    %140 = vmatpush1.bf16.msra.mxu0 0
    %141 = vmatprep.subr.bf16.mxu0 0
    %142 = vmatpush1.bf16.msra.mxu0 0
    %143 = vmatprep.subr.bf16.mxu0 0
    %144 = vmatpush1.bf16.msra.mxu0 0
    %145 = vmatprep.subr.bf16.mxu0 0
    %146 = vmatpush1.bf16.msra.mxu0 0
    %147 = vmatprep.subr.bf16.mxu0 0
    %148 = vmatpush1.bf16.msra.mxu0 0
    %149 = vmatprep.subr.bf16.mxu0 0
    %150 = vmatpush1.bf16.msra.mxu0 0
    %151 = vmatprep.subr.bf16.mxu0 0
    %152 = vmatpush1.bf16.msra.mxu0 0
    %153 = vmatprep.subr.bf16.mxu0 0
    %154 = vmatpush1.bf16.msra.mxu0 0
    %155 = vmatprep.subr.bf16.mxu0 0
    %156 = vmatpush1.bf16.msra.mxu0 0
    %157 = vmatprep.subr.bf16.mxu0 0
    %158 = vmatpush1.bf16.msra.mxu0 0
    %159 = vmatprep.subr.bf16.mxu0 0
    %160 = vmatpush1.bf16.msra.mxu0 0
    %161 = vmatprep.subr.bf16.mxu0 0
    %162 = vmatpush1.bf16.msra.mxu0 0
    %163 = vmatprep.subr.bf16.mxu0 0
    %164 = vmatpush1.bf16.msra.mxu0 0
    %165 = vmatprep.mubr.bf16.mxu0 0
    %166 = vmatmul.mubr.bf16.gmra.mrb[0].mxu0 %v110
    %v167 = vpop.f32.mrb[0].mxu0
    %v168 = vadd.f32 0.0, %v167
    %v169 = vpop.f32.mrb[0].mxu0
    %v170 = vpop.f32.mrb[0].mxu0
    %v171 = vadd.f32 0.0, %v170
    %v172 = vpop.f32.mrb[0].mxu0
    %173 = vmatprep.mubr.bf16.mxu0 0
    %174 = vmatmul.mubr.bf16.gmra.mrb[0].mxu0 %v113
    %v175 = vpop.f32.mrb[0].mxu0
    %v176 = vadd.f32 0.0, %v175
    %v177 = vpop.f32.mrb[0].mxu0
    %v178 = vpop.f32.mrb[0].mxu0
    %v179 = vadd.f32 0.0, %v178
    %v180 = vpop.f32.mrb[0].mxu0
    %181 = vmatprep.mubr.bf16.mxu0 0
    %182 = vmatmul.mubr.bf16.gmra.mrb[0].mxu0 %v116
    %v183 = vpop.f32.mrb[0].mxu0
    %v184 = vadd.f32 0.0, %v183
    %v185 = vpop.f32.mrb[0].mxu0
    %v186 = vpop.f32.mrb[0].mxu0
    %v187 = vadd.f32 0.0, %v186
    %v188 = vpop.f32.mrb[0].mxu0
    %189 = vmatprep.mubr.bf16.mxu0 0
    %190 = vmatmul.mubr.bf16.gmra.mrb[0].mxu0 %v119
    %v191 = vpop.f32.mrb[0].mxu0
    %v192 = vadd.f32 0.0, %v191
    %v193 = vpop.f32.mrb[0].mxu0
    %v194 = vpop.f32.mrb[0].mxu0
    %v195 = vadd.f32 0.0, %v194
    %v196 = vpop.f32.mrb[0].mxu0
    %197 = vmatprep.mubr.bf16.mxu0 0
    %198 = vmatmul.mubr.bf16.gmra.mrb[0].mxu0 %v122
    %v199 = vpop.f32.mrb[0].mxu0
    %v200 = vadd.f32 0.0, %v199
    %v201 = vpop.f32.mrb[0].mxu0
    %v202 = vpop.f32.mrb[0].mxu0
    %v203 = vadd.f32 0.0, %v202
    %v204 = vpop.f32.mrb[0].mxu0
    %205 = vmatprep.mubr.bf16.mxu0 0
    %206 = vmatmul.mubr.bf16.gmra.mrb[0].mxu0 %v125
    %v207 = vpop.f32.mrb[0].mxu0
    %v208 = vadd.f32 0.0, %v207
    %v209 = vpop.f32.mrb[0].mxu0
    %v210 = vpop.f32.mrb[0].mxu0
    %v211 = vadd.f32 0.0, %v210
    %v212 = vpop.f32.mrb[0].mxu0
    %213 = vmatprep.mubr.bf16.mxu0 0
    %214 = vmatmul.mubr.bf16.gmra.mrb[0].mxu0 %v128
    %v215 = vpop.f32.mrb[0].mxu0
    %v216 = vadd.f32 0.0, %v215
    %v217 = vpop.f32.mrb[0].mxu0
    %v218 = vpop.f32.mrb[0].mxu0
    %v219 = vadd.f32 0.0, %v218
    %v220 = vpop.f32.mrb[0].mxu0
    %221 = vmatprep.mubr.bf16.mxu0 0
    %222 = vmatmul.mubr.bf16.gmra.mrb[0].mxu0 %v131
    %v223 = vpop.f32.mrb[0].mxu0
    %v224 = vadd.f32 0.0, %v223
    %v225 = vpop.f32.mrb[0].mxu0
    %v226 = vpop.f32.mrb[0].mxu0
    %v227 = vadd.f32 0.0, %v226
    %v228 = vpop.f32.mrb[0].mxu0
    %229 = vdwg.mxu0
    %v232 = vunpack.c.l.s4 1966171168
    %v233 = vunpack.c.0.s8 %v232
    %v234 = vlaneseq
    %v235 = vshrl.u32 %v234, 7
    %v236 = vsub.s32 %v233, %v235
    %v237 = vrot.slane %v35, %v236
    %v238 = vcombine.high %v237, %v237
    %v239 = vunpack.i.l.s16 %v237
    %v240 = vunpack.i.h.s16 %v237
    %v241 = vunpack.i.l.s16 %v238
    %v242 = vpack.i.b16 %v239, %v239
    %v243 = vpack.i.b16 %v240, %v240
    %v244 = vpack.i.b16 %v241, %v241
    %v245 = vlaneseq
    %v246 = vshrl.u32 %v245, 7
    %v247 = vsub.s32 0, %v246
    %v248 = vrot.slane %v242, %v247
    %v249 = vlaneseq
    %v250 = vshrl.u32 %v249, 7
    %v251 = vsub.s32 0, %v250
    %v252 = vrot.slane %v243, %v251
    %v253 = vlaneseq
    %v254 = vshrl.u32 %v253, 7
    %v255 = vsub.s32 0, %v254
    %v256 = vrot.slane %v244, %v255
    %v258 = vpack.i.b16 %v248, %v248
    %v260 = vlaneseq
    %v261 = vshrl.u32 %v260, 7
    %v262 = vsub.s32 0, %v261
    %v263 = vrot.slane %v258, %v262
    %v265 = vpack.i.b16 %v252, %v252
    %v267 = vlaneseq
    %v268 = vshrl.u32 %v267, 7
    %v269 = vsub.s32 0, %v268
    %v270 = vrot.slane %v265, %v269
    %v272 = vpack.i.b16 %v256, %v256
    %v274 = vlaneseq
    %v275 = vshrl.u32 %v274, 7
    %v276 = vsub.s32 0, %v275
    %v277 = vrot.slane %v272, %v276
    %v286 = vmul.bf16 %v263, %v88
    %v287 = vmul.bf16 %v263, %v89
    %v288 = vmul.bf16 %v263, %v90
    %v289 = vmul.bf16 %v263, %v91
    %v290 = vmul.bf16 %v263, %v92
    %v291 = vmul.bf16 %v263, %v93
    %v292 = vmul.bf16 %v263, %v94
    %v293 = vmul.bf16 %v263, %v95
    %v294 = vmul.bf16 %v270, %v88
    %v295 = vmul.bf16 %v270, %v89
    %v296 = vmul.bf16 %v270, %v90
    %v297 = vmul.bf16 %v270, %v91
    %v298 = vmul.bf16 %v270, %v92
    %v299 = vmul.bf16 %v270, %v93
    %v300 = vmul.bf16 %v270, %v94
    %v301 = vmul.bf16 %v270, %v95
    %v302 = vmul.bf16 %v277, %v88
    %v303 = vmul.bf16 %v277, %v89
    %v304 = vmul.bf16 %v277, %v90
    %v305 = vmul.bf16 %v277, %v91
    %v306 = vmul.bf16 %v277, %v92
    %v307 = vmul.bf16 %v277, %v93
    %v308 = vmul.bf16 %v277, %v94
    %v309 = vmul.bf16 %v277, %v95
    %v310 = vld [vmem:[%s4] sm:$0xf]
    %v311 = vld [vmem:[%s4 + $0x4] sm:$0xf]
    %v312 = vld [vmem:[%s4 + $0x8] sm:$0xf]
    %v313 = vld [vmem:[%s4 + $0xc] sm:$0xf]
    %v318 = vunpack.c.l.b16 %v310
    %v319 = vunpack.c.l.b16 %v311
    %v320 = vunpack.c.l.b16 %v312
    %v321 = vunpack.c.l.b16 %v313
    %v322 = vpack.c.b16 %v319, %v318
    %v323 = vpack.c.b16 %v321, %v320
    %v327 = vsel %vm108, %v286, 0
    %v330 = vsel %vm108, %v287, 0
    %v333 = vsel %vm108, %v288, 0
    %v336 = vsel %vm108, %v289, 0
    %v339 = vsel %vm108, %v290, 0
    %v342 = vsel %vm108, %v291, 0
    %v345 = vsel %vm108, %v292, 0
    %v348 = vsel %vm108, %v293, 0
    %v351 = vsel %vm108, %v294, 0
    %v354 = vsel %vm108, %v295, 0
    %v357 = vsel %vm108, %v296, 0
    %v360 = vsel %vm108, %v297, 0
    %v363 = vsel %vm108, %v298, 0
    %v366 = vsel %vm108, %v299, 0
    %v369 = vsel %vm108, %v300, 0
    %v372 = vsel %vm108, %v301, 0
    %v375 = vsel %vm108, %v302, 0
    %v378 = vsel %vm108, %v303, 0
    %v381 = vsel %vm108, %v304, 0
    %v384 = vsel %vm108, %v305, 0
    %v387 = vsel %vm108, %v306, 0
    %v390 = vsel %vm108, %v307, 0
    %v393 = vsel %vm108, %v308, 0
    %v396 = vsel %vm108, %v309, 0
    %398 = vmatprep.subr.bf16.mxu0 0
    %399 = vmatpush1.bf16.msra.mxu0 %v322
    %400 = vmatprep.subr.bf16.mxu0 0
    %401 = vmatpush1.bf16.msra.mxu0 %v323
    %402 = vmatprep.subr.bf16.mxu0 0
    %403 = vmatpush1.bf16.msra.mxu0 0
    %404 = vmatprep.subr.bf16.mxu0 0
    %405 = vmatpush1.bf16.msra.mxu0 0
    %406 = vmatprep.subr.bf16.mxu0 0
    %407 = vmatpush1.bf16.msra.mxu0 0
    %408 = vmatprep.subr.bf16.mxu0 0
    %409 = vmatpush1.bf16.msra.mxu0 0
    %410 = vmatprep.subr.bf16.mxu0 0
    %411 = vmatpush1.bf16.msra.mxu0 0
    %412 = vmatprep.subr.bf16.mxu0 0
    %413 = vmatpush1.bf16.msra.mxu0 0
    %414 = vmatprep.subr.bf16.mxu0 0
    %415 = vmatpush1.bf16.msra.mxu0 0
    %416 = vmatprep.subr.bf16.mxu0 0
    %417 = vmatpush1.bf16.msra.mxu0 0
    %418 = vmatprep.subr.bf16.mxu0 0
    %419 = vmatpush1.bf16.msra.mxu0 0
    %420 = vmatprep.subr.bf16.mxu0 0
    %421 = vmatpush1.bf16.msra.mxu0 0
    %422 = vmatprep.subr.bf16.mxu0 0
    %423 = vmatpush1.bf16.msra.mxu0 0
    %424 = vmatprep.subr.bf16.mxu0 0
    %425 = vmatpush1.bf16.msra.mxu0 0
    %426 = vmatprep.subr.bf16.mxu0 0
    %427 = vmatpush1.bf16.msra.mxu0 0
    %428 = vmatprep.subr.bf16.mxu0 0
    %429 = vmatpush1.bf16.msra.mxu0 0
    %430 = vmatprep.mubr.bf16.mxu0 0
    %431 = vmatmul.mubr.bf16.gmra.mrb[0].mxu0 %v327
    %v432 = vpop.f32.mrb[0].mxu0
    %v433 = vadd.f32 0.0, %v432
    %v434 = vpop.f32.mrb[0].mxu0
    %v435 = vpop.f32.mrb[0].mxu0
    %v436 = vadd.f32 0.0, %v435
    %v437 = vpop.f32.mrb[0].mxu0
    %438 = vmatprep.mubr.bf16.mxu0 0
    %439 = vmatmul.mubr.bf16.gmra.mrb[0].mxu0 %v330
    %v440 = vpop.f32.mrb[0].mxu0
    %v441 = vadd.f32 0.0, %v440
    %v442 = vpop.f32.mrb[0].mxu0
    %v443 = vpop.f32.mrb[0].mxu0
    %v444 = vadd.f32 0.0, %v443
    %v445 = vpop.f32.mrb[0].mxu0
    %446 = vmatprep.mubr.bf16.mxu0 0
    %447 = vmatmul.mubr.bf16.gmra.mrb[0].mxu0 %v333
    %v448 = vpop.f32.mrb[0].mxu0
    %v449 = vadd.f32 0.0, %v448
    %v450 = vpop.f32.mrb[0].mxu0
    %v451 = vpop.f32.mrb[0].mxu0
    %v452 = vadd.f32 0.0, %v451
    %v453 = vpop.f32.mrb[0].mxu0
    %454 = vmatprep.mubr.bf16.mxu0 0
    %455 = vmatmul.mubr.bf16.gmra.mrb[0].mxu0 %v336
    %v456 = vpop.f32.mrb[0].mxu0
    %v457 = vadd.f32 0.0, %v456
    %v458 = vpop.f32.mrb[0].mxu0
    %v459 = vpop.f32.mrb[0].mxu0
    %v460 = vadd.f32 0.0, %v459
    %v461 = vpop.f32.mrb[0].mxu0
    %462 = vmatprep.mubr.bf16.mxu0 0
    %463 = vmatmul.mubr.bf16.gmra.mrb[0].mxu0 %v339
    %v464 = vpop.f32.mrb[0].mxu0
    %v465 = vadd.f32 0.0, %v464
    %v466 = vpop.f32.mrb[0].mxu0
    %v467 = vpop.f32.mrb[0].mxu0
    %v468 = vadd.f32 0.0, %v467
    %v469 = vpop.f32.mrb[0].mxu0
    %470 = vmatprep.mubr.bf16.mxu0 0
    %471 = vmatmul.mubr.bf16.gmra.mrb[0].mxu0 %v342
    %v472 = vpop.f32.mrb[0].mxu0
    %v473 = vadd.f32 0.0, %v472
    %v474 = vpop.f32.mrb[0].mxu0
    %v475 = vpop.f32.mrb[0].mxu0
    %v476 = vadd.f32 0.0, %v475
    %v477 = vpop.f32.mrb[0].mxu0
    %478 = vmatprep.mubr.bf16.mxu0 0
    %479 = vmatmul.mubr.bf16.gmra.mrb[0].mxu0 %v345
    %v480 = vpop.f32.mrb[0].mxu0
    %v481 = vadd.f32 0.0, %v480
    %v482 = vpop.f32.mrb[0].mxu0
    %v483 = vpop.f32.mrb[0].mxu0
    %v484 = vadd.f32 0.0, %v483
    %v485 = vpop.f32.mrb[0].mxu0
    %486 = vmatprep.mubr.bf16.mxu0 0
    %487 = vmatmul.mubr.bf16.gmra.mrb[0].mxu0 %v348
    %v488 = vpop.f32.mrb[0].mxu0
    %v489 = vadd.f32 0.0, %v488
    %v490 = vpop.f32.mrb[0].mxu0
    %v491 = vpop.f32.mrb[0].mxu0
    %v492 = vadd.f32 0.0, %v491
    %v493 = vpop.f32.mrb[0].mxu0
    %494 = vmatprep.mubr.bf16.mxu0 0
    %495 = vmatmul.mubr.bf16.gmra.mrb[0].mxu0 %v351
    %v496 = vpop.f32.mrb[0].mxu0
    %v497 = vadd.f32 0.0, %v496
    %v498 = vpop.f32.mrb[0].mxu0
    %v499 = vpop.f32.mrb[0].mxu0
    %v500 = vadd.f32 0.0, %v499
    %v501 = vpop.f32.mrb[0].mxu0
    %502 = vmatprep.mubr.bf16.mxu0 0
    %503 = vmatmul.mubr.bf16.gmra.mrb[0].mxu0 %v354
    %v504 = vpop.f32.mrb[0].mxu0
    %v505 = vadd.f32 0.0, %v504
    %v506 = vpop.f32.mrb[0].mxu0
    %v507 = vpop.f32.mrb[0].mxu0
    %v508 = vadd.f32 0.0, %v507
    %v509 = vpop.f32.mrb[0].mxu0
    %510 = vmatprep.mubr.bf16.mxu0 0
    %511 = vmatmul.mubr.bf16.gmra.mrb[0].mxu0 %v357
    %v512 = vpop.f32.mrb[0].mxu0
    %v513 = vadd.f32 0.0, %v512
    %v514 = vpop.f32.mrb[0].mxu0
    %v515 = vpop.f32.mrb[0].mxu0
    %v516 = vadd.f32 0.0, %v515
    %v517 = vpop.f32.mrb[0].mxu0
    %518 = vmatprep.mubr.bf16.mxu0 0
    %519 = vmatmul.mubr.bf16.gmra.mrb[0].mxu0 %v360
    %v520 = vpop.f32.mrb[0].mxu0
    %v521 = vadd.f32 0.0, %v520
    %v522 = vpop.f32.mrb[0].mxu0
    %v523 = vpop.f32.mrb[0].mxu0
    %v524 = vadd.f32 0.0, %v523
    %v525 = vpop.f32.mrb[0].mxu0
    %526 = vmatprep.mubr.bf16.mxu0 0
    %527 = vmatmul.mubr.bf16.gmra.mrb[0].mxu0 %v363
    %v528 = vpop.f32.mrb[0].mxu0
    %v529 = vadd.f32 0.0, %v528
    %v530 = vpop.f32.mrb[0].mxu0
    %v531 = vpop.f32.mrb[0].mxu0
    %v532 = vadd.f32 0.0, %v531
    %v533 = vpop.f32.mrb[0].mxu0
    %534 = vmatprep.mubr.bf16.mxu0 0
    %535 = vmatmul.mubr.bf16.gmra.mrb[0].mxu0 %v366
    %v536 = vpop.f32.mrb[0].mxu0
    %v537 = vadd.f32 0.0, %v536
    %v538 = vpop.f32.mrb[0].mxu0
    %v539 = vpop.f32.mrb[0].mxu0
    %v540 = vadd.f32 0.0, %v539
    %v541 = vpop.f32.mrb[0].mxu0
    %542 = vmatprep.mubr.bf16.mxu0 0
    %543 = vmatmul.mubr.bf16.gmra.mrb[0].mxu0 %v369
    %v544 = vpop.f32.mrb[0].mxu0
    %v545 = vadd.f32 0.0, %v544
    %v546 = vpop.f32.mrb[0].mxu0
    %v547 = vpop.f32.mrb[0].mxu0
    %v548 = vadd.f32 0.0, %v547
    %v549 = vpop.f32.mrb[0].mxu0
    %550 = vmatprep.mubr.bf16.mxu0 0
    %551 = vmatmul.mubr.bf16.gmra.mrb[0].mxu0 %v372
    %v552 = vpop.f32.mrb[0].mxu0
    %v553 = vadd.f32 0.0, %v552
    %v554 = vpop.f32.mrb[0].mxu0
    %v555 = vpop.f32.mrb[0].mxu0
    %v556 = vadd.f32 0.0, %v555
    %v557 = vpop.f32.mrb[0].mxu0
    %558 = vmatprep.mubr.bf16.mxu0 0
    %559 = vmatmul.mubr.bf16.gmra.mrb[0].mxu0 %v375
    %v560 = vpop.f32.mrb[0].mxu0
    %v561 = vadd.f32 0.0, %v560
    %v562 = vpop.f32.mrb[0].mxu0
    %v563 = vpop.f32.mrb[0].mxu0
    %v564 = vadd.f32 0.0, %v563
    %v565 = vpop.f32.mrb[0].mxu0
    %566 = vmatprep.mubr.bf16.mxu0 0
    %567 = vmatmul.mubr.bf16.gmra.mrb[0].mxu0 %v378
    %v568 = vpop.f32.mrb[0].mxu0
    %v569 = vadd.f32 0.0, %v568
    %v570 = vpop.f32.mrb[0].mxu0
    %v571 = vpop.f32.mrb[0].mxu0
    %v572 = vadd.f32 0.0, %v571
    %v573 = vpop.f32.mrb[0].mxu0
    %574 = vmatprep.mubr.bf16.mxu0 0
    %575 = vmatmul.mubr.bf16.gmra.mrb[0].mxu0 %v381
    %v576 = vpop.f32.mrb[0].mxu0
    %v577 = vadd.f32 0.0, %v576
    %v578 = vpop.f32.mrb[0].mxu0
    %v579 = vpop.f32.mrb[0].mxu0
    %v580 = vadd.f32 0.0, %v579
    %v581 = vpop.f32.mrb[0].mxu0
    %582 = vmatprep.mubr.bf16.mxu0 0
    %583 = vmatmul.mubr.bf16.gmra.mrb[0].mxu0 %v384
    %v584 = vpop.f32.mrb[0].mxu0
    %v585 = vadd.f32 0.0, %v584
    %v586 = vpop.f32.mrb[0].mxu0
    %v587 = vpop.f32.mrb[0].mxu0
    %v588 = vadd.f32 0.0, %v587
    %v589 = vpop.f32.mrb[0].mxu0
    %590 = vmatprep.mubr.bf16.mxu0 0
    %591 = vmatmul.mubr.bf16.gmra.mrb[0].mxu0 %v387
    %v592 = vpop.f32.mrb[0].mxu0
    %v593 = vadd.f32 0.0, %v592
    %v594 = vpop.f32.mrb[0].mxu0
    %v595 = vpop.f32.mrb[0].mxu0
    %v596 = vadd.f32 0.0, %v595
    %v597 = vpop.f32.mrb[0].mxu0
    %598 = vmatprep.mubr.bf16.mxu0 0
    %599 = vmatmul.mubr.bf16.gmra.mrb[0].mxu0 %v390
    %v600 = vpop.f32.mrb[0].mxu0
    %v601 = vadd.f32 0.0, %v600
    %v602 = vpop.f32.mrb[0].mxu0
    %v603 = vpop.f32.mrb[0].mxu0
    %v604 = vadd.f32 0.0, %v603
    %v605 = vpop.f32.mrb[0].mxu0
    %606 = vmatprep.mubr.bf16.mxu0 0
    %607 = vmatmul.mubr.bf16.gmra.mrb[0].mxu0 %v393
    %v608 = vpop.f32.mrb[0].mxu0
    %v609 = vadd.f32 0.0, %v608
    %v610 = vpop.f32.mrb[0].mxu0
    %v611 = vpop.f32.mrb[0].mxu0
    %v612 = vadd.f32 0.0, %v611
    %v613 = vpop.f32.mrb[0].mxu0
    %614 = vmatprep.mubr.bf16.mxu0 0
    %615 = vmatmul.mubr.bf16.gmra.mrb[0].mxu0 %v396
    %v616 = vpop.f32.mrb[0].mxu0
    %v617 = vadd.f32 0.0, %v616
    %v618 = vpop.f32.mrb[0].mxu0
    %v619 = vpop.f32.mrb[0].mxu0
    %v620 = vadd.f32 0.0, %v619
    %v621 = vpop.f32.mrb[0].mxu0
    %622 = vdwg.mxu0
    %v623 = vadd.f32 %v433, %v168
    %v624 = vadd.f32 %v436, %v171
    %v625 = vadd.f32 %v441, %v176
    %v626 = vadd.f32 %v444, %v179
    %v627 = vadd.f32 %v449, %v184
    %v628 = vadd.f32 %v452, %v187
    %v629 = vadd.f32 %v457, %v192
    %v630 = vadd.f32 %v460, %v195
    %v631 = vadd.f32 %v465, %v200
    %v632 = vadd.f32 %v468, %v203
    %v633 = vadd.f32 %v473, %v208
    %v634 = vadd.f32 %v476, %v211
    %v635 = vadd.f32 %v481, %v216
    %v636 = vadd.f32 %v484, %v219
    %v637 = vadd.f32 %v489, %v224
    %v638 = vadd.f32 %v492, %v227
    %v639 = vadd.f32 %v497, %v168
    %v640 = vadd.f32 %v500, %v171
    %v641 = vadd.f32 %v505, %v176
    %v642 = vadd.f32 %v508, %v179
    %v643 = vadd.f32 %v513, %v184
    %v644 = vadd.f32 %v516, %v187
    %v645 = vadd.f32 %v521, %v192
    %v646 = vadd.f32 %v524, %v195
    %v647 = vadd.f32 %v529, %v200
    %v648 = vadd.f32 %v532, %v203
    %v649 = vadd.f32 %v537, %v208
    %v650 = vadd.f32 %v540, %v211
    %v651 = vadd.f32 %v545, %v216
    %v652 = vadd.f32 %v548, %v219
    %v653 = vadd.f32 %v553, %v224
    %v654 = vadd.f32 %v556, %v227
    %v655 = vadd.f32 %v561, %v168
    %v656 = vadd.f32 %v564, %v171
    %v657 = vadd.f32 %v569, %v176
    %v658 = vadd.f32 %v572, %v179
    %v659 = vadd.f32 %v577, %v184
    %v660 = vadd.f32 %v580, %v187
    %v661 = vadd.f32 %v585, %v192
    %v662 = vadd.f32 %v588, %v195
    %v663 = vadd.f32 %v593, %v200
    %v664 = vadd.f32 %v596, %v203
    %v665 = vadd.f32 %v601, %v208
    %v666 = vadd.f32 %v604, %v211
    %v667 = vadd.f32 %v609, %v216
    %v668 = vadd.f32 %v612, %v219
    %v669 = vadd.f32 %v617, %v224
    %v670 = vadd.f32 %v620, %v227
    %v671 = vld [vmem:[%s1] sm:$0x7]
    %v674 = vunpack.c.l.s4 1966171168
    %v675 = vunpack.c.0.s8 %v674
    %v676 = vlaneseq
    %v677 = vshrl.u32 %v676, 7
    %v678 = vsub.s32 %v675, %v677
    %v679 = vrot.slane %v671, %v678
    %v680 = vcombine.high %v679, %v679
    %v682 = vunpack.c.l.s4 1966171168
    %v683 = vunpack.c.0.s8 %v682
    %v684 = vlaneseq
    %v685 = vshrl.u32 %v684, 7
    %v686 = vsub.s32 %v683, %v685
    %v687 = vrot.slane %v679, %v686
    %v689 = vunpack.c.l.s4 1966171168
    %v690 = vunpack.c.0.s8 %v689
    %v691 = vlaneseq
    %v692 = vshrl.u32 %v691, 7
    %v693 = vsub.s32 %v690, %v692
    %v694 = vrot.slane %v680, %v693
    %v695 = vcombine.high %v687, %v687
    %v696 = vlaneseq
    %v697 = vshrl.u32 %v696, 7
    %v698 = vsub.s32 0, %v697
    %v699 = vrot.slane %v687, %v698
    %v700 = vlaneseq
    %v701 = vshrl.u32 %v700, 7
    %v702 = vsub.s32 0, %v701
    %v703 = vrot.slane %v694, %v702
    %v704 = vlaneseq
    %v705 = vshrl.u32 %v704, 7
    %v706 = vsub.s32 0, %v705
    %v707 = vrot.slane %v695, %v706
    %v711 = vadd.f32 %v623, %v699
    %v712 = vadd.f32 %v624, %v699
    %v713 = vadd.f32 %v625, %v699
    %v714 = vadd.f32 %v626, %v699
    %v715 = vadd.f32 %v627, %v699
    %v716 = vadd.f32 %v628, %v699
    %v717 = vadd.f32 %v629, %v699
    %v718 = vadd.f32 %v630, %v699
    %v719 = vadd.f32 %v631, %v699
    %v720 = vadd.f32 %v632, %v699
    %v721 = vadd.f32 %v633, %v699
    %v722 = vadd.f32 %v634, %v699
    %v723 = vadd.f32 %v635, %v699
    %v724 = vadd.f32 %v636, %v699
    %v725 = vadd.f32 %v637, %v699
    %v726 = vadd.f32 %v638, %v699
    %v727 = vadd.f32 %v639, %v703
    %v728 = vadd.f32 %v640, %v703
    %v729 = vadd.f32 %v641, %v703
    %v730 = vadd.f32 %v642, %v703
    %v731 = vadd.f32 %v643, %v703
    %v732 = vadd.f32 %v644, %v703
    %v733 = vadd.f32 %v645, %v703
    %v734 = vadd.f32 %v646, %v703
    %v735 = vadd.f32 %v647, %v703
    %v736 = vadd.f32 %v648, %v703
    %v737 = vadd.f32 %v649, %v703
    %v738 = vadd.f32 %v650, %v703
    %v739 = vadd.f32 %v651, %v703
    %v740 = vadd.f32 %v652, %v703
    %v741 = vadd.f32 %v653, %v703
    %v742 = vadd.f32 %v654, %v703
    %v743 = vadd.f32 %v655, %v707
    %v744 = vadd.f32 %v656, %v707
    %v745 = vadd.f32 %v657, %v707
    %v746 = vadd.f32 %v658, %v707
    %v747 = vadd.f32 %v659, %v707
    %v748 = vadd.f32 %v660, %v707
    %v749 = vadd.f32 %v661, %v707
    %v750 = vadd.f32 %v662, %v707
    %v751 = vadd.f32 %v663, %v707
    %v752 = vadd.f32 %v664, %v707
    %v753 = vadd.f32 %v665, %v707
    %v754 = vadd.f32 %v666, %v707
    %v755 = vadd.f32 %v667, %v707
    %v756 = vadd.f32 %v668, %v707
    %v757 = vadd.f32 %v669, %v707
    %v758 = vadd.f32 %v670, %v707
    %v759 = vpack.c.bf16 %v712, %v711
    %v760 = vpack.c.bf16 %v714, %v713
    %v761 = vpack.c.bf16 %v716, %v715
    %v762 = vpack.c.bf16 %v718, %v717
    %v763 = vpack.c.bf16 %v720, %v719
    %v764 = vpack.c.bf16 %v722, %v721
    %v765 = vpack.c.bf16 %v724, %v723
    %v766 = vpack.c.bf16 %v726, %v725
    %v767 = vpack.c.bf16 %v728, %v727
    %v768 = vpack.c.bf16 %v730, %v729
    %v769 = vpack.c.bf16 %v732, %v731
    %v770 = vpack.c.bf16 %v734, %v733
    %v771 = vpack.c.bf16 %v736, %v735
    %v772 = vpack.c.bf16 %v738, %v737
    %v773 = vpack.c.bf16 %v740, %v739
    %v774 = vpack.c.bf16 %v742, %v741
    %v775 = vpack.c.bf16 %v744, %v743
    %v776 = vpack.c.bf16 %v746, %v745
    %v777 = vpack.c.bf16 %v748, %v747
    %v778 = vpack.c.bf16 %v750, %v749
    %v779 = vpack.c.bf16 %v752, %v751
    %v780 = vpack.c.bf16 %v754, %v753
    %v781 = vpack.c.bf16 %v756, %v755
    %v782 = vpack.c.bf16 %v758, %v757
    %v783 = vtanh.bf16.pop %v759
    %v784 = vtanh.bf16.pop %v760
    %v785 = vtanh.bf16.pop %v761
    %v786 = vtanh.bf16.pop %v762
    %v787 = vtanh.bf16.pop %v763
    %v788 = vtanh.bf16.pop %v764
    %v789 = vtanh.bf16.pop %v765
    %v790 = vtanh.bf16.pop %v766
    %v791 = vtanh.bf16.pop %v767
    %v792 = vtanh.bf16.pop %v768
    %v793 = vtanh.bf16.pop %v769
    %v794 = vtanh.bf16.pop %v770
    %v795 = vtanh.bf16.pop %v771
    %v796 = vtanh.bf16.pop %v772
    %v797 = vtanh.bf16.pop %v773
    %v798 = vtanh.bf16.pop %v774
    %v799 = vtanh.bf16.pop %v775
    %v800 = vtanh.bf16.pop %v776
    %v801 = vtanh.bf16.pop %v777
    %v802 = vtanh.bf16.pop %v778
    %v803 = vtanh.bf16.pop %v779
    %v804 = vtanh.bf16.pop %v780
    %v805 = vtanh.bf16.pop %v781
    %v806 = vtanh.bf16.pop %v782
    %v807 = vld [vmem:[%s5] sm:$0xf]
    %v808 = vld [vmem:[%s5 + $0x4] sm:$0xf]
    %v809 = vld [vmem:[%s5 + $0x8] sm:$0xf]
    %v810 = vld [vmem:[%s5 + $0xc] sm:$0xf]
    %v811 = vld [vmem:[%s5 + $0x10] sm:$0xf]
    %v812 = vld [vmem:[%s5 + $0x14] sm:$0xf]
    %v813 = vld [vmem:[%s5 + $0x18] sm:$0xf]
    %v814 = vld [vmem:[%s5 + $0x1c] sm:$0xf]
    %v815 = vld [vmem:[%s6] sm:$0x1]
    %v817 = vlaneseq
    %v818 = vshrl.u32 %v817, 7
    %v819 = vsub.s32 0, %v818
    %v820 = vrot.slane %v815, %v819
    %v830 = vunpack.c.l.b16 %v807
    %v831 = vunpack.c.l.b16 %v808
    %v832 = vunpack.c.l.b16 %v809
    %v833 = vunpack.c.l.b16 %v810
    %v834 = vunpack.c.l.b16 %v811
    %v835 = vunpack.c.l.b16 %v812
    %v836 = vunpack.c.l.b16 %v813
    %v837 = vunpack.c.l.b16 %v814
    %v838 = vpack.c.b16 %v831, %v830
    %v839 = vpack.c.b16 %v833, %v832
    %v840 = vpack.c.b16 %v835, %v834
    %v841 = vpack.c.b16 %v837, %v836
    %vm846 = vcmask 523264
    %v848 = vsel %vm846, %v783, 0
    %v851 = vsel %vm846, %v784, 0
    %v854 = vsel %vm846, %v785, 0
    %v857 = vsel %vm846, %v786, 0
    %v860 = vsel %vm846, %v787, 0
    %v863 = vsel %vm846, %v788, 0
    %v866 = vsel %vm846, %v789, 0
    %v869 = vsel %vm846, %v790, 0
    %v872 = vsel %vm846, %v791, 0
    %v875 = vsel %vm846, %v792, 0
    %v878 = vsel %vm846, %v793, 0
    %v881 = vsel %vm846, %v794, 0
    %v884 = vsel %vm846, %v795, 0
    %v887 = vsel %vm846, %v796, 0
    %v890 = vsel %vm846, %v797, 0
    %v893 = vsel %vm846, %v798, 0
    %v896 = vsel %vm846, %v799, 0
    %v899 = vsel %vm846, %v800, 0
    %v902 = vsel %vm846, %v801, 0
    %v905 = vsel %vm846, %v802, 0
    %v908 = vsel %vm846, %v803, 0
    %v911 = vsel %vm846, %v804, 0
    %v914 = vsel %vm846, %v805, 0
    %v917 = vsel %vm846, %v806, 0
    %919 = vmatprep.subr.bf16.mxu0 0
    %920 = vmatpush1.bf16.msra.mxu0 %v838
    %921 = vmatprep.subr.bf16.mxu0 0
    %922 = vmatpush1.bf16.msra.mxu0 %v839
    %923 = vmatprep.subr.bf16.mxu0 0
    %924 = vmatpush1.bf16.msra.mxu0 %v840
    %925 = vmatprep.subr.bf16.mxu0 0
    %926 = vmatpush1.bf16.msra.mxu0 %v841
    %927 = vmatprep.subr.bf16.mxu0 0
    %928 = vmatpush1.bf16.msra.mxu0 0
    %929 = vmatprep.subr.bf16.mxu0 0
    %930 = vmatpush1.bf16.msra.mxu0 0
    %931 = vmatprep.subr.bf16.mxu0 0
    %932 = vmatpush1.bf16.msra.mxu0 0
    %933 = vmatprep.subr.bf16.mxu0 0
    %934 = vmatpush1.bf16.msra.mxu0 0
    %935 = vmatprep.subr.bf16.mxu0 0
    %936 = vmatpush1.bf16.msra.mxu0 0
    %937 = vmatprep.subr.bf16.mxu0 0
    %938 = vmatpush1.bf16.msra.mxu0 0
    %939 = vmatprep.subr.bf16.mxu0 0
    %940 = vmatpush1.bf16.msra.mxu0 0
    %941 = vmatprep.subr.bf16.mxu0 0
    %942 = vmatpush1.bf16.msra.mxu0 0
    %943 = vmatprep.subr.bf16.mxu0 0
    %944 = vmatpush1.bf16.msra.mxu0 0
    %945 = vmatprep.subr.bf16.mxu0 0
    %946 = vmatpush1.bf16.msra.mxu0 0
    %947 = vmatprep.subr.bf16.mxu0 0
    %948 = vmatpush1.bf16.msra.mxu0 0
    %949 = vmatprep.subr.bf16.mxu0 0
    %950 = vmatpush1.bf16.msra.mxu0 0
    %951 = vmatprep.mubr.bf16.mxu0 0
    %952 = vmatmul.mubr.bf16.gmra.mrb[0].mxu0 %v848
    %v953 = vpop.f32.mrb[0].mxu0
    %v954 = vadd.f32 %v820, %v953
    %v955 = vpop.f32.mrb[0].mxu0
    %v956 = vpop.f32.mrb[0].mxu0
    %v957 = vadd.f32 %v820, %v956
    %v958 = vpop.f32.mrb[0].mxu0
    %959 = vmatprep.mubr.bf16.mxu0 0
    %960 = vmatmul.mubr.bf16.gmra.mrb[0].mxu0 %v851
    %v961 = vpop.f32.mrb[0].mxu0
    %v962 = vadd.f32 %v820, %v961
    %v963 = vpop.f32.mrb[0].mxu0
    %v964 = vpop.f32.mrb[0].mxu0
    %v965 = vadd.f32 %v820, %v964
    %v966 = vpop.f32.mrb[0].mxu0
    %967 = vmatprep.mubr.bf16.mxu0 0
    %968 = vmatmul.mubr.bf16.gmra.mrb[0].mxu0 %v854
    %v969 = vpop.f32.mrb[0].mxu0
    %v970 = vadd.f32 %v820, %v969
    %v971 = vpop.f32.mrb[0].mxu0
    %v972 = vpop.f32.mrb[0].mxu0
    %v973 = vadd.f32 %v820, %v972
    %v974 = vpop.f32.mrb[0].mxu0
    %975 = vmatprep.mubr.bf16.mxu0 0
    %976 = vmatmul.mubr.bf16.gmra.mrb[0].mxu0 %v857
    %v977 = vpop.f32.mrb[0].mxu0
    %v978 = vadd.f32 %v820, %v977
    %v979 = vpop.f32.mrb[0].mxu0
    %v980 = vpop.f32.mrb[0].mxu0
    %v981 = vadd.f32 %v820, %v980
    %v982 = vpop.f32.mrb[0].mxu0
    %983 = vmatprep.mubr.bf16.mxu0 0
    %984 = vmatmul.mubr.bf16.gmra.mrb[0].mxu0 %v860
    %v985 = vpop.f32.mrb[0].mxu0
    %v986 = vadd.f32 %v820, %v985
    %v987 = vpop.f32.mrb[0].mxu0
    %v988 = vpop.f32.mrb[0].mxu0
    %v989 = vadd.f32 %v820, %v988
    %v990 = vpop.f32.mrb[0].mxu0
    %991 = vmatprep.mubr.bf16.mxu0 0
    %992 = vmatmul.mubr.bf16.gmra.mrb[0].mxu0 %v863
    %v993 = vpop.f32.mrb[0].mxu0
    %v994 = vadd.f32 %v820, %v993
    %v995 = vpop.f32.mrb[0].mxu0
    %v996 = vpop.f32.mrb[0].mxu0
    %v997 = vadd.f32 %v820, %v996
    %v998 = vpop.f32.mrb[0].mxu0
    %999 = vmatprep.mubr.bf16.mxu0 0
    %1000 = vmatmul.mubr.bf16.gmra.mrb[0].mxu0 %v866
    %v1001 = vpop.f32.mrb[0].mxu0
    %v1002 = vadd.f32 %v820, %v1001
    %v1003 = vpop.f32.mrb[0].mxu0
    %v1004 = vpop.f32.mrb[0].mxu0
    %v1005 = vadd.f32 %v820, %v1004
    %v1006 = vpop.f32.mrb[0].mxu0
    %1007 = vmatprep.mubr.bf16.mxu0 0
    %1008 = vmatmul.mubr.bf16.gmra.mrb[0].mxu0 %v869
    %v1009 = vpop.f32.mrb[0].mxu0
    %v1010 = vadd.f32 %v820, %v1009
    %v1011 = vpop.f32.mrb[0].mxu0
    %v1012 = vpop.f32.mrb[0].mxu0
    %v1013 = vadd.f32 %v820, %v1012
    %v1014 = vpop.f32.mrb[0].mxu0
    %1015 = vmatprep.mubr.bf16.mxu0 0
    %1016 = vmatmul.mubr.bf16.gmra.mrb[0].mxu0 %v872
    %v1017 = vpop.f32.mrb[0].mxu0
    %v1018 = vadd.f32 %v820, %v1017
    %v1019 = vpop.f32.mrb[0].mxu0
    %v1020 = vpop.f32.mrb[0].mxu0
    %v1021 = vadd.f32 %v820, %v1020
    %v1022 = vpop.f32.mrb[0].mxu0
    %1023 = vmatprep.mubr.bf16.mxu0 0
    %1024 = vmatmul.mubr.bf16.gmra.mrb[0].mxu0 %v875
    %v1025 = vpop.f32.mrb[0].mxu0
    %v1026 = vadd.f32 %v820, %v1025
    %v1027 = vpop.f32.mrb[0].mxu0
    %v1028 = vpop.f32.mrb[0].mxu0
    %v1029 = vadd.f32 %v820, %v1028
    %v1030 = vpop.f32.mrb[0].mxu0
    %1031 = vmatprep.mubr.bf16.mxu0 0
    %1032 = vmatmul.mubr.bf16.gmra.mrb[0].mxu0 %v878
    %v1033 = vpop.f32.mrb[0].mxu0
    %v1034 = vadd.f32 %v820, %v1033
    %v1035 = vpop.f32.mrb[0].mxu0
    %v1036 = vpop.f32.mrb[0].mxu0
    %v1037 = vadd.f32 %v820, %v1036
    %v1038 = vpop.f32.mrb[0].mxu0
    %1039 = vmatprep.mubr.bf16.mxu0 0
    %1040 = vmatmul.mubr.bf16.gmra.mrb[0].mxu0 %v881
    %v1041 = vpop.f32.mrb[0].mxu0
    %v1042 = vadd.f32 %v820, %v1041
    %v1043 = vpop.f32.mrb[0].mxu0
    %v1044 = vpop.f32.mrb[0].mxu0
    %v1045 = vadd.f32 %v820, %v1044
    %v1046 = vpop.f32.mrb[0].mxu0
    %1047 = vmatprep.mubr.bf16.mxu0 0
    %1048 = vmatmul.mubr.bf16.gmra.mrb[0].mxu0 %v884
    %v1049 = vpop.f32.mrb[0].mxu0
    %v1050 = vadd.f32 %v820, %v1049
    %v1051 = vpop.f32.mrb[0].mxu0
    %v1052 = vpop.f32.mrb[0].mxu0
    %v1053 = vadd.f32 %v820, %v1052
    %v1054 = vpop.f32.mrb[0].mxu0
    %1055 = vmatprep.mubr.bf16.mxu0 0
    %1056 = vmatmul.mubr.bf16.gmra.mrb[0].mxu0 %v887
    %v1057 = vpop.f32.mrb[0].mxu0
    %v1058 = vadd.f32 %v820, %v1057
    %v1059 = vpop.f32.mrb[0].mxu0
    %v1060 = vpop.f32.mrb[0].mxu0
    %v1061 = vadd.f32 %v820, %v1060
    %v1062 = vpop.f32.mrb[0].mxu0
    %1063 = vmatprep.mubr.bf16.mxu0 0
    %1064 = vmatmul.mubr.bf16.gmra.mrb[0].mxu0 %v890
    %v1065 = vpop.f32.mrb[0].mxu0
    %v1066 = vadd.f32 %v820, %v1065
    %v1067 = vpop.f32.mrb[0].mxu0
    %v1068 = vpop.f32.mrb[0].mxu0
    %v1069 = vadd.f32 %v820, %v1068
    %v1070 = vpop.f32.mrb[0].mxu0
    %1071 = vmatprep.mubr.bf16.mxu0 0
    %1072 = vmatmul.mubr.bf16.gmra.mrb[0].mxu0 %v893
    %v1073 = vpop.f32.mrb[0].mxu0
    %v1074 = vadd.f32 %v820, %v1073
    %v1075 = vpop.f32.mrb[0].mxu0
    %v1076 = vpop.f32.mrb[0].mxu0
    %v1077 = vadd.f32 %v820, %v1076
    %v1078 = vpop.f32.mrb[0].mxu0
    %1079 = vmatprep.mubr.bf16.mxu0 0
    %1080 = vmatmul.mubr.bf16.gmra.mrb[0].mxu0 %v896
    %v1081 = vpop.f32.mrb[0].mxu0
    %v1082 = vadd.f32 %v820, %v1081
    %v1083 = vpop.f32.mrb[0].mxu0
    %v1084 = vpop.f32.mrb[0].mxu0
    %v1085 = vadd.f32 %v820, %v1084
    %v1086 = vpop.f32.mrb[0].mxu0
    %1087 = vmatprep.mubr.bf16.mxu0 0
    %1088 = vmatmul.mubr.bf16.gmra.mrb[0].mxu0 %v899
    %v1089 = vpop.f32.mrb[0].mxu0
    %v1090 = vadd.f32 %v820, %v1089
    %v1091 = vpop.f32.mrb[0].mxu0
    %v1092 = vpop.f32.mrb[0].mxu0
    %v1093 = vadd.f32 %v820, %v1092
    %v1094 = vpop.f32.mrb[0].mxu0
    %1095 = vmatprep.mubr.bf16.mxu0 0
    %1096 = vmatmul.mubr.bf16.gmra.mrb[0].mxu0 %v902
    %v1097 = vpop.f32.mrb[0].mxu0
    %v1098 = vadd.f32 %v820, %v1097
    %v1099 = vpop.f32.mrb[0].mxu0
    %v1100 = vpop.f32.mrb[0].mxu0
    %v1101 = vadd.f32 %v820, %v1100
    %v1102 = vpop.f32.mrb[0].mxu0
    %1103 = vmatprep.mubr.bf16.mxu0 0
    %1104 = vmatmul.mubr.bf16.gmra.mrb[0].mxu0 %v905
    %v1105 = vpop.f32.mrb[0].mxu0
    %v1106 = vadd.f32 %v820, %v1105
    %v1107 = vpop.f32.mrb[0].mxu0
    %v1108 = vpop.f32.mrb[0].mxu0
    %v1109 = vadd.f32 %v820, %v1108
    %v1110 = vpop.f32.mrb[0].mxu0
    %1111 = vmatprep.mubr.bf16.mxu0 0
    %1112 = vmatmul.mubr.bf16.gmra.mrb[0].mxu0 %v908
    %v1113 = vpop.f32.mrb[0].mxu0
    %v1114 = vadd.f32 %v820, %v1113
    %v1115 = vpop.f32.mrb[0].mxu0
    %v1116 = vpop.f32.mrb[0].mxu0
    %v1117 = vadd.f32 %v820, %v1116
    %v1118 = vpop.f32.mrb[0].mxu0
    %1119 = vmatprep.mubr.bf16.mxu0 0
    %1120 = vmatmul.mubr.bf16.gmra.mrb[0].mxu0 %v911
    %v1121 = vpop.f32.mrb[0].mxu0
    %v1122 = vadd.f32 %v820, %v1121
    %v1123 = vpop.f32.mrb[0].mxu0
    %v1124 = vpop.f32.mrb[0].mxu0
    %v1125 = vadd.f32 %v820, %v1124
    %v1126 = vpop.f32.mrb[0].mxu0
    %1127 = vmatprep.mubr.bf16.mxu0 0
    %1128 = vmatmul.mubr.bf16.gmra.mrb[0].mxu0 %v914
    %v1129 = vpop.f32.mrb[0].mxu0
    %v1130 = vadd.f32 %v820, %v1129
    %v1131 = vpop.f32.mrb[0].mxu0
    %v1132 = vpop.f32.mrb[0].mxu0
    %v1133 = vadd.f32 %v820, %v1132
    %v1134 = vpop.f32.mrb[0].mxu0
    %1135 = vmatprep.mubr.bf16.mxu0 0
    %1136 = vmatmul.mubr.bf16.gmra.mrb[0].mxu0 %v917
    %v1137 = vpop.f32.mrb[0].mxu0
    %v1138 = vadd.f32 %v820, %v1137
    %v1139 = vpop.f32.mrb[0].mxu0
    %v1140 = vpop.f32.mrb[0].mxu0
    %v1141 = vadd.f32 %v820, %v1140
    %v1142 = vpop.f32.mrb[0].mxu0
    %1143 = vdwg.mxu0
    %v1144 = vpack.c.bf16 %v957, %v954
    %v1145 = vpack.c.bf16 %v965, %v962
    %v1146 = vpack.c.bf16 %v973, %v970
    %v1147 = vpack.c.bf16 %v981, %v978
    %v1148 = vpack.c.bf16 %v989, %v986
    %v1149 = vpack.c.bf16 %v997, %v994
    %v1150 = vpack.c.bf16 %v1005, %v1002
    %v1151 = vpack.c.bf16 %v1013, %v1010
    %v1152 = vpack.c.bf16 %v1021, %v1018
    %v1153 = vpack.c.bf16 %v1029, %v1026
    %v1154 = vpack.c.bf16 %v1037, %v1034
    %v1155 = vpack.c.bf16 %v1045, %v1042
    %v1156 = vpack.c.bf16 %v1053, %v1050
    %v1157 = vpack.c.bf16 %v1061, %v1058
    %v1158 = vpack.c.bf16 %v1069, %v1066
    %v1159 = vpack.c.bf16 %v1077, %v1074
    %v1160 = vpack.c.bf16 %v1085, %v1082
    %v1161 = vpack.c.bf16 %v1093, %v1090
    %v1162 = vpack.c.bf16 %v1101, %v1098
    %v1163 = vpack.c.bf16 %v1109, %v1106
    %v1164 = vpack.c.bf16 %v1117, %v1114
    %v1165 = vpack.c.bf16 %v1125, %v1122
    %v1166 = vpack.c.bf16 %v1133, %v1130
    %v1167 = vpack.c.bf16 %v1141, %v1138
    %v1168 = vtanh.bf16.pop %v1144
    %v1169 = vtanh.bf16.pop %v1145
    %v1170 = vtanh.bf16.pop %v1146
    %v1171 = vtanh.bf16.pop %v1147
    %v1172 = vtanh.bf16.pop %v1148
    %v1173 = vtanh.bf16.pop %v1149
    %v1174 = vtanh.bf16.pop %v1150
    %v1175 = vtanh.bf16.pop %v1151
    %v1176 = vtanh.bf16.pop %v1152
    %v1177 = vtanh.bf16.pop %v1153
    %v1178 = vtanh.bf16.pop %v1154
    %v1179 = vtanh.bf16.pop %v1155
    %v1180 = vtanh.bf16.pop %v1156
    %v1181 = vtanh.bf16.pop %v1157
    %v1182 = vtanh.bf16.pop %v1158
    %v1183 = vtanh.bf16.pop %v1159
    %v1184 = vtanh.bf16.pop %v1160
    %v1185 = vtanh.bf16.pop %v1161
    %v1186 = vtanh.bf16.pop %v1162
    %v1187 = vtanh.bf16.pop %v1163
    %v1188 = vtanh.bf16.pop %v1164
    %v1189 = vtanh.bf16.pop %v1165
    %v1190 = vtanh.bf16.pop %v1166
    %v1191 = vtanh.bf16.pop %v1167
    %v1192 = vld [vmem:[%s7] sm:$0x1]
    %v1193 = vunpack.c.l.bf16 %v1168
    %v1194 = vunpack.c.h.bf16 %v1168
    %v1195 = vunpack.c.l.bf16 %v1169
    %v1196 = vunpack.c.h.bf16 %v1169
    %v1197 = vunpack.c.l.bf16 %v1170
    %v1198 = vunpack.c.h.bf16 %v1170
    %v1199 = vunpack.c.l.bf16 %v1171
    %v1200 = vunpack.c.h.bf16 %v1171
    %v1201 = vunpack.c.l.bf16 %v1172
    %v1202 = vunpack.c.h.bf16 %v1172
    %v1203 = vunpack.c.l.bf16 %v1173
    %v1204 = vunpack.c.h.bf16 %v1173
    %v1205 = vunpack.c.l.bf16 %v1174
    %v1206 = vunpack.c.h.bf16 %v1174
    %v1207 = vunpack.c.l.bf16 %v1175
    %v1208 = vunpack.c.h.bf16 %v1175
    %v1209 = vunpack.c.l.bf16 %v1176
    %v1210 = vunpack.c.h.bf16 %v1176
    %v1211 = vunpack.c.l.bf16 %v1177
    %v1212 = vunpack.c.h.bf16 %v1177
    %v1213 = vunpack.c.l.bf16 %v1178
    %v1214 = vunpack.c.h.bf16 %v1178
    %v1215 = vunpack.c.l.bf16 %v1179
    %v1216 = vunpack.c.h.bf16 %v1179
    %v1217 = vunpack.c.l.bf16 %v1180
    %v1218 = vunpack.c.h.bf16 %v1180
    %v1219 = vunpack.c.l.bf16 %v1181
    %v1220 = vunpack.c.h.bf16 %v1181
    %v1221 = vunpack.c.l.bf16 %v1182
    %v1222 = vunpack.c.h.bf16 %v1182
    %v1223 = vunpack.c.l.bf16 %v1183
    %v1224 = vunpack.c.h.bf16 %v1183
    %v1225 = vunpack.c.l.bf16 %v1184
    %v1226 = vunpack.c.h.bf16 %v1184
    %v1227 = vunpack.c.l.bf16 %v1185
    %v1228 = vunpack.c.h.bf16 %v1185
    %v1229 = vunpack.c.l.bf16 %v1186
    %v1230 = vunpack.c.h.bf16 %v1186
    %v1231 = vunpack.c.l.bf16 %v1187
    %v1232 = vunpack.c.h.bf16 %v1187
    %v1233 = vunpack.c.l.bf16 %v1188
    %v1234 = vunpack.c.h.bf16 %v1188
    %v1235 = vunpack.c.l.bf16 %v1189
    %v1236 = vunpack.c.h.bf16 %v1189
    %v1237 = vunpack.c.l.bf16 %v1190
    %v1238 = vunpack.c.h.bf16 %v1190
    %v1239 = vunpack.c.l.bf16 %v1191
    %v1240 = vunpack.c.h.bf16 %v1191
    %v1242 = vlaneseq
    %v1243 = vshrl.u32 %v1242, 7
    %v1244 = vsub.s32 0, %v1243
    %v1245 = vrot.slane %v1192, %v1244
    %v1247 = vmul.f32 %v1193, %v1245
    %v1248 = vmul.f32 %v1194, %v1245
    %v1249 = vmul.f32 %v1195, %v1245
    %v1250 = vmul.f32 %v1196, %v1245
    %v1251 = vmul.f32 %v1197, %v1245
    %v1252 = vmul.f32 %v1198, %v1245
    %v1253 = vmul.f32 %v1199, %v1245
    %v1254 = vmul.f32 %v1200, %v1245
    %v1255 = vmul.f32 %v1201, %v1245
    %v1256 = vmul.f32 %v1202, %v1245
    %v1257 = vmul.f32 %v1203, %v1245
    %v1258 = vmul.f32 %v1204, %v1245
    %v1259 = vmul.f32 %v1205, %v1245
    %v1260 = vmul.f32 %v1206, %v1245
    %v1261 = vmul.f32 %v1207, %v1245
    %v1262 = vmul.f32 %v1208, %v1245
    %v1263 = vmul.f32 %v1209, %v1245
    %v1264 = vmul.f32 %v1210, %v1245
    %v1265 = vmul.f32 %v1211, %v1245
    %v1266 = vmul.f32 %v1212, %v1245
    %v1267 = vmul.f32 %v1213, %v1245
    %v1268 = vmul.f32 %v1214, %v1245
    %v1269 = vmul.f32 %v1215, %v1245
    %v1270 = vmul.f32 %v1216, %v1245
    %v1271 = vmul.f32 %v1217, %v1245
    %v1272 = vmul.f32 %v1218, %v1245
    %v1273 = vmul.f32 %v1219, %v1245
    %v1274 = vmul.f32 %v1220, %v1245
    %v1275 = vmul.f32 %v1221, %v1245
    %v1276 = vmul.f32 %v1222, %v1245
    %v1277 = vmul.f32 %v1223, %v1245
    %v1278 = vmul.f32 %v1224, %v1245
    %v1279 = vmul.f32 %v1225, %v1245
    %v1280 = vmul.f32 %v1226, %v1245
    %v1281 = vmul.f32 %v1227, %v1245
    %v1282 = vmul.f32 %v1228, %v1245
    %v1283 = vmul.f32 %v1229, %v1245
    %v1284 = vmul.f32 %v1230, %v1245
    %v1285 = vmul.f32 %v1231, %v1245
    %v1286 = vmul.f32 %v1232, %v1245
    %v1287 = vmul.f32 %v1233, %v1245
    %v1288 = vmul.f32 %v1234, %v1245
    %v1289 = vmul.f32 %v1235, %v1245
    %v1290 = vmul.f32 %v1236, %v1245
    %v1291 = vmul.f32 %v1237, %v1245
    %v1292 = vmul.f32 %v1238, %v1245
    %v1293 = vmul.f32 %v1239, %v1245
    %v1294 = vmul.f32 %v1240, %v1245
    %v1295 = vsel %vm108, %v1247, 0.0
    %1296 = vadd.xlane.f32.xlu0 %v1295
    %v1297 = vpop.xlane.xlu0 %1296
    %v1298 = vsel %vm108, %v1248, 0.0
    %1299 = vadd.xlane.f32.xlu0 %v1298
    %v1300 = vpop.xlane.xlu0 %1299
    %v1301 = vsel %vm108, %v1249, 0.0
    %1302 = vadd.xlane.f32.xlu0 %v1301
    %v1303 = vpop.xlane.xlu0 %1302
    %v1304 = vsel %vm108, %v1250, 0.0
    %1305 = vadd.xlane.f32.xlu0 %v1304
    %v1306 = vpop.xlane.xlu0 %1305
    %v1307 = vsel %vm108, %v1251, 0.0
    %1308 = vadd.xlane.f32.xlu0 %v1307
    %v1309 = vpop.xlane.xlu0 %1308
    %v1310 = vsel %vm108, %v1252, 0.0
    %1311 = vadd.xlane.f32.xlu0 %v1310
    %v1312 = vpop.xlane.xlu0 %1311
    %v1313 = vsel %vm108, %v1253, 0.0
    %1314 = vadd.xlane.f32.xlu0 %v1313
    %v1315 = vpop.xlane.xlu0 %1314
    %v1316 = vsel %vm108, %v1254, 0.0
    %1317 = vadd.xlane.f32.xlu0 %v1316
    %v1318 = vpop.xlane.xlu0 %1317
    %v1319 = vsel %vm108, %v1255, 0.0
    %1320 = vadd.xlane.f32.xlu0 %v1319
    %v1321 = vpop.xlane.xlu0 %1320
    %v1322 = vsel %vm108, %v1256, 0.0
    %1323 = vadd.xlane.f32.xlu0 %v1322
    %v1324 = vpop.xlane.xlu0 %1323
    %v1325 = vsel %vm108, %v1257, 0.0
    %1326 = vadd.xlane.f32.xlu0 %v1325
    %v1327 = vpop.xlane.xlu0 %1326
    %v1328 = vsel %vm108, %v1258, 0.0
    %1329 = vadd.xlane.f32.xlu0 %v1328
    %v1330 = vpop.xlane.xlu0 %1329
    %v1331 = vsel %vm108, %v1259, 0.0
    %1332 = vadd.xlane.f32.xlu0 %v1331
    %v1333 = vpop.xlane.xlu0 %1332
    %v1334 = vsel %vm108, %v1260, 0.0
    %1335 = vadd.xlane.f32.xlu0 %v1334
    %v1336 = vpop.xlane.xlu0 %1335
    %v1337 = vsel %vm108, %v1261, 0.0
    %1338 = vadd.xlane.f32.xlu0 %v1337
    %v1339 = vpop.xlane.xlu0 %1338
    %v1340 = vsel %vm108, %v1262, 0.0
    %1341 = vadd.xlane.f32.xlu0 %v1340
    %v1342 = vpop.xlane.xlu0 %1341
    %v1343 = vsel %vm108, %v1263, 0.0
    %1344 = vadd.xlane.f32.xlu0 %v1343
    %v1345 = vpop.xlane.xlu0 %1344
    %v1346 = vsel %vm108, %v1264, 0.0
    %1347 = vadd.xlane.f32.xlu0 %v1346
    %v1348 = vpop.xlane.xlu0 %1347
    %v1349 = vsel %vm108, %v1265, 0.0
    %1350 = vadd.xlane.f32.xlu0 %v1349
    %v1351 = vpop.xlane.xlu0 %1350
    %v1352 = vsel %vm108, %v1266, 0.0
    %1353 = vadd.xlane.f32.xlu0 %v1352
    %v1354 = vpop.xlane.xlu0 %1353
    %v1355 = vsel %vm108, %v1267, 0.0
    %1356 = vadd.xlane.f32.xlu0 %v1355
    %v1357 = vpop.xlane.xlu0 %1356
    %v1358 = vsel %vm108, %v1268, 0.0
    %1359 = vadd.xlane.f32.xlu0 %v1358
    %v1360 = vpop.xlane.xlu0 %1359
    %v1361 = vsel %vm108, %v1269, 0.0
    %1362 = vadd.xlane.f32.xlu0 %v1361
    %v1363 = vpop.xlane.xlu0 %1362
    %v1364 = vsel %vm108, %v1270, 0.0
    %1365 = vadd.xlane.f32.xlu0 %v1364
    %v1366 = vpop.xlane.xlu0 %1365
    %v1367 = vsel %vm108, %v1271, 0.0
    %1368 = vadd.xlane.f32.xlu0 %v1367
    %v1369 = vpop.xlane.xlu0 %1368
    %v1370 = vsel %vm108, %v1272, 0.0
    %1371 = vadd.xlane.f32.xlu0 %v1370
    %v1372 = vpop.xlane.xlu0 %1371
    %v1373 = vsel %vm108, %v1273, 0.0
    %1374 = vadd.xlane.f32.xlu0 %v1373
    %v1375 = vpop.xlane.xlu0 %1374
    %v1376 = vsel %vm108, %v1274, 0.0
    %1377 = vadd.xlane.f32.xlu0 %v1376
    %v1378 = vpop.xlane.xlu0 %1377
    %v1379 = vsel %vm108, %v1275, 0.0
    %1380 = vadd.xlane.f32.xlu0 %v1379
    %v1381 = vpop.xlane.xlu0 %1380
    %v1382 = vsel %vm108, %v1276, 0.0
    %1383 = vadd.xlane.f32.xlu0 %v1382
    %v1384 = vpop.xlane.xlu0 %1383
    %v1385 = vsel %vm108, %v1277, 0.0
    %1386 = vadd.xlane.f32.xlu0 %v1385
    %v1387 = vpop.xlane.xlu0 %1386
    %v1388 = vsel %vm108, %v1278, 0.0
    %1389 = vadd.xlane.f32.xlu0 %v1388
    %v1390 = vpop.xlane.xlu0 %1389
    %v1391 = vsel %vm108, %v1279, 0.0
    %1392 = vadd.xlane.f32.xlu0 %v1391
    %v1393 = vpop.xlane.xlu0 %1392
    %v1394 = vsel %vm108, %v1280, 0.0
    %1395 = vadd.xlane.f32.xlu0 %v1394
    %v1396 = vpop.xlane.xlu0 %1395
    %v1397 = vsel %vm108, %v1281, 0.0
    %1398 = vadd.xlane.f32.xlu0 %v1397
    %v1399 = vpop.xlane.xlu0 %1398
    %v1400 = vsel %vm108, %v1282, 0.0
    %1401 = vadd.xlane.f32.xlu0 %v1400
    %v1402 = vpop.xlane.xlu0 %1401
    %v1403 = vsel %vm108, %v1283, 0.0
    %1404 = vadd.xlane.f32.xlu0 %v1403
    %v1405 = vpop.xlane.xlu0 %1404
    %v1406 = vsel %vm108, %v1284, 0.0
    %1407 = vadd.xlane.f32.xlu0 %v1406
    %v1408 = vpop.xlane.xlu0 %1407
    %v1409 = vsel %vm108, %v1285, 0.0
    %1410 = vadd.xlane.f32.xlu0 %v1409
    %v1411 = vpop.xlane.xlu0 %1410
    %v1412 = vsel %vm108, %v1286, 0.0
    %1413 = vadd.xlane.f32.xlu0 %v1412
    %v1414 = vpop.xlane.xlu0 %1413
    %v1415 = vsel %vm108, %v1287, 0.0
    %1416 = vadd.xlane.f32.xlu0 %v1415
    %v1417 = vpop.xlane.xlu0 %1416
    %v1418 = vsel %vm108, %v1288, 0.0
    %1419 = vadd.xlane.f32.xlu0 %v1418
    %v1420 = vpop.xlane.xlu0 %1419
    %v1421 = vsel %vm108, %v1289, 0.0
    %1422 = vadd.xlane.f32.xlu0 %v1421
    %v1423 = vpop.xlane.xlu0 %1422
    %v1424 = vsel %vm108, %v1290, 0.0
    %1425 = vadd.xlane.f32.xlu0 %v1424
    %v1426 = vpop.xlane.xlu0 %1425
    %v1427 = vsel %vm108, %v1291, 0.0
    %1428 = vadd.xlane.f32.xlu0 %v1427
    %v1429 = vpop.xlane.xlu0 %1428
    %v1430 = vsel %vm108, %v1292, 0.0
    %1431 = vadd.xlane.f32.xlu0 %v1430
    %v1432 = vpop.xlane.xlu0 %1431
    %v1433 = vsel %vm108, %v1293, 0.0
    %1434 = vadd.xlane.f32.xlu0 %v1433
    %v1435 = vpop.xlane.xlu0 %1434
    %v1436 = vsel %vm108, %v1294, 0.0
    %1437 = vadd.xlane.f32.xlu0 %v1436
    %v1438 = vpop.xlane.xlu0 %1437
    %s1439 = sld [smem:[#allocation2]]
    %v1440 = vstv %s1439
    %v1441 = vadd.f32 %v1297, %v1440
    %v1442 = vadd.f32 %v1300, %v1440
    %v1443 = vadd.f32 %v1303, %v1440
    %v1444 = vadd.f32 %v1306, %v1440
    %v1445 = vadd.f32 %v1309, %v1440
    %v1446 = vadd.f32 %v1312, %v1440
    %v1447 = vadd.f32 %v1315, %v1440
    %v1448 = vadd.f32 %v1318, %v1440
    %v1449 = vadd.f32 %v1321, %v1440
    %v1450 = vadd.f32 %v1324, %v1440
    %v1451 = vadd.f32 %v1327, %v1440
    %v1452 = vadd.f32 %v1330, %v1440
    %v1453 = vadd.f32 %v1333, %v1440
    %v1454 = vadd.f32 %v1336, %v1440
    %v1455 = vadd.f32 %v1339, %v1440
    %v1456 = vadd.f32 %v1342, %v1440
    %v1457 = vadd.f32 %v1345, %v1440
    %v1458 = vadd.f32 %v1348, %v1440
    %v1459 = vadd.f32 %v1351, %v1440
    %v1460 = vadd.f32 %v1354, %v1440
    %v1461 = vadd.f32 %v1357, %v1440
    %v1462 = vadd.f32 %v1360, %v1440
    %v1463 = vadd.f32 %v1363, %v1440
    %v1464 = vadd.f32 %v1366, %v1440
    %v1465 = vadd.f32 %v1369, %v1440
    %v1466 = vadd.f32 %v1372, %v1440
    %v1467 = vadd.f32 %v1375, %v1440
    %v1468 = vadd.f32 %v1378, %v1440
    %v1469 = vadd.f32 %v1381, %v1440
    %v1470 = vadd.f32 %v1384, %v1440
    %v1471 = vadd.f32 %v1387, %v1440
    %v1472 = vadd.f32 %v1390, %v1440
    %v1473 = vadd.f32 %v1393, %v1440
    %v1474 = vadd.f32 %v1396, %v1440
    %v1475 = vadd.f32 %v1399, %v1440
    %v1476 = vadd.f32 %v1402, %v1440
    %v1477 = vadd.f32 %v1405, %v1440
    %v1478 = vadd.f32 %v1408, %v1440
    %v1479 = vadd.f32 %v1411, %v1440
    %v1480 = vadd.f32 %v1414, %v1440
    %v1481 = vadd.f32 %v1417, %v1440
    %v1482 = vadd.f32 %v1420, %v1440
    %v1483 = vadd.f32 %v1423, %v1440
    %v1484 = vadd.f32 %v1426, %v1440
    %v1485 = vadd.f32 %v1429, %v1440
    %v1486 = vadd.f32 %v1432, %v1440
    %v1487 = vadd.f32 %v1435, %v1440
    %v1488 = vadd.f32 %v1438, %v1440
    %v1489 = vxor.u32 %v1441, 2147483648
    %v1490 = vxor.u32 %v1442, 2147483648
    %v1491 = vxor.u32 %v1443, 2147483648
    %v1492 = vxor.u32 %v1444, 2147483648
    %v1493 = vxor.u32 %v1445, 2147483648
    %v1494 = vxor.u32 %v1446, 2147483648
    %v1495 = vxor.u32 %v1447, 2147483648
    %v1496 = vxor.u32 %v1448, 2147483648
    %v1497 = vxor.u32 %v1449, 2147483648
    %v1498 = vxor.u32 %v1450, 2147483648
    %v1499 = vxor.u32 %v1451, 2147483648
    %v1500 = vxor.u32 %v1452, 2147483648
    %v1501 = vxor.u32 %v1453, 2147483648
    %v1502 = vxor.u32 %v1454, 2147483648
    %v1503 = vxor.u32 %v1455, 2147483648
    %v1504 = vxor.u32 %v1456, 2147483648
    %v1505 = vxor.u32 %v1457, 2147483648
    %v1506 = vxor.u32 %v1458, 2147483648
    %v1507 = vxor.u32 %v1459, 2147483648
    %v1508 = vxor.u32 %v1460, 2147483648
    %v1509 = vxor.u32 %v1461, 2147483648
    %v1510 = vxor.u32 %v1462, 2147483648
    %v1511 = vxor.u32 %v1463, 2147483648
    %v1512 = vxor.u32 %v1464, 2147483648
    %v1513 = vxor.u32 %v1465, 2147483648
    %v1514 = vxor.u32 %v1466, 2147483648
    %v1515 = vxor.u32 %v1467, 2147483648
    %v1516 = vxor.u32 %v1468, 2147483648
    %v1517 = vxor.u32 %v1469, 2147483648
    %v1518 = vxor.u32 %v1470, 2147483648
    %v1519 = vxor.u32 %v1471, 2147483648
    %v1520 = vxor.u32 %v1472, 2147483648
    %v1521 = vxor.u32 %v1473, 2147483648
    %v1522 = vxor.u32 %v1474, 2147483648
    %v1523 = vxor.u32 %v1475, 2147483648
    %v1524 = vxor.u32 %v1476, 2147483648
    %v1525 = vxor.u32 %v1477, 2147483648
    %v1526 = vxor.u32 %v1478, 2147483648
    %v1527 = vxor.u32 %v1479, 2147483648
    %v1528 = vxor.u32 %v1480, 2147483648
    %v1529 = vxor.u32 %v1481, 2147483648
    %v1530 = vxor.u32 %v1482, 2147483648
    %v1531 = vxor.u32 %v1483, 2147483648
    %v1532 = vxor.u32 %v1484, 2147483648
    %v1533 = vxor.u32 %v1485, 2147483648
    %v1534 = vxor.u32 %v1486, 2147483648
    %v1535 = vxor.u32 %v1487, 2147483648
    %v1536 = vxor.u32 %v1488, 2147483648
    %v1537 = vmul.f32 %v1489, 1.442695
    %v1538 = vpow.pop %v1537
    %v1539 = vmul.f32 %v1490, 1.442695
    %v1540 = vpow.pop %v1539
    %v1541 = vmul.f32 %v1491, 1.442695
    %v1542 = vpow.pop %v1541
    %v1543 = vmul.f32 %v1492, 1.442695
    %v1544 = vpow.pop %v1543
    %v1545 = vmul.f32 %v1493, 1.442695
    %v1546 = vpow.pop %v1545
    %v1547 = vmul.f32 %v1494, 1.442695
    %v1548 = vpow.pop %v1547
    %v1549 = vmul.f32 %v1495, 1.442695
    %v1550 = vpow.pop %v1549
    %v1551 = vmul.f32 %v1496, 1.442695
    %v1552 = vpow.pop %v1551
    %v1553 = vmul.f32 %v1497, 1.442695
    %v1554 = vpow.pop %v1553
    %v1555 = vmul.f32 %v1498, 1.442695
    %v1556 = vpow.pop %v1555
    %v1557 = vmul.f32 %v1499, 1.442695
    %v1558 = vpow.pop %v1557
    %v1559 = vmul.f32 %v1500, 1.442695
    %v1560 = vpow.pop %v1559
    %v1561 = vmul.f32 %v1501, 1.442695
    %v1562 = vpow.pop %v1561
    %v1563 = vmul.f32 %v1502, 1.442695
    %v1564 = vpow.pop %v1563
    %v1565 = vmul.f32 %v1503, 1.442695
    %v1566 = vpow.pop %v1565
    %v1567 = vmul.f32 %v1504, 1.442695
    %v1568 = vpow.pop %v1567
    %v1569 = vmul.f32 %v1505, 1.442695
    %v1570 = vpow.pop %v1569
    %v1571 = vmul.f32 %v1506, 1.442695
    %v1572 = vpow.pop %v1571
    %v1573 = vmul.f32 %v1507, 1.442695
    %v1574 = vpow.pop %v1573
    %v1575 = vmul.f32 %v1508, 1.442695
    %v1576 = vpow.pop %v1575
    %v1577 = vmul.f32 %v1509, 1.442695
    %v1578 = vpow.pop %v1577
    %v1579 = vmul.f32 %v1510, 1.442695
    %v1580 = vpow.pop %v1579
    %v1581 = vmul.f32 %v1511, 1.442695
    %v1582 = vpow.pop %v1581
    %v1583 = vmul.f32 %v1512, 1.442695
    %v1584 = vpow.pop %v1583
    %v1585 = vmul.f32 %v1513, 1.442695
    %v1586 = vpow.pop %v1585
    %v1587 = vmul.f32 %v1514, 1.442695
    %v1588 = vpow.pop %v1587
    %v1589 = vmul.f32 %v1515, 1.442695
    %v1590 = vpow.pop %v1589
    %v1591 = vmul.f32 %v1516, 1.442695
    %v1592 = vpow.pop %v1591
    %v1593 = vmul.f32 %v1517, 1.442695
    %v1594 = vpow.pop %v1593
    %v1595 = vmul.f32 %v1518, 1.442695
    %v1596 = vpow.pop %v1595
    %v1597 = vmul.f32 %v1519, 1.442695
    %v1598 = vpow.pop %v1597
    %v1599 = vmul.f32 %v1520, 1.442695
    %v1600 = vpow.pop %v1599
    %v1601 = vmul.f32 %v1521, 1.442695
    %v1602 = vpow.pop %v1601
    %v1603 = vmul.f32 %v1522, 1.442695
    %v1604 = vpow.pop %v1603
    %v1605 = vmul.f32 %v1523, 1.442695
    %v1606 = vpow.pop %v1605
    %v1607 = vmul.f32 %v1524, 1.442695
    %v1608 = vpow.pop %v1607
    %v1609 = vmul.f32 %v1525, 1.442695
    %v1610 = vpow.pop %v1609
    %v1611 = vmul.f32 %v1526, 1.442695
    %v1612 = vpow.pop %v1611
    %v1613 = vmul.f32 %v1527, 1.442695
    %v1614 = vpow.pop %v1613
    %v1615 = vmul.f32 %v1528, 1.442695
    %v1616 = vpow.pop %v1615
    %v1617 = vmul.f32 %v1529, 1.442695
    %v1618 = vpow.pop %v1617
    %v1619 = vmul.f32 %v1530, 1.442695
    %v1620 = vpow.pop %v1619
    %v1621 = vmul.f32 %v1531, 1.442695
    %v1622 = vpow.pop %v1621
    %v1623 = vmul.f32 %v1532, 1.442695
    %v1624 = vpow.pop %v1623
    %v1625 = vmul.f32 %v1533, 1.442695
    %v1626 = vpow.pop %v1625
    %v1627 = vmul.f32 %v1534, 1.442695
    %v1628 = vpow.pop %v1627
    %v1629 = vmul.f32 %v1535, 1.442695
    %v1630 = vpow.pop %v1629
    %v1631 = vmul.f32 %v1536, 1.442695
    %v1632 = vpow.pop %v1631
    %v1633 = vadd.f32 %v1538, 1.0
    %v1634 = vadd.f32 %v1540, 1.0
    %v1635 = vadd.f32 %v1542, 1.0
    %v1636 = vadd.f32 %v1544, 1.0
    %v1637 = vadd.f32 %v1546, 1.0
    %v1638 = vadd.f32 %v1548, 1.0
    %v1639 = vadd.f32 %v1550, 1.0
    %v1640 = vadd.f32 %v1552, 1.0
    %v1641 = vadd.f32 %v1554, 1.0
    %v1642 = vadd.f32 %v1556, 1.0
    %v1643 = vadd.f32 %v1558, 1.0
    %v1644 = vadd.f32 %v1560, 1.0
    %v1645 = vadd.f32 %v1562, 1.0
    %v1646 = vadd.f32 %v1564, 1.0
    %v1647 = vadd.f32 %v1566, 1.0
    %v1648 = vadd.f32 %v1568, 1.0
    %v1649 = vadd.f32 %v1570, 1.0
    %v1650 = vadd.f32 %v1572, 1.0
    %v1651 = vadd.f32 %v1574, 1.0
    %v1652 = vadd.f32 %v1576, 1.0
    %v1653 = vadd.f32 %v1578, 1.0
    %v1654 = vadd.f32 %v1580, 1.0
    %v1655 = vadd.f32 %v1582, 1.0
    %v1656 = vadd.f32 %v1584, 1.0
    %v1657 = vadd.f32 %v1586, 1.0
    %v1658 = vadd.f32 %v1588, 1.0
    %v1659 = vadd.f32 %v1590, 1.0
    %v1660 = vadd.f32 %v1592, 1.0
    %v1661 = vadd.f32 %v1594, 1.0
    %v1662 = vadd.f32 %v1596, 1.0
    %v1663 = vadd.f32 %v1598, 1.0
    %v1664 = vadd.f32 %v1600, 1.0
    %v1665 = vadd.f32 %v1602, 1.0
    %v1666 = vadd.f32 %v1604, 1.0
    %v1667 = vadd.f32 %v1606, 1.0
    %v1668 = vadd.f32 %v1608, 1.0
    %v1669 = vadd.f32 %v1610, 1.0
    %v1670 = vadd.f32 %v1612, 1.0
    %v1671 = vadd.f32 %v1614, 1.0
    %v1672 = vadd.f32 %v1616, 1.0
    %v1673 = vadd.f32 %v1618, 1.0
    %v1674 = vadd.f32 %v1620, 1.0
    %v1675 = vadd.f32 %v1622, 1.0
    %v1676 = vadd.f32 %v1624, 1.0
    %v1677 = vadd.f32 %v1626, 1.0
    %v1678 = vadd.f32 %v1628, 1.0
    %v1679 = vadd.f32 %v1630, 1.0
    %v1680 = vadd.f32 %v1632, 1.0
    %v1681 = vrcp.pop %v1633
    %v1682 = vmul.f32 1.0, %v1681
    %v1683 = vrcp.pop %v1634
    %v1684 = vmul.f32 1.0, %v1683
    %v1685 = vrcp.pop %v1635
    %v1686 = vmul.f32 1.0, %v1685
    %v1687 = vrcp.pop %v1636
    %v1688 = vmul.f32 1.0, %v1687
    %v1689 = vrcp.pop %v1637
    %v1690 = vmul.f32 1.0, %v1689
    %v1691 = vrcp.pop %v1638
    %v1692 = vmul.f32 1.0, %v1691
    %v1693 = vrcp.pop %v1639
    %v1694 = vmul.f32 1.0, %v1693
    %v1695 = vrcp.pop %v1640
    %v1696 = vmul.f32 1.0, %v1695
    %v1697 = vrcp.pop %v1641
    %v1698 = vmul.f32 1.0, %v1697
    %v1699 = vrcp.pop %v1642
    %v1700 = vmul.f32 1.0, %v1699
    %v1701 = vrcp.pop %v1643
    %v1702 = vmul.f32 1.0, %v1701
    %v1703 = vrcp.pop %v1644
    %v1704 = vmul.f32 1.0, %v1703
    %v1705 = vrcp.pop %v1645
    %v1706 = vmul.f32 1.0, %v1705
    %v1707 = vrcp.pop %v1646
    %v1708 = vmul.f32 1.0, %v1707
    %v1709 = vrcp.pop %v1647
    %v1710 = vmul.f32 1.0, %v1709
    %v1711 = vrcp.pop %v1648
    %v1712 = vmul.f32 1.0, %v1711
    %v1713 = vrcp.pop %v1649
    %v1714 = vmul.f32 1.0, %v1713
    %v1715 = vrcp.pop %v1650
    %v1716 = vmul.f32 1.0, %v1715
    %v1717 = vrcp.pop %v1651
    %v1718 = vmul.f32 1.0, %v1717
    %v1719 = vrcp.pop %v1652
    %v1720 = vmul.f32 1.0, %v1719
    %v1721 = vrcp.pop %v1653
    %v1722 = vmul.f32 1.0, %v1721
    %v1723 = vrcp.pop %v1654
    %v1724 = vmul.f32 1.0, %v1723
    %v1725 = vrcp.pop %v1655
    %v1726 = vmul.f32 1.0, %v1725
    %v1727 = vrcp.pop %v1656
    %v1728 = vmul.f32 1.0, %v1727
    %v1729 = vrcp.pop %v1657
    %v1730 = vmul.f32 1.0, %v1729
    %v1731 = vrcp.pop %v1658
    %v1732 = vmul.f32 1.0, %v1731
    %v1733 = vrcp.pop %v1659
    %v1734 = vmul.f32 1.0, %v1733
    %v1735 = vrcp.pop %v1660
    %v1736 = vmul.f32 1.0, %v1735
    %v1737 = vrcp.pop %v1661
    %v1738 = vmul.f32 1.0, %v1737
    %v1739 = vrcp.pop %v1662
    %v1740 = vmul.f32 1.0, %v1739
    %v1741 = vrcp.pop %v1663
    %v1742 = vmul.f32 1.0, %v1741
    %v1743 = vrcp.pop %v1664
    %v1744 = vmul.f32 1.0, %v1743
    %v1745 = vrcp.pop %v1665
    %v1746 = vmul.f32 1.0, %v1745
    %v1747 = vrcp.pop %v1666
    %v1748 = vmul.f32 1.0, %v1747
    %v1749 = vrcp.pop %v1667
    %v1750 = vmul.f32 1.0, %v1749
    %v1751 = vrcp.pop %v1668
    %v1752 = vmul.f32 1.0, %v1751
    %v1753 = vrcp.pop %v1669
    %v1754 = vmul.f32 1.0, %v1753
    %v1755 = vrcp.pop %v1670
    %v1756 = vmul.f32 1.0, %v1755
    %v1757 = vrcp.pop %v1671
    %v1758 = vmul.f32 1.0, %v1757
    %v1759 = vrcp.pop %v1672
    %v1760 = vmul.f32 1.0, %v1759
    %v1761 = vrcp.pop %v1673
    %v1762 = vmul.f32 1.0, %v1761
    %v1763 = vrcp.pop %v1674
    %v1764 = vmul.f32 1.0, %v1763
    %v1765 = vrcp.pop %v1675
    %v1766 = vmul.f32 1.0, %v1765
    %v1767 = vrcp.pop %v1676
    %v1768 = vmul.f32 1.0, %v1767
    %v1769 = vrcp.pop %v1677
    %v1770 = vmul.f32 1.0, %v1769
    %v1771 = vrcp.pop %v1678
    %v1772 = vmul.f32 1.0, %v1771
    %v1773 = vrcp.pop %v1679
    %v1774 = vmul.f32 1.0, %v1773
    %v1775 = vrcp.pop %v1680
    %v1776 = vmul.f32 1.0, %v1775
    %v1825 = vlaneseq
    %v1826 = vand.u32 %v1825, 127
    %v1827 = vlaneseq
    %v1828 = vshrl.u32 %v1827, 7
    %v1829 = vsub.s32 %v1826, %v1828
    %v1830 = vrot.slane %v1682, %v1829
    %v1831 = vadd.s32 %v1826, 4294967288
    %v1832 = vlaneseq
    %v1833 = vshrl.u32 %v1832, 7
    %v1834 = vsub.s32 %v1831, %v1833
    %v1835 = vrot.slane %v1684, %v1834
    %vm1836 = vcmask 130112
    %v1837 = vsel %vm1836, %v1835, %v1830
    %v1838 = vadd.s32 %v1826, 4294967280
    %v1839 = vlaneseq
    %v1840 = vshrl.u32 %v1839, 7
    %v1841 = vsub.s32 %v1838, %v1840
    %v1842 = vrot.slane %v1686, %v1841
    %vm1843 = vcmask 195712
    %v1844 = vsel %vm1843, %v1842, %v1837
    %v1845 = vadd.s32 %v1826, 4294967272
    %v1846 = vlaneseq
    %v1847 = vshrl.u32 %v1846, 7
    %v1848 = vsub.s32 %v1845, %v1847
    %v1849 = vrot.slane %v1688, %v1848
    %vm1850 = vcmask 261312
    %v1851 = vsel %vm1850, %v1849, %v1844
    %v1852 = vadd.s32 %v1826, 4294967264
    %v1853 = vlaneseq
    %v1854 = vshrl.u32 %v1853, 7
    %v1855 = vsub.s32 %v1852, %v1854
    %v1856 = vrot.slane %v1690, %v1855
    %vm1857 = vcmask 326912
    %v1858 = vsel %vm1857, %v1856, %v1851
    %v1859 = vadd.s32 %v1826, 4294967256
    %v1860 = vlaneseq
    %v1861 = vshrl.u32 %v1860, 7
    %v1862 = vsub.s32 %v1859, %v1861
    %v1863 = vrot.slane %v1692, %v1862
    %vm1864 = vcmask 392512
    %v1865 = vsel %vm1864, %v1863, %v1858
    %v1866 = vadd.s32 %v1826, 4294967248
    %v1867 = vlaneseq
    %v1868 = vshrl.u32 %v1867, 7
    %v1869 = vsub.s32 %v1866, %v1868
    %v1870 = vrot.slane %v1694, %v1869
    %vm1871 = vcmask 458112
    %v1872 = vsel %vm1871, %v1870, %v1865
    %v1873 = vadd.s32 %v1826, 4294967240
    %v1874 = vlaneseq
    %v1875 = vshrl.u32 %v1874, 7
    %v1876 = vsub.s32 %v1873, %v1875
    %v1877 = vrot.slane %v1696, %v1876
    %vm1878 = vcmask 523712
    %v1879 = vsel %vm1878, %v1877, %v1872
    %v1880 = vadd.s32 %v1826, 4294967232
    %v1881 = vlaneseq
    %v1882 = vshrl.u32 %v1881, 7
    %v1883 = vsub.s32 %v1880, %v1882
    %v1884 = vrot.slane %v1698, %v1883
    %vm1885 = vcmask 589312
    %v1886 = vsel %vm1885, %v1884, %v1879
    %v1887 = vadd.s32 %v1826, 4294967224
    %v1888 = vlaneseq
    %v1889 = vshrl.u32 %v1888, 7
    %v1890 = vsub.s32 %v1887, %v1889
    %v1891 = vrot.slane %v1700, %v1890
    %vm1892 = vcmask 654912
    %v1893 = vsel %vm1892, %v1891, %v1886
    %v1894 = vadd.s32 %v1826, 4294967216
    %v1895 = vlaneseq
    %v1896 = vshrl.u32 %v1895, 7
    %v1897 = vsub.s32 %v1894, %v1896
    %v1898 = vrot.slane %v1702, %v1897
    %vm1899 = vcmask 720512
    %v1900 = vsel %vm1899, %v1898, %v1893
    %v1901 = vadd.s32 %v1826, 4294967208
    %v1902 = vlaneseq
    %v1903 = vshrl.u32 %v1902, 7
    %v1904 = vsub.s32 %v1901, %v1903
    %v1905 = vrot.slane %v1704, %v1904
    %vm1906 = vcmask 786112
    %v1907 = vsel %vm1906, %v1905, %v1900
    %v1908 = vadd.s32 %v1826, 4294967200
    %v1909 = vlaneseq
    %v1910 = vshrl.u32 %v1909, 7
    %v1911 = vsub.s32 %v1908, %v1910
    %v1912 = vrot.slane %v1706, %v1911
    %vm1913 = vcmask 851712
    %v1914 = vsel %vm1913, %v1912, %v1907
    %v1915 = vadd.s32 %v1826, 4294967192
    %v1916 = vlaneseq
    %v1917 = vshrl.u32 %v1916, 7
    %v1918 = vsub.s32 %v1915, %v1917
    %v1919 = vrot.slane %v1708, %v1918
    %vm1920 = vcmask 917312
    %v1921 = vsel %vm1920, %v1919, %v1914
    %v1922 = vadd.s32 %v1826, 4294967184
    %v1923 = vlaneseq
    %v1924 = vshrl.u32 %v1923, 7
    %v1925 = vsub.s32 %v1922, %v1924
    %v1926 = vrot.slane %v1710, %v1925
    %vm1927 = vcmask 982912
    %v1928 = vsel %vm1927, %v1926, %v1921
    %v1929 = vadd.s32 %v1826, 4294967176
    %v1930 = vlaneseq
    %v1931 = vshrl.u32 %v1930, 7
    %v1932 = vsub.s32 %v1929, %v1931
    %v1933 = vrot.slane %v1712, %v1932
    %vm1934 = vcmask 1048512
    %v1935 = vsel %vm1934, %v1933, %v1928
    %v1936 = vlaneseq
    %v1937 = vshrl.u32 %v1936, 7
    %v1938 = vsub.s32 %v1826, %v1937
    %v1939 = vrot.slane %v1714, %v1938
    %v1940 = vlaneseq
    %v1941 = vshrl.u32 %v1940, 7
    %v1942 = vsub.s32 %v1831, %v1941
    %v1943 = vrot.slane %v1716, %v1942
    %v1944 = vsel %vm1836, %v1943, %v1939
    %v1945 = vlaneseq
    %v1946 = vshrl.u32 %v1945, 7
    %v1947 = vsub.s32 %v1838, %v1946
    %v1948 = vrot.slane %v1718, %v1947
    %v1949 = vsel %vm1843, %v1948, %v1944
    %v1950 = vlaneseq
    %v1951 = vshrl.u32 %v1950, 7
    %v1952 = vsub.s32 %v1845, %v1951
    %v1953 = vrot.slane %v1720, %v1952
    %v1954 = vsel %vm1850, %v1953, %v1949
    %v1955 = vlaneseq
    %v1956 = vshrl.u32 %v1955, 7
    %v1957 = vsub.s32 %v1852, %v1956
    %v1958 = vrot.slane %v1722, %v1957
    %v1959 = vsel %vm1857, %v1958, %v1954
    %v1960 = vlaneseq
    %v1961 = vshrl.u32 %v1960, 7
    %v1962 = vsub.s32 %v1859, %v1961
    %v1963 = vrot.slane %v1724, %v1962
    %v1964 = vsel %vm1864, %v1963, %v1959
    %v1965 = vlaneseq
    %v1966 = vshrl.u32 %v1965, 7
    %v1967 = vsub.s32 %v1866, %v1966
    %v1968 = vrot.slane %v1726, %v1967
    %v1969 = vsel %vm1871, %v1968, %v1964
    %v1970 = vlaneseq
    %v1971 = vshrl.u32 %v1970, 7
    %v1972 = vsub.s32 %v1873, %v1971
    %v1973 = vrot.slane %v1728, %v1972
    %v1974 = vsel %vm1878, %v1973, %v1969
    %v1975 = vlaneseq
    %v1976 = vshrl.u32 %v1975, 7
    %v1977 = vsub.s32 %v1880, %v1976
    %v1978 = vrot.slane %v1730, %v1977
    %v1979 = vsel %vm1885, %v1978, %v1974
    %v1980 = vlaneseq
    %v1981 = vshrl.u32 %v1980, 7
    %v1982 = vsub.s32 %v1887, %v1981
    %v1983 = vrot.slane %v1732, %v1982
    %v1984 = vsel %vm1892, %v1983, %v1979
    %v1985 = vlaneseq
    %v1986 = vshrl.u32 %v1985, 7
    %v1987 = vsub.s32 %v1894, %v1986
    %v1988 = vrot.slane %v1734, %v1987
    %v1989 = vsel %vm1899, %v1988, %v1984
    %v1990 = vlaneseq
    %v1991 = vshrl.u32 %v1990, 7
    %v1992 = vsub.s32 %v1901, %v1991
    %v1993 = vrot.slane %v1736, %v1992
    %v1994 = vsel %vm1906, %v1993, %v1989
    %v1995 = vlaneseq
    %v1996 = vshrl.u32 %v1995, 7
    %v1997 = vsub.s32 %v1908, %v1996
    %v1998 = vrot.slane %v1738, %v1997
    %v1999 = vsel %vm1913, %v1998, %v1994
    %v2000 = vlaneseq
    %v2001 = vshrl.u32 %v2000, 7
    %v2002 = vsub.s32 %v1915, %v2001
    %v2003 = vrot.slane %v1740, %v2002
    %v2004 = vsel %vm1920, %v2003, %v1999
    %v2005 = vlaneseq
    %v2006 = vshrl.u32 %v2005, 7
    %v2007 = vsub.s32 %v1922, %v2006
    %v2008 = vrot.slane %v1742, %v2007
    %v2009 = vsel %vm1927, %v2008, %v2004
    %v2010 = vlaneseq
    %v2011 = vshrl.u32 %v2010, 7
    %v2012 = vsub.s32 %v1929, %v2011
    %v2013 = vrot.slane %v1744, %v2012
    %v2014 = vsel %vm1934, %v2013, %v2009
    %v2015 = vlaneseq
    %v2016 = vshrl.u32 %v2015, 7
    %v2017 = vsub.s32 %v1826, %v2016
    %v2018 = vrot.slane %v1746, %v2017
    %v2019 = vlaneseq
    %v2020 = vshrl.u32 %v2019, 7
    %v2021 = vsub.s32 %v1831, %v2020
    %v2022 = vrot.slane %v1748, %v2021
    %v2023 = vsel %vm1836, %v2022, %v2018
    %v2024 = vlaneseq
    %v2025 = vshrl.u32 %v2024, 7
    %v2026 = vsub.s32 %v1838, %v2025
    %v2027 = vrot.slane %v1750, %v2026
    %v2028 = vsel %vm1843, %v2027, %v2023
    %v2029 = vlaneseq
    %v2030 = vshrl.u32 %v2029, 7
    %v2031 = vsub.s32 %v1845, %v2030
    %v2032 = vrot.slane %v1752, %v2031
    %v2033 = vsel %vm1850, %v2032, %v2028
    %v2034 = vlaneseq
    %v2035 = vshrl.u32 %v2034, 7
    %v2036 = vsub.s32 %v1852, %v2035
    %v2037 = vrot.slane %v1754, %v2036
    %v2038 = vsel %vm1857, %v2037, %v2033
    %v2039 = vlaneseq
    %v2040 = vshrl.u32 %v2039, 7
    %v2041 = vsub.s32 %v1859, %v2040
    %v2042 = vrot.slane %v1756, %v2041
    %v2043 = vsel %vm1864, %v2042, %v2038
    %v2044 = vlaneseq
    %v2045 = vshrl.u32 %v2044, 7
    %v2046 = vsub.s32 %v1866, %v2045
    %v2047 = vrot.slane %v1758, %v2046
    %v2048 = vsel %vm1871, %v2047, %v2043
    %v2049 = vlaneseq
    %v2050 = vshrl.u32 %v2049, 7
    %v2051 = vsub.s32 %v1873, %v2050
    %v2052 = vrot.slane %v1760, %v2051
    %v2053 = vsel %vm1878, %v2052, %v2048
    %v2054 = vlaneseq
    %v2055 = vshrl.u32 %v2054, 7
    %v2056 = vsub.s32 %v1880, %v2055
    %v2057 = vrot.slane %v1762, %v2056
    %v2058 = vsel %vm1885, %v2057, %v2053
    %v2059 = vlaneseq
    %v2060 = vshrl.u32 %v2059, 7
    %v2061 = vsub.s32 %v1887, %v2060
    %v2062 = vrot.slane %v1764, %v2061
    %v2063 = vsel %vm1892, %v2062, %v2058
    %v2064 = vlaneseq
    %v2065 = vshrl.u32 %v2064, 7
    %v2066 = vsub.s32 %v1894, %v2065
    %v2067 = vrot.slane %v1766, %v2066
    %v2068 = vsel %vm1899, %v2067, %v2063
    %v2069 = vlaneseq
    %v2070 = vshrl.u32 %v2069, 7
    %v2071 = vsub.s32 %v1901, %v2070
    %v2072 = vrot.slane %v1768, %v2071
    %v2073 = vsel %vm1906, %v2072, %v2068
    %v2074 = vlaneseq
    %v2075 = vshrl.u32 %v2074, 7
    %v2076 = vsub.s32 %v1908, %v2075
    %v2077 = vrot.slane %v1770, %v2076
    %v2078 = vsel %vm1913, %v2077, %v2073
    %v2079 = vlaneseq
    %v2080 = vshrl.u32 %v2079, 7
    %v2081 = vsub.s32 %v1915, %v2080
    %v2082 = vrot.slane %v1772, %v2081
    %v2083 = vsel %vm1920, %v2082, %v2078
    %v2084 = vlaneseq
    %v2085 = vshrl.u32 %v2084, 7
    %v2086 = vsub.s32 %v1922, %v2085
    %v2087 = vrot.slane %v1774, %v2086
    %v2088 = vsel %vm1927, %v2087, %v2083
    %v2089 = vlaneseq
    %v2090 = vshrl.u32 %v2089, 7
    %v2091 = vsub.s32 %v1929, %v2090
    %v2092 = vrot.slane %v1776, %v2091
    %v2093 = vsel %vm1934, %v2092, %v2088
    %vm2094 = vcmask 1041409
    %v2095 = vsel %vm2094, %v2014, %v1935
    %vm2096 = vcmask 1042434
    %v2097 = vsel %vm2096, %v2093, %v2095
    %2099 = vst [vmem:[#allocation3] sm:$0x7] %v2097
    // Predicated region
    $region38: #{tpu_custom_call.1} parent=1 // pred_check
      _
    $region39: #{tpu_custom_call.1} parent=1 // pred_check_branch
      %2101 = sbr.rel (0) target = $region41
    $region40: #{tpu_custom_call.1} parent=1 // pred_region
      %s2103 = ssub.s32 64, 64
      %2104 = vsyncadd [#allocation4], %s2103
      %s2106 = sshll.u32 [#allocation3], 4
      %s2107 = int_to_ptr.vmem [resolvable:$true] %s2106
      %2109 = dma.vmem_to_hbm [thread:$0]  %s2107, 64, %s9, [#allocation4]
    $region41: #{tpu_custom_call.1} parent=1 // pred_fallthru
      _
    // Predicated region
    $region42: #{tpu_custom_call.1} parent=1 // pred_check
      _
    $region43: #{tpu_custom_call.1} parent=1 // pred_check_branch
      %2111 = sbr.rel (0) target = $region45
    $region44: #{tpu_custom_call.1} parent=1 // pred_region
      %2112 = dma.done [#allocation4], 64
    $region45: #{tpu_custom_call.1} parent=1 // pred_fallthru
      _
    %2113 = vsyncpa [#allocation4], 1

// kernel: tpu_custom_call.1
$region0: #{tpu_custom_call.1}
  #allocation0 [shape = 'u32[]', space=smem, size = 0x4, offset = 0x4, fixed_abs, tag = 'smem constant byte address 0x4 - core index']
  #allocation1 [shape = 'u32[144,128]{1,0:T(1,128)}', space=vmem, size = 0x12000, scoped, tag = 'internal scratch']
  #allocation2 [shape = 'f32[1,1]{1,0:T(1,128)S(6)}', space=smem, size = 0x200, scoped, tag = 'scoped memory for tpu_custom_call.1']
  %s0 = inlined_call_operand.vmem [shape: bf16[3,32], index: 0, kind: input, shape index: {}]
  %s1 = inlined_call_operand.vmem [shape: f32[3,64], index: 1, kind: input, shape index: {}]
  %s2 = inlined_call_operand.vmem [shape: bf16[128,32], index: 2, kind: input, shape index: {}]
  %s3 = inlined_call_operand.vmem [shape: bf16[32,64], index: 3, kind: input, shape index: {}]
  %s4 = inlined_call_operand.vmem [shape: bf16[32,64], index: 4, kind: input, shape index: {}]
  %s5 = inlined_call_operand.vmem [shape: bf16[64,32], index: 5, kind: input, shape index: {}]
  %s6 = inlined_call_operand.vmem [shape: f32[1,32], index: 6, kind: input, shape index: {}]
  %s7 = inlined_call_operand.vmem [shape: f32[1,32], index: 7, kind: input, shape index: {}]
  %s8 = inlined_call_operand.<no memory space> [shape: f32[1,1], index: 8, kind: input, shape index: {}]
  %s9 = inlined_call_operand.hbm [shape: f32[3,128], index: 9, kind: output, shape index: {}]
  %s10 = sld [smem:[#allocation0]]
  $region46: #{tpu_custom_call.1} parent=0
    _
  %s12 = ssub.s32 1, %s10
  %s13 = scalar_select 0, %s12, %s10
  %14 = sst [smem:[#allocation2]] %s8
  $region1: #{tpu_custom_call.1} parent=0
    #allocation3 [shape = 'u8[2048]{0}', space=vmem, size = 0x800, scoped, tag = 'output window, operand 0, single buffered']
    #allocation4 [shape = 's32[1]{0}', space=sflag, size = 0x4, scoped, tag = 'scoped memory for tpu_custom_call.1']
    %15 = vsyncpa [#allocation4], 0
    // Predicated region
    $region2: #{tpu_custom_call.1} parent=1 // pred_check
      _
    $region3: #{tpu_custom_call.1} parent=1 // pred_check_branch
      %17 = sbr.rel (0) target = $region5
    $region4: #{tpu_custom_call.1} parent=1 // pred_region
      _
    $region5: #{tpu_custom_call.1} parent=1 // pred_fallthru
      _
    // Predicated region
    $region6: #{tpu_custom_call.1} parent=1 // pred_check
      _
    $region7: #{tpu_custom_call.1} parent=1 // pred_check_branch
      %19 = sbr.rel (0) target = $region9
    $region8: #{tpu_custom_call.1} parent=1 // pred_region
      _
    $region9: #{tpu_custom_call.1} parent=1 // pred_fallthru
      _
    // Predicated region
    $region10: #{tpu_custom_call.1} parent=1 // pred_check
      _
    $region11: #{tpu_custom_call.1} parent=1 // pred_check_branch
      %21 = sbr.rel (0) target = $region13
    $region12: #{tpu_custom_call.1} parent=1 // pred_region
      _
    $region13: #{tpu_custom_call.1} parent=1 // pred_fallthru
      _
    // Predicated region
    $region14: #{tpu_custom_call.1} parent=1 // pred_check
      _
    $region15: #{tpu_custom_call.1} parent=1 // pred_check_branch
      %23 = sbr.rel (0) target = $region17
    $region16: #{tpu_custom_call.1} parent=1 // pred_region
      _
    $region17: #{tpu_custom_call.1} parent=1 // pred_fallthru
      _
    // Predicated region
    $region18: #{tpu_custom_call.1} parent=1 // pred_check
      _
    $region19: #{tpu_custom_call.1} parent=1 // pred_check_branch
      %25 = sbr.rel (0) target = $region21
    $region20: #{tpu_custom_call.1} parent=1 // pred_region
      _
    $region21: #{tpu_custom_call.1} parent=1 // pred_fallthru
      _
    // Predicated region
    $region22: #{tpu_custom_call.1} parent=1 // pred_check
      _
    $region23: #{tpu_custom_call.1} parent=1 // pred_check_branch
      %27 = sbr.rel (0) target = $region25
    $region24: #{tpu_custom_call.1} parent=1 // pred_region
      _
    $region25: #{tpu_custom_call.1} parent=1 // pred_fallthru
      _
    // Predicated region
    $region26: #{tpu_custom_call.1} parent=1 // pred_check
      _
    $region27: #{tpu_custom_call.1} parent=1 // pred_check_branch
      %29 = sbr.rel (0) target = $region29
    $region28: #{tpu_custom_call.1} parent=1 // pred_region
      _
    $region29: #{tpu_custom_call.1} parent=1 // pred_fallthru
      _
    // Predicated region
    $region30: #{tpu_custom_call.1} parent=1 // pred_check
      _
    $region31: #{tpu_custom_call.1} parent=1 // pred_check_branch
      %31 = sbr.rel (0) target = $region33
    $region32: #{tpu_custom_call.1} parent=1 // pred_region
      _
    $region33: #{tpu_custom_call.1} parent=1 // pred_fallthru
      _
    // Predicated region
    $region34: #{tpu_custom_call.1} parent=1 // pred_check
      _
    $region35: #{tpu_custom_call.1} parent=1 // pred_check_branch
      %33 = sbr.rel (0) target = $region37
    $region36: #{tpu_custom_call.1} parent=1 // pred_region
      _
    $region37: #{tpu_custom_call.1} parent=1 // pred_fallthru
      _
    %v35 = vld [vmem:[%s0] sm:$0x3]
    %v36 = vld [vmem:[%s2] sm:$0xf]
    %v37 = vld [vmem:[%s2 + $0x4] sm:$0xf]
    %v38 = vld [vmem:[%s2 + $0x8] sm:$0xf]
    %v39 = vld [vmem:[%s2 + $0xc] sm:$0xf]
    %v40 = vld [vmem:[%s2 + $0x10] sm:$0xf]
    %v41 = vld [vmem:[%s2 + $0x14] sm:$0xf]
    %v42 = vld [vmem:[%s2 + $0x18] sm:$0xf]
    %v43 = vld [vmem:[%s2 + $0x1c] sm:$0xf]
    %v44 = vld [vmem:[%s2 + $0x20] sm:$0xf]
    %v45 = vld [vmem:[%s2 + $0x24] sm:$0xf]
    %v46 = vld [vmem:[%s2 + $0x28] sm:$0xf]
    %v47 = vld [vmem:[%s2 + $0x2c] sm:$0xf]
    %v48 = vld [vmem:[%s2 + $0x30] sm:$0xf]
    %v49 = vld [vmem:[%s2 + $0x34] sm:$0xf]
    %v50 = vld [vmem:[%s2 + $0x38] sm:$0xf]
    %v51 = vld [vmem:[%s2 + $0x3c] sm:$0xf]
    %v52 = vld [vmem:[%s3] sm:$0xf]
    %v53 = vld [vmem:[%s3 + $0x4] sm:$0xf]
    %v54 = vld [vmem:[%s3 + $0x8] sm:$0xf]
    %v55 = vld [vmem:[%s3 + $0xc] sm:$0xf]
    %v72 = vunpack.c.l.b16 %v36
    %v73 = vunpack.c.l.b16 %v37
    %v74 = vunpack.c.l.b16 %v38
    %v75 = vunpack.c.l.b16 %v39
    %v76 = vunpack.c.l.b16 %v40
    %v77 = vunpack.c.l.b16 %v41
    %v78 = vunpack.c.l.b16 %v42
    %v79 = vunpack.c.l.b16 %v43
    %v80 = vunpack.c.l.b16 %v44
    %v81 = vunpack.c.l.b16 %v45
    %v82 = vunpack.c.l.b16 %v46
    %v83 = vunpack.c.l.b16 %v47
    %v84 = vunpack.c.l.b16 %v48
    %v85 = vunpack.c.l.b16 %v49
    %v86 = vunpack.c.l.b16 %v50
    %v87 = vunpack.c.l.b16 %v51
    %v88 = vpack.c.b16 %v73, %v72
    %v89 = vpack.c.b16 %v75, %v74
    %v90 = vpack.c.b16 %v77, %v76
    %v91 = vpack.c.b16 %v79, %v78
    %v92 = vpack.c.b16 %v81, %v80
    %v93 = vpack.c.b16 %v83, %v82
    %v94 = vpack.c.b16 %v85, %v84
    %v95 = vpack.c.b16 %v87, %v86
    %v100 = vunpack.c.l.b16 %v52
    %v101 = vunpack.c.l.b16 %v53
    %v102 = vunpack.c.l.b16 %v54
    %v103 = vunpack.c.l.b16 %v55
    %v104 = vpack.c.b16 %v101, %v100
    %v105 = vpack.c.b16 %v103, %v102
    %vm108 = vcmask 261120
    %v110 = vsel %vm108, %v88, 0
    %v113 = vsel %vm108, %v89, 0
    %v116 = vsel %vm108, %v90, 0
    %v119 = vsel %vm108, %v91, 0
    %v122 = vsel %vm108, %v92, 0
    %v125 = vsel %vm108, %v93, 0
    %v128 = vsel %vm108, %v94, 0
    %v131 = vsel %vm108, %v95, 0
    %133 = vmatprep.subr.bf16.mxu0 0
    %134 = vmatpush1.bf16.msra.mxu0 %v104
    %135 = vmatprep.subr.bf16.mxu0 0
    %136 = vmatpush1.bf16.msra.mxu0 %v105
    %137 = vmatprep.subr.bf16.mxu0 0
    %138 = vmatpush1.bf16.msra.mxu0 0
    %139 = vmatprep.subr.bf16.mxu0 0
    %140 = vmatpush1.bf16.msra.mxu0 0
    %141 = vmatprep.subr.bf16.mxu0 0
    %142 = vmatpush1.bf16.msra.mxu0 0
    %143 = vmatprep.subr.bf16.mxu0 0
    %144 = vmatpush1.bf16.msra.mxu0 0
    %145 = vmatprep.subr.bf16.mxu0 0
    %146 = vmatpush1.bf16.msra.mxu0 0
    %147 = vmatprep.subr.bf16.mxu0 0
    %148 = vmatpush1.bf16.msra.mxu0 0
    %149 = vmatprep.subr.bf16.mxu0 0
    %150 = vmatpush1.bf16.msra.mxu0 0
    %151 = vmatprep.subr.bf16.mxu0 0
    %152 = vmatpush1.bf16.msra.mxu0 0
    %153 = vmatprep.subr.bf16.mxu0 0
    %154 = vmatpush1.bf16.msra.mxu0 0
    %155 = vmatprep.subr.bf16.mxu0 0
    %156 = vmatpush1.bf16.msra.mxu0 0
    %157 = vmatprep.subr.bf16.mxu0 0
    %158 = vmatpush1.bf16.msra.mxu0 0
    %159 = vmatprep.subr.bf16.mxu0 0
    %160 = vmatpush1.bf16.msra.mxu0 0
    %161 = vmatprep.subr.bf16.mxu0 0
    %162 = vmatpush1.bf16.msra.mxu0 0
    %163 = vmatprep.subr.bf16.mxu0 0
    %164 = vmatpush1.bf16.msra.mxu0 0
    %165 = vmatprep.mubr.bf16.mxu0 0
    %166 = vmatmul.mubr.bf16.gmra.mrb[0].mxu0 %v110
    %v167 = vpop.f32.mrb[0].mxu0
    %v168 = vadd.f32 0.0, %v167
    %v169 = vpop.f32.mrb[0].mxu0
    %v170 = vpop.f32.mrb[0].mxu0
    %v171 = vadd.f32 0.0, %v170
    %v172 = vpop.f32.mrb[0].mxu0
    %173 = vmatprep.mubr.bf16.mxu0 0
    %174 = vmatmul.mubr.bf16.gmra.mrb[0].mxu0 %v113
    %v175 = vpop.f32.mrb[0].mxu0
    %v176 = vadd.f32 0.0, %v175
    %v177 = vpop.f32.mrb[0].mxu0
    %v178 = vpop.f32.mrb[0].mxu0
    %v179 = vadd.f32 0.0, %v178
    %v180 = vpop.f32.mrb[0].mxu0
    %181 = vmatprep.mubr.bf16.mxu0 0
    %182 = vmatmul.mubr.bf16.gmra.mrb[0].mxu0 %v116
    %v183 = vpop.f32.mrb[0].mxu0
    %v184 = vadd.f32 0.0, %v183
    %v185 = vpop.f32.mrb[0].mxu0
    %v186 = vpop.f32.mrb[0].mxu0
    %v187 = vadd.f32 0.0, %v186
    %v188 = vpop.f32.mrb[0].mxu0
    %189 = vmatprep.mubr.bf16.mxu0 0
    %190 = vmatmul.mubr.bf16.gmra.mrb[0].mxu0 %v119
    %v191 = vpop.f32.mrb[0].mxu0
    %v192 = vadd.f32 0.0, %v191
    %v193 = vpop.f32.mrb[0].mxu0
    %v194 = vpop.f32.mrb[0].mxu0
    %v195 = vadd.f32 0.0, %v194
    %v196 = vpop.f32.mrb[0].mxu0
    %197 = vmatprep.mubr.bf16.mxu0 0
    %198 = vmatmul.mubr.bf16.gmra.mrb[0].mxu0 %v122
    %v199 = vpop.f32.mrb[0].mxu0
    %v200 = vadd.f32 0.0, %v199
    %v201 = vpop.f32.mrb[0].mxu0
    %v202 = vpop.f32.mrb[0].mxu0
    %v203 = vadd.f32 0.0, %v202
    %v204 = vpop.f32.mrb[0].mxu0
    %205 = vmatprep.mubr.bf16.mxu0 0
    %206 = vmatmul.mubr.bf16.gmra.mrb[0].mxu0 %v125
    %v207 = vpop.f32.mrb[0].mxu0
    %v208 = vadd.f32 0.0, %v207
    %v209 = vpop.f32.mrb[0].mxu0
    %v210 = vpop.f32.mrb[0].mxu0
    %v211 = vadd.f32 0.0, %v210
    %v212 = vpop.f32.mrb[0].mxu0
    %213 = vmatprep.mubr.bf16.mxu0 0
    %214 = vmatmul.mubr.bf16.gmra.mrb[0].mxu0 %v128
    %v215 = vpop.f32.mrb[0].mxu0
    %v216 = vadd.f32 0.0, %v215
    %v217 = vpop.f32.mrb[0].mxu0
    %v218 = vpop.f32.mrb[0].mxu0
    %v219 = vadd.f32 0.0, %v218
    %v220 = vpop.f32.mrb[0].mxu0
    %221 = vmatprep.mubr.bf16.mxu0 0
    %222 = vmatmul.mubr.bf16.gmra.mrb[0].mxu0 %v131
    %v223 = vpop.f32.mrb[0].mxu0
    %v224 = vadd.f32 0.0, %v223
    %v225 = vpop.f32.mrb[0].mxu0
    %v226 = vpop.f32.mrb[0].mxu0
    %v227 = vadd.f32 0.0, %v226
    %v228 = vpop.f32.mrb[0].mxu0
    %229 = vdwg.mxu0
    %v232 = vunpack.c.l.s4 1966171168
    %v233 = vunpack.c.0.s8 %v232
    %v234 = vlaneseq
    %v235 = vshrl.u32 %v234, 7
    %v236 = vsub.s32 %v233, %v235
    %v237 = vrot.slane %v35, %v236
    %v238 = vcombine.high %v237, %v237
    %v239 = vunpack.i.l.s16 %v237
    %v240 = vunpack.i.h.s16 %v237
    %v241 = vunpack.i.l.s16 %v238
    %v242 = vpack.i.b16 %v239, %v239
    %v243 = vpack.i.b16 %v240, %v240
    %v244 = vpack.i.b16 %v241, %v241
    %v245 = vlaneseq
    %v246 = vshrl.u32 %v245, 7
    %v247 = vsub.s32 0, %v246
    %v248 = vrot.slane %v242, %v247
    %v249 = vlaneseq
    %v250 = vshrl.u32 %v249, 7
    %v251 = vsub.s32 0, %v250
    %v252 = vrot.slane %v243, %v251
    %v253 = vlaneseq
    %v254 = vshrl.u32 %v253, 7
    %v255 = vsub.s32 0, %v254
    %v256 = vrot.slane %v244, %v255
    %v258 = vpack.i.b16 %v248, %v248
    %v260 = vlaneseq
    %v261 = vshrl.u32 %v260, 7
    %v262 = vsub.s32 0, %v261
    %v263 = vrot.slane %v258, %v262
    %v265 = vpack.i.b16 %v252, %v252
    %v267 = vlaneseq
    %v268 = vshrl.u32 %v267, 7
    %v269 = vsub.s32 0, %v268
    %v270 = vrot.slane %v265, %v269
    %v272 = vpack.i.b16 %v256, %v256
    %v274 = vlaneseq
    %v275 = vshrl.u32 %v274, 7
    %v276 = vsub.s32 0, %v275
    %v277 = vrot.slane %v272, %v276
    %v286 = vmul.bf16 %v263, %v88
    %v287 = vmul.bf16 %v263, %v89
    %v288 = vmul.bf16 %v263, %v90
    %v289 = vmul.bf16 %v263, %v91
    %v290 = vmul.bf16 %v263, %v92
    %v291 = vmul.bf16 %v263, %v93
    %v292 = vmul.bf16 %v263, %v94
    %v293 = vmul.bf16 %v263, %v95
    %v294 = vmul.bf16 %v270, %v88
    %v295 = vmul.bf16 %v270, %v89
    %v296 = vmul.bf16 %v270, %v90
    %v297 = vmul.bf16 %v270, %v91
    %v298 = vmul.bf16 %v270, %v92
    %v299 = vmul.bf16 %v270, %v93
    %v300 = vmul.bf16 %v270, %v94
    %v301 = vmul.bf16 %v270, %v95
    %v302 = vmul.bf16 %v277, %v88
    %v303 = vmul.bf16 %v277, %v89
    %v304 = vmul.bf16 %v277, %v90
    %v305 = vmul.bf16 %v277, %v91
    %v306 = vmul.bf16 %v277, %v92
    %v307 = vmul.bf16 %v277, %v93
    %v308 = vmul.bf16 %v277, %v94
    %v309 = vmul.bf16 %v277, %v95
    %v310 = vld [vmem:[%s4] sm:$0xf]
    %v311 = vld [vmem:[%s4 + $0x4] sm:$0xf]
    %v312 = vld [vmem:[%s4 + $0x8] sm:$0xf]
    %v313 = vld [vmem:[%s4 + $0xc] sm:$0xf]
    %v318 = vunpack.c.l.b16 %v310
    %v319 = vunpack.c.l.b16 %v311
    %v320 = vunpack.c.l.b16 %v312
    %v321 = vunpack.c.l.b16 %v313
    %v322 = vpack.c.b16 %v319, %v318
    %v323 = vpack.c.b16 %v321, %v320
    %v327 = vsel %vm108, %v286, 0
    %v330 = vsel %vm108, %v287, 0
    %v333 = vsel %vm108, %v288, 0
    %v336 = vsel %vm108, %v289, 0
    %v339 = vsel %vm108, %v290, 0
    %v342 = vsel %vm108, %v291, 0
    %v345 = vsel %vm108, %v292, 0
    %v348 = vsel %vm108, %v293, 0
    %v351 = vsel %vm108, %v294, 0
    %v354 = vsel %vm108, %v295, 0
    %v357 = vsel %vm108, %v296, 0
    %v360 = vsel %vm108, %v297, 0
    %v363 = vsel %vm108, %v298, 0
    %v366 = vsel %vm108, %v299, 0
    %v369 = vsel %vm108, %v300, 0
    %v372 = vsel %vm108, %v301, 0
    %v375 = vsel %vm108, %v302, 0
    %v378 = vsel %vm108, %v303, 0
    %v381 = vsel %vm108, %v304, 0
    %v384 = vsel %vm108, %v305, 0
    %v387 = vsel %vm108, %v306, 0
    %v390 = vsel %vm108, %v307, 0
    %v393 = vsel %vm108, %v308, 0
    %v396 = vsel %vm108, %v309, 0
    %398 = vmatprep.subr.bf16.mxu0 0
    %399 = vmatpush1.bf16.msra.mxu0 %v322
    %400 = vmatprep.subr.bf16.mxu0 0
    %401 = vmatpush1.bf16.msra.mxu0 %v323
    %402 = vmatprep.subr.bf16.mxu0 0
    %403 = vmatpush1.bf16.msra.mxu0 0
    %404 = vmatprep.subr.bf16.mxu0 0
    %405 = vmatpush1.bf16.msra.mxu0 0
    %406 = vmatprep.subr.bf16.mxu0 0
    %407 = vmatpush1.bf16.msra.mxu0 0
    %408 = vmatprep.subr.bf16.mxu0 0
    %409 = vmatpush1.bf16.msra.mxu0 0
    %410 = vmatprep.subr.bf16.mxu0 0
    %411 = vmatpush1.bf16.msra.mxu0 0
    %412 = vmatprep.subr.bf16.mxu0 0
    %413 = vmatpush1.bf16.msra.mxu0 0
    %414 = vmatprep.subr.bf16.mxu0 0
    %415 = vmatpush1.bf16.msra.mxu0 0
    %416 = vmatprep.subr.bf16.mxu0 0
    %417 = vmatpush1.bf16.msra.mxu0 0
    %418 = vmatprep.subr.bf16.mxu0 0
    %419 = vmatpush1.bf16.msra.mxu0 0
    %420 = vmatprep.subr.bf16.mxu0 0
    %421 = vmatpush1.bf16.msra.mxu0 0
    %422 = vmatprep.subr.bf16.mxu0 0
    %423 = vmatpush1.bf16.msra.mxu0 0
    %424 = vmatprep.subr.bf16.mxu0 0
    %425 = vmatpush1.bf16.msra.mxu0 0
    %426 = vmatprep.subr.bf16.mxu0 0
    %427 = vmatpush1.bf16.msra.mxu0 0
    %428 = vmatprep.subr.bf16.mxu0 0
    %429 = vmatpush1.bf16.msra.mxu0 0
    %430 = vmatprep.mubr.bf16.mxu0 0
    %431 = vmatmul.mubr.bf16.gmra.mrb[0].mxu0 %v327
    %v432 = vpop.f32.mrb[0].mxu0
    %v433 = vadd.f32 0.0, %v432
    %v434 = vpop.f32.mrb[0].mxu0
    %v435 = vpop.f32.mrb[0].mxu0
    %v436 = vadd.f32 0.0, %v435
    %v437 = vpop.f32.mrb[0].mxu0
    %438 = vmatprep.mubr.bf16.mxu0 0
    %439 = vmatmul.mubr.bf16.gmra.mrb[0].mxu0 %v330
    %v440 = vpop.f32.mrb[0].mxu0
    %v441 = vadd.f32 0.0, %v440
    %v442 = vpop.f32.mrb[0].mxu0
    %v443 = vpop.f32.mrb[0].mxu0
    %v444 = vadd.f32 0.0, %v443
    %v445 = vpop.f32.mrb[0].mxu0
    %446 = vmatprep.mubr.bf16.mxu0 0
    %447 = vmatmul.mubr.bf16.gmra.mrb[0].mxu0 %v333
    %v448 = vpop.f32.mrb[0].mxu0
    %v449 = vadd.f32 0.0, %v448
    %v450 = vpop.f32.mrb[0].mxu0
    %v451 = vpop.f32.mrb[0].mxu0
    %v452 = vadd.f32 0.0, %v451
    %v453 = vpop.f32.mrb[0].mxu0
    %454 = vmatprep.mubr.bf16.mxu0 0
    %455 = vmatmul.mubr.bf16.gmra.mrb[0].mxu0 %v336
    %v456 = vpop.f32.mrb[0].mxu0
    %v457 = vadd.f32 0.0, %v456
    %v458 = vpop.f32.mrb[0].mxu0
    %v459 = vpop.f32.mrb[0].mxu0
    %v460 = vadd.f32 0.0, %v459
    %v461 = vpop.f32.mrb[0].mxu0
    %462 = vmatprep.mubr.bf16.mxu0 0
    %463 = vmatmul.mubr.bf16.gmra.mrb[0].mxu0 %v339
    %v464 = vpop.f32.mrb[0].mxu0
    %v465 = vadd.f32 0.0, %v464
    %v466 = vpop.f32.mrb[0].mxu0
    %v467 = vpop.f32.mrb[0].mxu0
    %v468 = vadd.f32 0.0, %v467
    %v469 = vpop.f32.mrb[0].mxu0
    %470 = vmatprep.mubr.bf16.mxu0 0
    %471 = vmatmul.mubr.bf16.gmra.mrb[0].mxu0 %v342
    %v472 = vpop.f32.mrb[0].mxu0
    %v473 = vadd.f32 0.0, %v472
    %v474 = vpop.f32.mrb[0].mxu0
    %v475 = vpop.f32.mrb[0].mxu0
    %v476 = vadd.f32 0.0, %v475
    %v477 = vpop.f32.mrb[0].mxu0
    %478 = vmatprep.mubr.bf16.mxu0 0
    %479 = vmatmul.mubr.bf16.gmra.mrb[0].mxu0 %v345
    %v480 = vpop.f32.mrb[0].mxu0
    %v481 = vadd.f32 0.0, %v480
    %v482 = vpop.f32.mrb[0].mxu0
    %v483 = vpop.f32.mrb[0].mxu0
    %v484 = vadd.f32 0.0, %v483
    %v485 = vpop.f32.mrb[0].mxu0
    %486 = vmatprep.mubr.bf16.mxu0 0
    %487 = vmatmul.mubr.bf16.gmra.mrb[0].mxu0 %v348
    %v488 = vpop.f32.mrb[0].mxu0
    %v489 = vadd.f32 0.0, %v488
    %v490 = vpop.f32.mrb[0].mxu0
    %v491 = vpop.f32.mrb[0].mxu0
    %v492 = vadd.f32 0.0, %v491
    %v493 = vpop.f32.mrb[0].mxu0
    %494 = vmatprep.mubr.bf16.mxu0 0
    %495 = vmatmul.mubr.bf16.gmra.mrb[0].mxu0 %v351
    %v496 = vpop.f32.mrb[0].mxu0
    %v497 = vadd.f32 0.0, %v496
    %v498 = vpop.f32.mrb[0].mxu0
    %v499 = vpop.f32.mrb[0].mxu0
    %v500 = vadd.f32 0.0, %v499
    %v501 = vpop.f32.mrb[0].mxu0
    %502 = vmatprep.mubr.bf16.mxu0 0
    %503 = vmatmul.mubr.bf16.gmra.mrb[0].mxu0 %v354
    %v504 = vpop.f32.mrb[0].mxu0
    %v505 = vadd.f32 0.0, %v504
    %v506 = vpop.f32.mrb[0].mxu0
    %v507 = vpop.f32.mrb[0].mxu0
    %v508 = vadd.f32 0.0, %v507
    %v509 = vpop.f32.mrb[0].mxu0
    %510 = vmatprep.mubr.bf16.mxu0 0
    %511 = vmatmul.mubr.bf16.gmra.mrb[0].mxu0 %v357
    %v512 = vpop.f32.mrb[0].mxu0
    %v513 = vadd.f32 0.0, %v512
    %v514 = vpop.f32.mrb[0].mxu0
    %v515 = vpop.f32.mrb[0].mxu0
    %v516 = vadd.f32 0.0, %v515
    %v517 = vpop.f32.mrb[0].mxu0
    %518 = vmatprep.mubr.bf16.mxu0 0
    %519 = vmatmul.mubr.bf16.gmra.mrb[0].mxu0 %v360
    %v520 = vpop.f32.mrb[0].mxu0
    %v521 = vadd.f32 0.0, %v520
    %v522 = vpop.f32.mrb[0].mxu0
    %v523 = vpop.f32.mrb[0].mxu0
    %v524 = vadd.f32 0.0, %v523
    %v525 = vpop.f32.mrb[0].mxu0
    %526 = vmatprep.mubr.bf16.mxu0 0
    %527 = vmatmul.mubr.bf16.gmra.mrb[0].mxu0 %v363
    %v528 = vpop.f32.mrb[0].mxu0
    %v529 = vadd.f32 0.0, %v528
    %v530 = vpop.f32.mrb[0].mxu0
    %v531 = vpop.f32.mrb[0].mxu0
    %v532 = vadd.f32 0.0, %v531
    %v533 = vpop.f32.mrb[0].mxu0
    %534 = vmatprep.mubr.bf16.mxu0 0
    %535 = vmatmul.mubr.bf16.gmra.mrb[0].mxu0 %v366
    %v536 = vpop.f32.mrb[0].mxu0
    %v537 = vadd.f32 0.0, %v536
    %v538 = vpop.f32.mrb[0].mxu0
    %v539 = vpop.f32.mrb[0].mxu0
    %v540 = vadd.f32 0.0, %v539
    %v541 = vpop.f32.mrb[0].mxu0
    %542 = vmatprep.mubr.bf16.mxu0 0
    %543 = vmatmul.mubr.bf16.gmra.mrb[0].mxu0 %v369
    %v544 = vpop.f32.mrb[0].mxu0
    %v545 = vadd.f32 0.0, %v544
    %v546 = vpop.f32.mrb[0].mxu0
    %v547 = vpop.f32.mrb[0].mxu0
    %v548 = vadd.f32 0.0, %v547
    %v549 = vpop.f32.mrb[0].mxu0
    %550 = vmatprep.mubr.bf16.mxu0 0
    %551 = vmatmul.mubr.bf16.gmra.mrb[0].mxu0 %v372
    %v552 = vpop.f32.mrb[0].mxu0
    %v553 = vadd.f32 0.0, %v552
    %v554 = vpop.f32.mrb[0].mxu0
    %v555 = vpop.f32.mrb[0].mxu0
    %v556 = vadd.f32 0.0, %v555
    %v557 = vpop.f32.mrb[0].mxu0
    %558 = vmatprep.mubr.bf16.mxu0 0
    %559 = vmatmul.mubr.bf16.gmra.mrb[0].mxu0 %v375
    %v560 = vpop.f32.mrb[0].mxu0
    %v561 = vadd.f32 0.0, %v560
    %v562 = vpop.f32.mrb[0].mxu0
    %v563 = vpop.f32.mrb[0].mxu0
    %v564 = vadd.f32 0.0, %v563
    %v565 = vpop.f32.mrb[0].mxu0
    %566 = vmatprep.mubr.bf16.mxu0 0
    %567 = vmatmul.mubr.bf16.gmra.mrb[0].mxu0 %v378
    %v568 = vpop.f32.mrb[0].mxu0
    %v569 = vadd.f32 0.0, %v568
    %v570 = vpop.f32.mrb[0].mxu0
    %v571 = vpop.f32.mrb[0].mxu0
    %v572 = vadd.f32 0.0, %v571
    %v573 = vpop.f32.mrb[0].mxu0
    %574 = vmatprep.mubr.bf16.mxu0 0
    %575 = vmatmul.mubr.bf16.gmra.mrb[0].mxu0 %v381
    %v576 = vpop.f32.mrb[0].mxu0
    %v577 = vadd.f32 0.0, %v576
    %v578 = vpop.f32.mrb[0].mxu0
    %v579 = vpop.f32.mrb[0].mxu0
    %v580 = vadd.f32 0.0, %v579
    %v581 = vpop.f32.mrb[0].mxu0
    %582 = vmatprep.mubr.bf16.mxu0 0
    %583 = vmatmul.mubr.bf16.gmra.mrb[0].mxu0 %v384
    %v584 = vpop.f32.mrb[0].mxu0
    %v585 = vadd.f32 0.0, %v584
    %v586 = vpop.f32.mrb[0].mxu0
    %v587 = vpop.f32.mrb[0].mxu0
    %v588 = vadd.f32 0.0, %v587
    %v589 = vpop.f32.mrb[0].mxu0
    %590 = vmatprep.mubr.bf16.mxu0 0
    %591 = vmatmul.mubr.bf16.gmra.mrb[0].mxu0 %v387
    %v592 = vpop.f32.mrb[0].mxu0
    %v593 = vadd.f32 0.0, %v592
    %v594 = vpop.f32.mrb[0].mxu0
    %v595 = vpop.f32.mrb[0].mxu0
    %v596 = vadd.f32 0.0, %v595
    %v597 = vpop.f32.mrb[0].mxu0
    %598 = vmatprep.mubr.bf16.mxu0 0
    %599 = vmatmul.mubr.bf16.gmra.mrb[0].mxu0 %v390
    %v600 = vpop.f32.mrb[0].mxu0
    %v601 = vadd.f32 0.0, %v600
    %v602 = vpop.f32.mrb[0].mxu0
    %v603 = vpop.f32.mrb[0].mxu0
    %v604 = vadd.f32 0.0, %v603
    %v605 = vpop.f32.mrb[0].mxu0
    %606 = vmatprep.mubr.bf16.mxu0 0
    %607 = vmatmul.mubr.bf16.gmra.mrb[0].mxu0 %v393
    %v608 = vpop.f32.mrb[0].mxu0
    %v609 = vadd.f32 0.0, %v608
    %v610 = vpop.f32.mrb[0].mxu0
    %v611 = vpop.f32.mrb[0].mxu0
    %v612 = vadd.f32 0.0, %v611
    %v613 = vpop.f32.mrb[0].mxu0
    %614 = vmatprep.mubr.bf16.mxu0 0
    %615 = vmatmul.mubr.bf16.gmra.mrb[0].mxu0 %v396
    %v616 = vpop.f32.mrb[0].mxu0
    %v617 = vadd.f32 0.0, %v616
    %v618 = vpop.f32.mrb[0].mxu0
    %v619 = vpop.f32.mrb[0].mxu0
    %v620 = vadd.f32 0.0, %v619
    %v621 = vpop.f32.mrb[0].mxu0
    %622 = vdwg.mxu0
    %v623 = vadd.f32 %v433, %v168
    %v624 = vadd.f32 %v436, %v171
    %v625 = vadd.f32 %v441, %v176
    %v626 = vadd.f32 %v444, %v179
    %v627 = vadd.f32 %v449, %v184
    %v628 = vadd.f32 %v452, %v187
    %v629 = vadd.f32 %v457, %v192
    %v630 = vadd.f32 %v460, %v195
    %v631 = vadd.f32 %v465, %v200
    %v632 = vadd.f32 %v468, %v203
    %v633 = vadd.f32 %v473, %v208
    %v634 = vadd.f32 %v476, %v211
    %v635 = vadd.f32 %v481, %v216
    %v636 = vadd.f32 %v484, %v219
    %v637 = vadd.f32 %v489, %v224
    %v638 = vadd.f32 %v492, %v227
    %v639 = vadd.f32 %v497, %v168
    %v640 = vadd.f32 %v500, %v171
    %v641 = vadd.f32 %v505, %v176
    %v642 = vadd.f32 %v508, %v179
    %v643 = vadd.f32 %v513, %v184
    %v644 = vadd.f32 %v516, %v187
    %v645 = vadd.f32 %v521, %v192
    %v646 = vadd.f32 %v524, %v195
    %v647 = vadd.f32 %v529, %v200
    %v648 = vadd.f32 %v532, %v203
    %v649 = vadd.f32 %v537, %v208
    %v650 = vadd.f32 %v540, %v211
    %v651 = vadd.f32 %v545, %v216
    %v652 = vadd.f32 %v548, %v219
    %v653 = vadd.f32 %v553, %v224
    %v654 = vadd.f32 %v556, %v227
    %v655 = vadd.f32 %v561, %v168
    %v656 = vadd.f32 %v564, %v171
    %v657 = vadd.f32 %v569, %v176
    %v658 = vadd.f32 %v572, %v179
    %v659 = vadd.f32 %v577, %v184
    %v660 = vadd.f32 %v580, %v187
    %v661 = vadd.f32 %v585, %v192
    %v662 = vadd.f32 %v588, %v195
    %v663 = vadd.f32 %v593, %v200
    %v664 = vadd.f32 %v596, %v203
    %v665 = vadd.f32 %v601, %v208
    %v666 = vadd.f32 %v604, %v211
    %v667 = vadd.f32 %v609, %v216
    %v668 = vadd.f32 %v612, %v219
    %v669 = vadd.f32 %v617, %v224
    %v670 = vadd.f32 %v620, %v227
    %v671 = vld [vmem:[%s1] sm:$0x7]
    %v674 = vunpack.c.l.s4 1966171168
    %v675 = vunpack.c.0.s8 %v674
    %v676 = vlaneseq
    %v677 = vshrl.u32 %v676, 7
    %v678 = vsub.s32 %v675, %v677
    %v679 = vrot.slane %v671, %v678
    %v680 = vcombine.high %v679, %v679
    %v682 = vunpack.c.l.s4 1966171168
    %v683 = vunpack.c.0.s8 %v682
    %v684 = vlaneseq
    %v685 = vshrl.u32 %v684, 7
    %v686 = vsub.s32 %v683, %v685
    %v687 = vrot.slane %v679, %v686
    %v689 = vunpack.c.l.s4 1966171168
    %v690 = vunpack.c.0.s8 %v689
    %v691 = vlaneseq
    %v692 = vshrl.u32 %v691, 7
    %v693 = vsub.s32 %v690, %v692
    %v694 = vrot.slane %v680, %v693
    %v695 = vcombine.high %v687, %v687
    %v696 = vlaneseq
    %v697 = vshrl.u32 %v696, 7
    %v698 = vsub.s32 0, %v697
    %v699 = vrot.slane %v687, %v698
    %v700 = vlaneseq
    %v701 = vshrl.u32 %v700, 7
    %v702 = vsub.s32 0, %v701
    %v703 = vrot.slane %v694, %v702
    %v704 = vlaneseq
    %v705 = vshrl.u32 %v704, 7
    %v706 = vsub.s32 0, %v705
    %v707 = vrot.slane %v695, %v706
    %v711 = vadd.f32 %v623, %v699
    %v712 = vadd.f32 %v624, %v699
    %v713 = vadd.f32 %v625, %v699
    %v714 = vadd.f32 %v626, %v699
    %v715 = vadd.f32 %v627, %v699
    %v716 = vadd.f32 %v628, %v699
    %v717 = vadd.f32 %v629, %v699
    %v718 = vadd.f32 %v630, %v699
    %v719 = vadd.f32 %v631, %v699
    %v720 = vadd.f32 %v632, %v699
    %v721 = vadd.f32 %v633, %v699
    %v722 = vadd.f32 %v634, %v699
    %v723 = vadd.f32 %v635, %v699
    %v724 = vadd.f32 %v636, %v699
    %v725 = vadd.f32 %v637, %v699
    %v726 = vadd.f32 %v638, %v699
    %v727 = vadd.f32 %v639, %v703
    %v728 = vadd.f32 %v640, %v703
    %v729 = vadd.f32 %v641, %v703
    %v730 = vadd.f32 %v642, %v703
    %v731 = vadd.f32 %v643, %v703
    %v732 = vadd.f32 %v644, %v703
    %v733 = vadd.f32 %v645, %v703
    %v734 = vadd.f32 %v646, %v703
    %v735 = vadd.f32 %v647, %v703
    %v736 = vadd.f32 %v648, %v703
    %v737 = vadd.f32 %v649, %v703
    %v738 = vadd.f32 %v650, %v703
    %v739 = vadd.f32 %v651, %v703
    %v740 = vadd.f32 %v652, %v703
    %v741 = vadd.f32 %v653, %v703
    %v742 = vadd.f32 %v654, %v703
    %v743 = vadd.f32 %v655, %v707
    %v744 = vadd.f32 %v656, %v707
    %v745 = vadd.f32 %v657, %v707
    %v746 = vadd.f32 %v658, %v707
    %v747 = vadd.f32 %v659, %v707
    %v748 = vadd.f32 %v660, %v707
    %v749 = vadd.f32 %v661, %v707
    %v750 = vadd.f32 %v662, %v707
    %v751 = vadd.f32 %v663, %v707
    %v752 = vadd.f32 %v664, %v707
    %v753 = vadd.f32 %v665, %v707
    %v754 = vadd.f32 %v666, %v707
    %v755 = vadd.f32 %v667, %v707
    %v756 = vadd.f32 %v668, %v707
    %v757 = vadd.f32 %v669, %v707
    %v758 = vadd.f32 %v670, %v707
    %v759 = vpack.c.bf16 %v712, %v711
    %v760 = vpack.c.bf16 %v714, %v713
    %v761 = vpack.c.bf16 %v716, %v715
    %v762 = vpack.c.bf16 %v718, %v717
    %v763 = vpack.c.bf16 %v720, %v719
    %v764 = vpack.c.bf16 %v722, %v721
    %v765 = vpack.c.bf16 %v724, %v723
    %v766 = vpack.c.bf16 %v726, %v725
    %v767 = vpack.c.bf16 %v728, %v727
    %v768 = vpack.c.bf16 %v730, %v729
    %v769 = vpack.c.bf16 %v732, %v731
    %v770 = vpack.c.bf16 %v734, %v733
    %v771 = vpack.c.bf16 %v736, %v735
    %v772 = vpack.c.bf16 %v738, %v737
    %v773 = vpack.c.bf16 %v740, %v739
    %v774 = vpack.c.bf16 %v742, %v741
    %v775 = vpack.c.bf16 %v744, %v743
    %v776 = vpack.c.bf16 %v746, %v745
    %v777 = vpack.c.bf16 %v748, %v747
    %v778 = vpack.c.bf16 %v750, %v749
    %v779 = vpack.c.bf16 %v752, %v751
    %v780 = vpack.c.bf16 %v754, %v753
    %v781 = vpack.c.bf16 %v756, %v755
    %v782 = vpack.c.bf16 %v758, %v757
    %v783 = vtanh.bf16.pop %v759
    %v784 = vtanh.bf16.pop %v760
    %v785 = vtanh.bf16.pop %v761
    %v786 = vtanh.bf16.pop %v762
    %v787 = vtanh.bf16.pop %v763
    %v788 = vtanh.bf16.pop %v764
    %v789 = vtanh.bf16.pop %v765
    %v790 = vtanh.bf16.pop %v766
    %v791 = vtanh.bf16.pop %v767
    %v792 = vtanh.bf16.pop %v768
    %v793 = vtanh.bf16.pop %v769
    %v794 = vtanh.bf16.pop %v770
    %v795 = vtanh.bf16.pop %v771
    %v796 = vtanh.bf16.pop %v772
    %v797 = vtanh.bf16.pop %v773
    %v798 = vtanh.bf16.pop %v774
    %v799 = vtanh.bf16.pop %v775
    %v800 = vtanh.bf16.pop %v776
    %v801 = vtanh.bf16.pop %v777
    %v802 = vtanh.bf16.pop %v778
    %v803 = vtanh.bf16.pop %v779
    %v804 = vtanh.bf16.pop %v780
    %v805 = vtanh.bf16.pop %v781
    %v806 = vtanh.bf16.pop %v782
    %v807 = vld [vmem:[%s5] sm:$0xf]
    %v808 = vld [vmem:[%s5 + $0x4] sm:$0xf]
    %v809 = vld [vmem:[%s5 + $0x8] sm:$0xf]
    %v810 = vld [vmem:[%s5 + $0xc] sm:$0xf]
    %v811 = vld [vmem:[%s5 + $0x10] sm:$0xf]
    %v812 = vld [vmem:[%s5 + $0x14] sm:$0xf]
    %v813 = vld [vmem:[%s5 + $0x18] sm:$0xf]
    %v814 = vld [vmem:[%s5 + $0x1c] sm:$0xf]
    %v815 = vld [vmem:[%s6] sm:$0x1]
    %v817 = vlaneseq
    %v818 = vshrl.u32 %v817, 7
    %v819 = vsub.s32 0, %v818
    %v820 = vrot.slane %v815, %v819
    %v830 = vunpack.c.l.b16 %v807
    %v831 = vunpack.c.l.b16 %v808
    %v832 = vunpack.c.l.b16 %v809
    %v833 = vunpack.c.l.b16 %v810
    %v834 = vunpack.c.l.b16 %v811
    %v835 = vunpack.c.l.b16 %v812
    %v836 = vunpack.c.l.b16 %v813
    %v837 = vunpack.c.l.b16 %v814
    %v838 = vpack.c.b16 %v831, %v830
    %v839 = vpack.c.b16 %v833, %v832
    %v840 = vpack.c.b16 %v835, %v834
    %v841 = vpack.c.b16 %v837, %v836
    %vm846 = vcmask 523264
    %v848 = vsel %vm846, %v783, 0
    %v851 = vsel %vm846, %v784, 0
    %v854 = vsel %vm846, %v785, 0
    %v857 = vsel %vm846, %v786, 0
    %v860 = vsel %vm846, %v787, 0
    %v863 = vsel %vm846, %v788, 0
    %v866 = vsel %vm846, %v789, 0
    %v869 = vsel %vm846, %v790, 0
    %v872 = vsel %vm846, %v791, 0
    %v875 = vsel %vm846, %v792, 0
    %v878 = vsel %vm846, %v793, 0
    %v881 = vsel %vm846, %v794, 0
    %v884 = vsel %vm846, %v795, 0
    %v887 = vsel %vm846, %v796, 0
    %v890 = vsel %vm846, %v797, 0
    %v893 = vsel %vm846, %v798, 0
    %v896 = vsel %vm846, %v799, 0
    %v899 = vsel %vm846, %v800, 0
    %v902 = vsel %vm846, %v801, 0
    %v905 = vsel %vm846, %v802, 0
    %v908 = vsel %vm846, %v803, 0
    %v911 = vsel %vm846, %v804, 0
    %v914 = vsel %vm846, %v805, 0
    %v917 = vsel %vm846, %v806, 0
    %919 = vmatprep.subr.bf16.mxu0 0
    %920 = vmatpush1.bf16.msra.mxu0 %v838
    %921 = vmatprep.subr.bf16.mxu0 0
    %922 = vmatpush1.bf16.msra.mxu0 %v839
    %923 = vmatprep.subr.bf16.mxu0 0
    %924 = vmatpush1.bf16.msra.mxu0 %v840
    %925 = vmatprep.subr.bf16.mxu0 0
    %926 = vmatpush1.bf16.msra.mxu0 %v841
    %927 = vmatprep.subr.bf16.mxu0 0
    %928 = vmatpush1.bf16.msra.mxu0 0
    %929 = vmatprep.subr.bf16.mxu0 0
    %930 = vmatpush1.bf16.msra.mxu0 0
    %931 = vmatprep.subr.bf16.mxu0 0
    %932 = vmatpush1.bf16.msra.mxu0 0
    %933 = vmatprep.subr.bf16.mxu0 0
    %934 = vmatpush1.bf16.msra.mxu0 0
    %935 = vmatprep.subr.bf16.mxu0 0
    %936 = vmatpush1.bf16.msra.mxu0 0
    %937 = vmatprep.subr.bf16.mxu0 0
    %938 = vmatpush1.bf16.msra.mxu0 0
    %939 = vmatprep.subr.bf16.mxu0 0
    %940 = vmatpush1.bf16.msra.mxu0 0
    %941 = vmatprep.subr.bf16.mxu0 0
    %942 = vmatpush1.bf16.msra.mxu0 0
    %943 = vmatprep.subr.bf16.mxu0 0
    %944 = vmatpush1.bf16.msra.mxu0 0
    %945 = vmatprep.subr.bf16.mxu0 0
    %946 = vmatpush1.bf16.msra.mxu0 0
    %947 = vmatprep.subr.bf16.mxu0 0
    %948 = vmatpush1.bf16.msra.mxu0 0
    %949 = vmatprep.subr.bf16.mxu0 0
    %950 = vmatpush1.bf16.msra.mxu0 0
    %951 = vmatprep.mubr.bf16.mxu0 0
    %952 = vmatmul.mubr.bf16.gmra.mrb[0].mxu0 %v848
    %v953 = vpop.f32.mrb[0].mxu0
    %v954 = vadd.f32 %v820, %v953
    %v955 = vpop.f32.mrb[0].mxu0
    %v956 = vpop.f32.mrb[0].mxu0
    %v957 = vadd.f32 %v820, %v956
    %v958 = vpop.f32.mrb[0].mxu0
    %959 = vmatprep.mubr.bf16.mxu0 0
    %960 = vmatmul.mubr.bf16.gmra.mrb[0].mxu0 %v851
    %v961 = vpop.f32.mrb[0].mxu0
    %v962 = vadd.f32 %v820, %v961
    %v963 = vpop.f32.mrb[0].mxu0
    %v964 = vpop.f32.mrb[0].mxu0
    %v965 = vadd.f32 %v820, %v964
    %v966 = vpop.f32.mrb[0].mxu0
    %967 = vmatprep.mubr.bf16.mxu0 0
    %968 = vmatmul.mubr.bf16.gmra.mrb[0].mxu0 %v854
    %v969 = vpop.f32.mrb[0].mxu0
    %v970 = vadd.f32 %v820, %v969
    %v971 = vpop.f32.mrb[0].mxu0
    %v972 = vpop.f32.mrb[0].mxu0
    %v973 = vadd.f32 %v820, %v972
    %v974 = vpop.f32.mrb[0].mxu0
    %975 = vmatprep.mubr.bf16.mxu0 0
    %976 = vmatmul.mubr.bf16.gmra.mrb[0].mxu0 %v857
    %v977 = vpop.f32.mrb[0].mxu0
    %v978 = vadd.f32 %v820, %v977
    %v979 = vpop.f32.mrb[0].mxu0
    %v980 = vpop.f32.mrb[0].mxu0
    %v981 = vadd.f32 %v820, %v980
    %v982 = vpop.f32.mrb[0].mxu0
    %983 = vmatprep.mubr.bf16.mxu0 0
    %984 = vmatmul.mubr.bf16.gmra.mrb[0].mxu0 %v860
    %v985 = vpop.f32.mrb[0].mxu0
    %v986 = vadd.f32 %v820, %v985
    %v987 = vpop.f32.mrb[0].mxu0
    %v988 = vpop.f32.mrb[0].mxu0
    %v989 = vadd.f32 %v820, %v988
    %v990 = vpop.f32.mrb[0].mxu0
    %991 = vmatprep.mubr.bf16.mxu0 0
    %992 = vmatmul.mubr.bf16.gmra.mrb[0].mxu0 %v863
    %v993 = vpop.f32.mrb[0].mxu0
    %v994 = vadd.f32 %v820, %v993
    %v995 = vpop.f32.mrb[0].mxu0
    %v996 = vpop.f32.mrb[0].mxu0
    %v997 = vadd.f32 %v820, %v996
    %v998 = vpop.f32.mrb[0].mxu0
    %999 = vmatprep.mubr.bf16.mxu0 0
    %1000 = vmatmul.mubr.bf16.gmra.mrb[0].mxu0 %v866
    %v1001 = vpop.f32.mrb[0].mxu0
    %v1002 = vadd.f32 %v820, %v1001
    %v1003 = vpop.f32.mrb[0].mxu0
    %v1004 = vpop.f32.mrb[0].mxu0
    %v1005 = vadd.f32 %v820, %v1004
    %v1006 = vpop.f32.mrb[0].mxu0
    %1007 = vmatprep.mubr.bf16.mxu0 0
    %1008 = vmatmul.mubr.bf16.gmra.mrb[0].mxu0 %v869
    %v1009 = vpop.f32.mrb[0].mxu0
    %v1010 = vadd.f32 %v820, %v1009
    %v1011 = vpop.f32.mrb[0].mxu0
    %v1012 = vpop.f32.mrb[0].mxu0
    %v1013 = vadd.f32 %v820, %v1012
    %v1014 = vpop.f32.mrb[0].mxu0
    %1015 = vmatprep.mubr.bf16.mxu0 0
    %1016 = vmatmul.mubr.bf16.gmra.mrb[0].mxu0 %v872
    %v1017 = vpop.f32.mrb[0].mxu0
    %v1018 = vadd.f32 %v820, %v1017
    %v1019 = vpop.f32.mrb[0].mxu0
    %v1020 = vpop.f32.mrb[0].mxu0
    %v1021 = vadd.f32 %v820, %v1020
    %v1022 = vpop.f32.mrb[0].mxu0
    %1023 = vmatprep.mubr.bf16.mxu0 0
    %1024 = vmatmul.mubr.bf16.gmra.mrb[0].mxu0 %v875
    %v1025 = vpop.f32.mrb[0].mxu0
    %v1026 = vadd.f32 %v820, %v1025
    %v1027 = vpop.f32.mrb[0].mxu0
    %v1028 = vpop.f32.mrb[0].mxu0
    %v1029 = vadd.f32 %v820, %v1028
    %v1030 = vpop.f32.mrb[0].mxu0
    %1031 = vmatprep.mubr.bf16.mxu0 0
    %1032 = vmatmul.mubr.bf16.gmra.mrb[0].mxu0 %v878
    %v1033 = vpop.f32.mrb[0].mxu0
    %v1034 = vadd.f32 %v820, %v1033
    %v1035 = vpop.f32.mrb[0].mxu0
    %v1036 = vpop.f32.mrb[0].mxu0
    %v1037 = vadd.f32 %v820, %v1036
    %v1038 = vpop.f32.mrb[0].mxu0
    %1039 = vmatprep.mubr.bf16.mxu0 0
    %1040 = vmatmul.mubr.bf16.gmra.mrb[0].mxu0 %v881
    %v1041 = vpop.f32.mrb[0].mxu0
    %v1042 = vadd.f32 %v820, %v1041
    %v1043 = vpop.f32.mrb[0].mxu0
    %v1044 = vpop.f32.mrb[0].mxu0
    %v1045 = vadd.f32 %v820, %v1044
    %v1046 = vpop.f32.mrb[0].mxu0
    %1047 = vmatprep.mubr.bf16.mxu0 0
    %1048 = vmatmul.mubr.bf16.gmra.mrb[0].mxu0 %v884
    %v1049 = vpop.f32.mrb[0].mxu0
    %v1050 = vadd.f32 %v820, %v1049
    %v1051 = vpop.f32.mrb[0].mxu0
    %v1052 = vpop.f32.mrb[0].mxu0
    %v1053 = vadd.f32 %v820, %v1052
    %v1054 = vpop.f32.mrb[0].mxu0
    %1055 = vmatprep.mubr.bf16.mxu0 0
    %1056 = vmatmul.mubr.bf16.gmra.mrb[0].mxu0 %v887
    %v1057 = vpop.f32.mrb[0].mxu0
    %v1058 = vadd.f32 %v820, %v1057
    %v1059 = vpop.f32.mrb[0].mxu0
    %v1060 = vpop.f32.mrb[0].mxu0
    %v1061 = vadd.f32 %v820, %v1060
    %v1062 = vpop.f32.mrb[0].mxu0
    %1063 = vmatprep.mubr.bf16.mxu0 0
    %1064 = vmatmul.mubr.bf16.gmra.mrb[0].mxu0 %v890
    %v1065 = vpop.f32.mrb[0].mxu0
    %v1066 = vadd.f32 %v820, %v1065
    %v1067 = vpop.f32.mrb[0].mxu0
    %v1068 = vpop.f32.mrb[0].mxu0
    %v1069 = vadd.f32 %v820, %v1068
    %v1070 = vpop.f32.mrb[0].mxu0
    %1071 = vmatprep.mubr.bf16.mxu0 0
    %1072 = vmatmul.mubr.bf16.gmra.mrb[0].mxu0 %v893
    %v1073 = vpop.f32.mrb[0].mxu0
    %v1074 = vadd.f32 %v820, %v1073
    %v1075 = vpop.f32.mrb[0].mxu0
    %v1076 = vpop.f32.mrb[0].mxu0
    %v1077 = vadd.f32 %v820, %v1076
    %v1078 = vpop.f32.mrb[0].mxu0
    %1079 = vmatprep.mubr.bf16.mxu0 0
    %1080 = vmatmul.mubr.bf16.gmra.mrb[0].mxu0 %v896
    %v1081 = vpop.f32.mrb[0].mxu0
    %v1082 = vadd.f32 %v820, %v1081
    %v1083 = vpop.f32.mrb[0].mxu0
    %v1084 = vpop.f32.mrb[0].mxu0
    %v1085 = vadd.f32 %v820, %v1084
    %v1086 = vpop.f32.mrb[0].mxu0
    %1087 = vmatprep.mubr.bf16.mxu0 0
    %1088 = vmatmul.mubr.bf16.gmra.mrb[0].mxu0 %v899
    %v1089 = vpop.f32.mrb[0].mxu0
    %v1090 = vadd.f32 %v820, %v1089
    %v1091 = vpop.f32.mrb[0].mxu0
    %v1092 = vpop.f32.mrb[0].mxu0
    %v1093 = vadd.f32 %v820, %v1092
    %v1094 = vpop.f32.mrb[0].mxu0
    %1095 = vmatprep.mubr.bf16.mxu0 0
    %1096 = vmatmul.mubr.bf16.gmra.mrb[0].mxu0 %v902
    %v1097 = vpop.f32.mrb[0].mxu0
    %v1098 = vadd.f32 %v820, %v1097
    %v1099 = vpop.f32.mrb[0].mxu0
    %v1100 = vpop.f32.mrb[0].mxu0
    %v1101 = vadd.f32 %v820, %v1100
    %v1102 = vpop.f32.mrb[0].mxu0
    %1103 = vmatprep.mubr.bf16.mxu0 0
    %1104 = vmatmul.mubr.bf16.gmra.mrb[0].mxu0 %v905
    %v1105 = vpop.f32.mrb[0].mxu0
    %v1106 = vadd.f32 %v820, %v1105
    %v1107 = vpop.f32.mrb[0].mxu0
    %v1108 = vpop.f32.mrb[0].mxu0
    %v1109 = vadd.f32 %v820, %v1108
    %v1110 = vpop.f32.mrb[0].mxu0
    %1111 = vmatprep.mubr.bf16.mxu0 0
    %1112 = vmatmul.mubr.bf16.gmra.mrb[0].mxu0 %v908
    %v1113 = vpop.f32.mrb[0].mxu0
    %v1114 = vadd.f32 %v820, %v1113
    %v1115 = vpop.f32.mrb[0].mxu0
    %v1116 = vpop.f32.mrb[0].mxu0
    %v1117 = vadd.f32 %v820, %v1116
    %v1118 = vpop.f32.mrb[0].mxu0
    %1119 = vmatprep.mubr.bf16.mxu0 0
    %1120 = vmatmul.mubr.bf16.gmra.mrb[0].mxu0 %v911
    %v1121 = vpop.f32.mrb[0].mxu0
    %v1122 = vadd.f32 %v820, %v1121
    %v1123 = vpop.f32.mrb[0].mxu0
    %v1124 = vpop.f32.mrb[0].mxu0
    %v1125 = vadd.f32 %v820, %v1124
    %v1126 = vpop.f32.mrb[0].mxu0
    %1127 = vmatprep.mubr.bf16.mxu0 0
    %1128 = vmatmul.mubr.bf16.gmra.mrb[0].mxu0 %v914
    %v1129 = vpop.f32.mrb[0].mxu0
    %v1130 = vadd.f32 %v820, %v1129
    %v1131 = vpop.f32.mrb[0].mxu0
    %v1132 = vpop.f32.mrb[0].mxu0
    %v1133 = vadd.f32 %v820, %v1132
    %v1134 = vpop.f32.mrb[0].mxu0
    %1135 = vmatprep.mubr.bf16.mxu0 0
    %1136 = vmatmul.mubr.bf16.gmra.mrb[0].mxu0 %v917
    %v1137 = vpop.f32.mrb[0].mxu0
    %v1138 = vadd.f32 %v820, %v1137
    %v1139 = vpop.f32.mrb[0].mxu0
    %v1140 = vpop.f32.mrb[0].mxu0
    %v1141 = vadd.f32 %v820, %v1140
    %v1142 = vpop.f32.mrb[0].mxu0
    %1143 = vdwg.mxu0
    %v1144 = vpack.c.bf16 %v957, %v954
    %v1145 = vpack.c.bf16 %v965, %v962
    %v1146 = vpack.c.bf16 %v973, %v970
    %v1147 = vpack.c.bf16 %v981, %v978
    %v1148 = vpack.c.bf16 %v989, %v986
    %v1149 = vpack.c.bf16 %v997, %v994
    %v1150 = vpack.c.bf16 %v1005, %v1002
    %v1151 = vpack.c.bf16 %v1013, %v1010
    %v1152 = vpack.c.bf16 %v1021, %v1018
    %v1153 = vpack.c.bf16 %v1029, %v1026
    %v1154 = vpack.c.bf16 %v1037, %v1034
    %v1155 = vpack.c.bf16 %v1045, %v1042
    %v1156 = vpack.c.bf16 %v1053, %v1050
    %v1157 = vpack.c.bf16 %v1061, %v1058
    %v1158 = vpack.c.bf16 %v1069, %v1066
    %v1159 = vpack.c.bf16 %v1077, %v1074
    %v1160 = vpack.c.bf16 %v1085, %v1082
    %v1161 = vpack.c.bf16 %v1093, %v1090
    %v1162 = vpack.c.bf16 %v1101, %v1098
    %v1163 = vpack.c.bf16 %v1109, %v1106
    %v1164 = vpack.c.bf16 %v1117, %v1114
    %v1165 = vpack.c.bf16 %v1125, %v1122
    %v1166 = vpack.c.bf16 %v1133, %v1130
    %v1167 = vpack.c.bf16 %v1141, %v1138
    %v1168 = vtanh.bf16.pop %v1144
    %v1169 = vtanh.bf16.pop %v1145
    %v1170 = vtanh.bf16.pop %v1146
    %v1171 = vtanh.bf16.pop %v1147
    %v1172 = vtanh.bf16.pop %v1148
    %v1173 = vtanh.bf16.pop %v1149
    %v1174 = vtanh.bf16.pop %v1150
    %v1175 = vtanh.bf16.pop %v1151
    %v1176 = vtanh.bf16.pop %v1152
    %v1177 = vtanh.bf16.pop %v1153
    %v1178 = vtanh.bf16.pop %v1154
    %v1179 = vtanh.bf16.pop %v1155
    %v1180 = vtanh.bf16.pop %v1156
    %v1181 = vtanh.bf16.pop %v1157
    %v1182 = vtanh.bf16.pop %v1158
    %v1183 = vtanh.bf16.pop %v1159
    %v1184 = vtanh.bf16.pop %v1160
    %v1185 = vtanh.bf16.pop %v1161
    %v1186 = vtanh.bf16.pop %v1162
    %v1187 = vtanh.bf16.pop %v1163
    %v1188 = vtanh.bf16.pop %v1164
    %v1189 = vtanh.bf16.pop %v1165
    %v1190 = vtanh.bf16.pop %v1166
    %v1191 = vtanh.bf16.pop %v1167
    %v1192 = vld [vmem:[%s7] sm:$0x1]
    %v1193 = vunpack.c.l.bf16 %v1168
    %v1194 = vunpack.c.h.bf16 %v1168
    %v1195 = vunpack.c.l.bf16 %v1169
    %v1196 = vunpack.c.h.bf16 %v1169
    %v1197 = vunpack.c.l.bf16 %v1170
    %v1198 = vunpack.c.h.bf16 %v1170
    %v1199 = vunpack.c.l.bf16 %v1171
    %v1200 = vunpack.c.h.bf16 %v1171
    %v1201 = vunpack.c.l.bf16 %v1172
    %v1202 = vunpack.c.h.bf16 %v1172
    %v1203 = vunpack.c.l.bf16 %v1173
    %v1204 = vunpack.c.h.bf16 %v1173
    %v1205 = vunpack.c.l.bf16 %v1174
    %v1206 = vunpack.c.h.bf16 %v1174
    %v1207 = vunpack.c.l.bf16 %v1175
    %v1208 = vunpack.c.h.bf16 %v1175
    %v1209 = vunpack.c.l.bf16 %v1176
    %v1210 = vunpack.c.h.bf16 %v1176
    %v1211 = vunpack.c.l.bf16 %v1177
    %v1212 = vunpack.c.h.bf16 %v1177
    %v1213 = vunpack.c.l.bf16 %v1178
    %v1214 = vunpack.c.h.bf16 %v1178
    %v1215 = vunpack.c.l.bf16 %v1179
    %v1216 = vunpack.c.h.bf16 %v1179
    %v1217 = vunpack.c.l.bf16 %v1180
    %v1218 = vunpack.c.h.bf16 %v1180
    %v1219 = vunpack.c.l.bf16 %v1181
    %v1220 = vunpack.c.h.bf16 %v1181
    %v1221 = vunpack.c.l.bf16 %v1182
    %v1222 = vunpack.c.h.bf16 %v1182
    %v1223 = vunpack.c.l.bf16 %v1183
    %v1224 = vunpack.c.h.bf16 %v1183
    %v1225 = vunpack.c.l.bf16 %v1184
    %v1226 = vunpack.c.h.bf16 %v1184
    %v1227 = vunpack.c.l.bf16 %v1185
    %v1228 = vunpack.c.h.bf16 %v1185
    %v1229 = vunpack.c.l.bf16 %v1186
    %v1230 = vunpack.c.h.bf16 %v1186
    %v1231 = vunpack.c.l.bf16 %v1187
    %v1232 = vunpack.c.h.bf16 %v1187
    %v1233 = vunpack.c.l.bf16 %v1188
    %v1234 = vunpack.c.h.bf16 %v1188
    %v1235 = vunpack.c.l.bf16 %v1189
    %v1236 = vunpack.c.h.bf16 %v1189
    %v1237 = vunpack.c.l.bf16 %v1190
    %v1238 = vunpack.c.h.bf16 %v1190
    %v1239 = vunpack.c.l.bf16 %v1191
    %v1240 = vunpack.c.h.bf16 %v1191
    %v1242 = vlaneseq
    %v1243 = vshrl.u32 %v1242, 7
    %v1244 = vsub.s32 0, %v1243
    %v1245 = vrot.slane %v1192, %v1244
    %v1247 = vmul.f32 %v1193, %v1245
    %v1248 = vmul.f32 %v1194, %v1245
    %v1249 = vmul.f32 %v1195, %v1245
    %v1250 = vmul.f32 %v1196, %v1245
    %v1251 = vmul.f32 %v1197, %v1245
    %v1252 = vmul.f32 %v1198, %v1245
    %v1253 = vmul.f32 %v1199, %v1245
    %v1254 = vmul.f32 %v1200, %v1245
    %v1255 = vmul.f32 %v1201, %v1245
    %v1256 = vmul.f32 %v1202, %v1245
    %v1257 = vmul.f32 %v1203, %v1245
    %v1258 = vmul.f32 %v1204, %v1245
    %v1259 = vmul.f32 %v1205, %v1245
    %v1260 = vmul.f32 %v1206, %v1245
    %v1261 = vmul.f32 %v1207, %v1245
    %v1262 = vmul.f32 %v1208, %v1245
    %v1263 = vmul.f32 %v1209, %v1245
    %v1264 = vmul.f32 %v1210, %v1245
    %v1265 = vmul.f32 %v1211, %v1245
    %v1266 = vmul.f32 %v1212, %v1245
    %v1267 = vmul.f32 %v1213, %v1245
    %v1268 = vmul.f32 %v1214, %v1245
    %v1269 = vmul.f32 %v1215, %v1245
    %v1270 = vmul.f32 %v1216, %v1245
    %v1271 = vmul.f32 %v1217, %v1245
    %v1272 = vmul.f32 %v1218, %v1245
    %v1273 = vmul.f32 %v1219, %v1245
    %v1274 = vmul.f32 %v1220, %v1245
    %v1275 = vmul.f32 %v1221, %v1245
    %v1276 = vmul.f32 %v1222, %v1245
    %v1277 = vmul.f32 %v1223, %v1245
    %v1278 = vmul.f32 %v1224, %v1245
    %v1279 = vmul.f32 %v1225, %v1245
    %v1280 = vmul.f32 %v1226, %v1245
    %v1281 = vmul.f32 %v1227, %v1245
    %v1282 = vmul.f32 %v1228, %v1245
    %v1283 = vmul.f32 %v1229, %v1245
    %v1284 = vmul.f32 %v1230, %v1245
    %v1285 = vmul.f32 %v1231, %v1245
    %v1286 = vmul.f32 %v1232, %v1245
    %v1287 = vmul.f32 %v1233, %v1245
    %v1288 = vmul.f32 %v1234, %v1245
    %v1289 = vmul.f32 %v1235, %v1245
    %v1290 = vmul.f32 %v1236, %v1245
    %v1291 = vmul.f32 %v1237, %v1245
    %v1292 = vmul.f32 %v1238, %v1245
    %v1293 = vmul.f32 %v1239, %v1245
    %v1294 = vmul.f32 %v1240, %v1245
    %v1295 = vsel %vm108, %v1247, 0.0
    %1296 = vadd.xlane.f32.xlu0 %v1295
    %v1297 = vpop.xlane.xlu0 %1296
    %v1298 = vsel %vm108, %v1248, 0.0
    %1299 = vadd.xlane.f32.xlu0 %v1298
    %v1300 = vpop.xlane.xlu0 %1299
    %v1301 = vsel %vm108, %v1249, 0.0
    %1302 = vadd.xlane.f32.xlu0 %v1301
    %v1303 = vpop.xlane.xlu0 %1302
    %v1304 = vsel %vm108, %v1250, 0.0
    %1305 = vadd.xlane.f32.xlu0 %v1304
    %v1306 = vpop.xlane.xlu0 %1305
    %v1307 = vsel %vm108, %v1251, 0.0
    %1308 = vadd.xlane.f32.xlu0 %v1307
    %v1309 = vpop.xlane.xlu0 %1308
    %v1310 = vsel %vm108, %v1252, 0.0
    %1311 = vadd.xlane.f32.xlu0 %v1310
    %v1312 = vpop.xlane.xlu0 %1311
    %v1313 = vsel %vm108, %v1253, 0.0
    %1314 = vadd.xlane.f32.xlu0 %v1313
    %v1315 = vpop.xlane.xlu0 %1314
    %v1316 = vsel %vm108, %v1254, 0.0
    %1317 = vadd.xlane.f32.xlu0 %v1316
    %v1318 = vpop.xlane.xlu0 %1317
    %v1319 = vsel %vm108, %v1255, 0.0
    %1320 = vadd.xlane.f32.xlu0 %v1319
    %v1321 = vpop.xlane.xlu0 %1320
    %v1322 = vsel %vm108, %v1256, 0.0
    %1323 = vadd.xlane.f32.xlu0 %v1322
    %v1324 = vpop.xlane.xlu0 %1323
    %v1325 = vsel %vm108, %v1257, 0.0
    %1326 = vadd.xlane.f32.xlu0 %v1325
    %v1327 = vpop.xlane.xlu0 %1326
    %v1328 = vsel %vm108, %v1258, 0.0
    %1329 = vadd.xlane.f32.xlu0 %v1328
    %v1330 = vpop.xlane.xlu0 %1329
    %v1331 = vsel %vm108, %v1259, 0.0
    %1332 = vadd.xlane.f32.xlu0 %v1331
    %v1333 = vpop.xlane.xlu0 %1332
    %v1334 = vsel %vm108, %v1260, 0.0
    %1335 = vadd.xlane.f32.xlu0 %v1334
    %v1336 = vpop.xlane.xlu0 %1335
    %v1337 = vsel %vm108, %v1261, 0.0
    %1338 = vadd.xlane.f32.xlu0 %v1337
    %v1339 = vpop.xlane.xlu0 %1338
    %v1340 = vsel %vm108, %v1262, 0.0
    %1341 = vadd.xlane.f32.xlu0 %v1340
    %v1342 = vpop.xlane.xlu0 %1341
    %v1343 = vsel %vm108, %v1263, 0.0
    %1344 = vadd.xlane.f32.xlu0 %v1343
    %v1345 = vpop.xlane.xlu0 %1344
    %v1346 = vsel %vm108, %v1264, 0.0
    %1347 = vadd.xlane.f32.xlu0 %v1346
    %v1348 = vpop.xlane.xlu0 %1347
    %v1349 = vsel %vm108, %v1265, 0.0
    %1350 = vadd.xlane.f32.xlu0 %v1349
    %v1351 = vpop.xlane.xlu0 %1350
    %v1352 = vsel %vm108, %v1266, 0.0
    %1353 = vadd.xlane.f32.xlu0 %v1352
    %v1354 = vpop.xlane.xlu0 %1353
    %v1355 = vsel %vm108, %v1267, 0.0
    %1356 = vadd.xlane.f32.xlu0 %v1355
    %v1357 = vpop.xlane.xlu0 %1356
    %v1358 = vsel %vm108, %v1268, 0.0
    %1359 = vadd.xlane.f32.xlu0 %v1358
    %v1360 = vpop.xlane.xlu0 %1359
    %v1361 = vsel %vm108, %v1269, 0.0
    %1362 = vadd.xlane.f32.xlu0 %v1361
    %v1363 = vpop.xlane.xlu0 %1362
    %v1364 = vsel %vm108, %v1270, 0.0
    %1365 = vadd.xlane.f32.xlu0 %v1364
    %v1366 = vpop.xlane.xlu0 %1365
    %v1367 = vsel %vm108, %v1271, 0.0
    %1368 = vadd.xlane.f32.xlu0 %v1367
    %v1369 = vpop.xlane.xlu0 %1368
    %v1370 = vsel %vm108, %v1272, 0.0
    %1371 = vadd.xlane.f32.xlu0 %v1370
    %v1372 = vpop.xlane.xlu0 %1371
    %v1373 = vsel %vm108, %v1273, 0.0
    %1374 = vadd.xlane.f32.xlu0 %v1373
    %v1375 = vpop.xlane.xlu0 %1374
    %v1376 = vsel %vm108, %v1274, 0.0
    %1377 = vadd.xlane.f32.xlu0 %v1376
    %v1378 = vpop.xlane.xlu0 %1377
    %v1379 = vsel %vm108, %v1275, 0.0
    %1380 = vadd.xlane.f32.xlu0 %v1379
    %v1381 = vpop.xlane.xlu0 %1380
    %v1382 = vsel %vm108, %v1276, 0.0
    %1383 = vadd.xlane.f32.xlu0 %v1382
    %v1384 = vpop.xlane.xlu0 %1383
    %v1385 = vsel %vm108, %v1277, 0.0
    %1386 = vadd.xlane.f32.xlu0 %v1385
    %v1387 = vpop.xlane.xlu0 %1386
    %v1388 = vsel %vm108, %v1278, 0.0
    %1389 = vadd.xlane.f32.xlu0 %v1388
    %v1390 = vpop.xlane.xlu0 %1389
    %v1391 = vsel %vm108, %v1279, 0.0
    %1392 = vadd.xlane.f32.xlu0 %v1391
    %v1393 = vpop.xlane.xlu0 %1392
    %v1394 = vsel %vm108, %v1280, 0.0
    %1395 = vadd.xlane.f32.xlu0 %v1394
    %v1396 = vpop.xlane.xlu0 %1395
    %v1397 = vsel %vm108, %v1281, 0.0
    %1398 = vadd.xlane.f32.xlu0 %v1397
    %v1399 = vpop.xlane.xlu0 %1398
    %v1400 = vsel %vm108, %v1282, 0.0
    %1401 = vadd.xlane.f32.xlu0 %v1400
    %v1402 = vpop.xlane.xlu0 %1401
    %v1403 = vsel %vm108, %v1283, 0.0
    %1404 = vadd.xlane.f32.xlu0 %v1403
    %v1405 = vpop.xlane.xlu0 %1404
    %v1406 = vsel %vm108, %v1284, 0.0
    %1407 = vadd.xlane.f32.xlu0 %v1406
    %v1408 = vpop.xlane.xlu0 %1407
    %v1409 = vsel %vm108, %v1285, 0.0
    %1410 = vadd.xlane.f32.xlu0 %v1409
    %v1411 = vpop.xlane.xlu0 %1410
    %v1412 = vsel %vm108, %v1286, 0.0
    %1413 = vadd.xlane.f32.xlu0 %v1412
    %v1414 = vpop.xlane.xlu0 %1413
    %v1415 = vsel %vm108, %v1287, 0.0
    %1416 = vadd.xlane.f32.xlu0 %v1415
    %v1417 = vpop.xlane.xlu0 %1416
    %v1418 = vsel %vm108, %v1288, 0.0
    %1419 = vadd.xlane.f32.xlu0 %v1418
    %v1420 = vpop.xlane.xlu0 %1419
    %v1421 = vsel %vm108, %v1289, 0.0
    %1422 = vadd.xlane.f32.xlu0 %v1421
    %v1423 = vpop.xlane.xlu0 %1422
    %v1424 = vsel %vm108, %v1290, 0.0
    %1425 = vadd.xlane.f32.xlu0 %v1424
    %v1426 = vpop.xlane.xlu0 %1425
    %v1427 = vsel %vm108, %v1291, 0.0
    %1428 = vadd.xlane.f32.xlu0 %v1427
    %v1429 = vpop.xlane.xlu0 %1428
    %v1430 = vsel %vm108, %v1292, 0.0
    %1431 = vadd.xlane.f32.xlu0 %v1430
    %v1432 = vpop.xlane.xlu0 %1431
    %v1433 = vsel %vm108, %v1293, 0.0
    %1434 = vadd.xlane.f32.xlu0 %v1433
    %v1435 = vpop.xlane.xlu0 %1434
    %v1436 = vsel %vm108, %v1294, 0.0
    %1437 = vadd.xlane.f32.xlu0 %v1436
    %v1438 = vpop.xlane.xlu0 %1437
    %s1439 = sld [smem:[#allocation2]]
    %v1440 = vstv %s1439
    %v1441 = vadd.f32 %v1297, %v1440
    %v1442 = vadd.f32 %v1300, %v1440
    %v1443 = vadd.f32 %v1303, %v1440
    %v1444 = vadd.f32 %v1306, %v1440
    %v1445 = vadd.f32 %v1309, %v1440
    %v1446 = vadd.f32 %v1312, %v1440
    %v1447 = vadd.f32 %v1315, %v1440
    %v1448 = vadd.f32 %v1318, %v1440
    %v1449 = vadd.f32 %v1321, %v1440
    %v1450 = vadd.f32 %v1324, %v1440
    %v1451 = vadd.f32 %v1327, %v1440
    %v1452 = vadd.f32 %v1330, %v1440
    %v1453 = vadd.f32 %v1333, %v1440
    %v1454 = vadd.f32 %v1336, %v1440
    %v1455 = vadd.f32 %v1339, %v1440
    %v1456 = vadd.f32 %v1342, %v1440
    %v1457 = vadd.f32 %v1345, %v1440
    %v1458 = vadd.f32 %v1348, %v1440
    %v1459 = vadd.f32 %v1351, %v1440
    %v1460 = vadd.f32 %v1354, %v1440
    %v1461 = vadd.f32 %v1357, %v1440
    %v1462 = vadd.f32 %v1360, %v1440
    %v1463 = vadd.f32 %v1363, %v1440
    %v1464 = vadd.f32 %v1366, %v1440
    %v1465 = vadd.f32 %v1369, %v1440
    %v1466 = vadd.f32 %v1372, %v1440
    %v1467 = vadd.f32 %v1375, %v1440
    %v1468 = vadd.f32 %v1378, %v1440
    %v1469 = vadd.f32 %v1381, %v1440
    %v1470 = vadd.f32 %v1384, %v1440
    %v1471 = vadd.f32 %v1387, %v1440
    %v1472 = vadd.f32 %v1390, %v1440
    %v1473 = vadd.f32 %v1393, %v1440
    %v1474 = vadd.f32 %v1396, %v1440
    %v1475 = vadd.f32 %v1399, %v1440
    %v1476 = vadd.f32 %v1402, %v1440
    %v1477 = vadd.f32 %v1405, %v1440
    %v1478 = vadd.f32 %v1408, %v1440
    %v1479 = vadd.f32 %v1411, %v1440
    %v1480 = vadd.f32 %v1414, %v1440
    %v1481 = vadd.f32 %v1417, %v1440
    %v1482 = vadd.f32 %v1420, %v1440
    %v1483 = vadd.f32 %v1423, %v1440
    %v1484 = vadd.f32 %v1426, %v1440
    %v1485 = vadd.f32 %v1429, %v1440
    %v1486 = vadd.f32 %v1432, %v1440
    %v1487 = vadd.f32 %v1435, %v1440
    %v1488 = vadd.f32 %v1438, %v1440
    %v1489 = vxor.u32 %v1441, 2147483648
    %v1490 = vxor.u32 %v1442, 2147483648
    %v1491 = vxor.u32 %v1443, 2147483648
    %v1492 = vxor.u32 %v1444, 2147483648
    %v1493 = vxor.u32 %v1445, 2147483648
    %v1494 = vxor.u32 %v1446, 2147483648
    %v1495 = vxor.u32 %v1447, 2147483648
    %v1496 = vxor.u32 %v1448, 2147483648
    %v1497 = vxor.u32 %v1449, 2147483648
    %v1498 = vxor.u32 %v1450, 2147483648
    %v1499 = vxor.u32 %v1451, 2147483648
    %v1500 = vxor.u32 %v1452, 2147483648
    %v1501 = vxor.u32 %v1453, 2147483648
    %v1502 = vxor.u32 %v1454, 2147483648
    %v1503 = vxor.u32 %v1455, 2147483648
    %v1504 = vxor.u32 %v1456, 2147483648
    %v1505 = vxor.u32 %v1457, 2147483648
    %v1506 = vxor.u32 %v1458, 2147483648
    %v1507 = vxor.u32 %v1459, 2147483648
    %v1508 = vxor.u32 %v1460, 2147483648
    %v1509 = vxor.u32 %v1461, 2147483648
    %v1510 = vxor.u32 %v1462, 2147483648
    %v1511 = vxor.u32 %v1463, 2147483648
    %v1512 = vxor.u32 %v1464, 2147483648
    %v1513 = vxor.u32 %v1465, 2147483648
    %v1514 = vxor.u32 %v1466, 2147483648
    %v1515 = vxor.u32 %v1467, 2147483648
    %v1516 = vxor.u32 %v1468, 2147483648
    %v1517 = vxor.u32 %v1469, 2147483648
    %v1518 = vxor.u32 %v1470, 2147483648
    %v1519 = vxor.u32 %v1471, 2147483648
    %v1520 = vxor.u32 %v1472, 2147483648
    %v1521 = vxor.u32 %v1473, 2147483648
    %v1522 = vxor.u32 %v1474, 2147483648
    %v1523 = vxor.u32 %v1475, 2147483648
    %v1524 = vxor.u32 %v1476, 2147483648
    %v1525 = vxor.u32 %v1477, 2147483648
    %v1526 = vxor.u32 %v1478, 2147483648
    %v1527 = vxor.u32 %v1479, 2147483648
    %v1528 = vxor.u32 %v1480, 2147483648
    %v1529 = vxor.u32 %v1481, 2147483648
    %v1530 = vxor.u32 %v1482, 2147483648
    %v1531 = vxor.u32 %v1483, 2147483648
    %v1532 = vxor.u32 %v1484, 2147483648
    %v1533 = vxor.u32 %v1485, 2147483648
    %v1534 = vxor.u32 %v1486, 2147483648
    %v1535 = vxor.u32 %v1487, 2147483648
    %v1536 = vxor.u32 %v1488, 2147483648
    %v1537 = vmul.f32 %v1489, 1.442695
    %v1538 = vpow.pop %v1537
    %v1539 = vmul.f32 %v1490, 1.442695
    %v1540 = vpow.pop %v1539
    %v1541 = vmul.f32 %v1491, 1.442695
    %v1542 = vpow.pop %v1541
    %v1543 = vmul.f32 %v1492, 1.442695
    %v1544 = vpow.pop %v1543
    %v1545 = vmul.f32 %v1493, 1.442695
    %v1546 = vpow.pop %v1545
    %v1547 = vmul.f32 %v1494, 1.442695
    %v1548 = vpow.pop %v1547
    %v1549 = vmul.f32 %v1495, 1.442695
    %v1550 = vpow.pop %v1549
    %v1551 = vmul.f32 %v1496, 1.442695
    %v1552 = vpow.pop %v1551
    %v1553 = vmul.f32 %v1497, 1.442695
    %v1554 = vpow.pop %v1553
    %v1555 = vmul.f32 %v1498, 1.442695
    %v1556 = vpow.pop %v1555
    %v1557 = vmul.f32 %v1499, 1.442695
    %v1558 = vpow.pop %v1557
    %v1559 = vmul.f32 %v1500, 1.442695
    %v1560 = vpow.pop %v1559
    %v1561 = vmul.f32 %v1501, 1.442695
    %v1562 = vpow.pop %v1561
    %v1563 = vmul.f32 %v1502, 1.442695
    %v1564 = vpow.pop %v1563
    %v1565 = vmul.f32 %v1503, 1.442695
    %v1566 = vpow.pop %v1565
    %v1567 = vmul.f32 %v1504, 1.442695
    %v1568 = vpow.pop %v1567
    %v1569 = vmul.f32 %v1505, 1.442695
    %v1570 = vpow.pop %v1569
    %v1571 = vmul.f32 %v1506, 1.442695
    %v1572 = vpow.pop %v1571
    %v1573 = vmul.f32 %v1507, 1.442695
    %v1574 = vpow.pop %v1573
    %v1575 = vmul.f32 %v1508, 1.442695
    %v1576 = vpow.pop %v1575
    %v1577 = vmul.f32 %v1509, 1.442695
    %v1578 = vpow.pop %v1577
    %v1579 = vmul.f32 %v1510, 1.442695
    %v1580 = vpow.pop %v1579
    %v1581 = vmul.f32 %v1511, 1.442695
    %v1582 = vpow.pop %v1581
    %v1583 = vmul.f32 %v1512, 1.442695
    %v1584 = vpow.pop %v1583
    %v1585 = vmul.f32 %v1513, 1.442695
    %v1586 = vpow.pop %v1585
    %v1587 = vmul.f32 %v1514, 1.442695
    %v1588 = vpow.pop %v1587
    %v1589 = vmul.f32 %v1515, 1.442695
    %v1590 = vpow.pop %v1589
    %v1591 = vmul.f32 %v1516, 1.442695
    %v1592 = vpow.pop %v1591
    %v1593 = vmul.f32 %v1517, 1.442695
    %v1594 = vpow.pop %v1593
    %v1595 = vmul.f32 %v1518, 1.442695
    %v1596 = vpow.pop %v1595
    %v1597 = vmul.f32 %v1519, 1.442695
    %v1598 = vpow.pop %v1597
    %v1599 = vmul.f32 %v1520, 1.442695
    %v1600 = vpow.pop %v1599
    %v1601 = vmul.f32 %v1521, 1.442695
    %v1602 = vpow.pop %v1601
    %v1603 = vmul.f32 %v1522, 1.442695
    %v1604 = vpow.pop %v1603
    %v1605 = vmul.f32 %v1523, 1.442695
    %v1606 = vpow.pop %v1605
    %v1607 = vmul.f32 %v1524, 1.442695
    %v1608 = vpow.pop %v1607
    %v1609 = vmul.f32 %v1525, 1.442695
    %v1610 = vpow.pop %v1609
    %v1611 = vmul.f32 %v1526, 1.442695
    %v1612 = vpow.pop %v1611
    %v1613 = vmul.f32 %v1527, 1.442695
    %v1614 = vpow.pop %v1613
    %v1615 = vmul.f32 %v1528, 1.442695
    %v1616 = vpow.pop %v1615
    %v1617 = vmul.f32 %v1529, 1.442695
    %v1618 = vpow.pop %v1617
    %v1619 = vmul.f32 %v1530, 1.442695
    %v1620 = vpow.pop %v1619
    %v1621 = vmul.f32 %v1531, 1.442695
    %v1622 = vpow.pop %v1621
    %v1623 = vmul.f32 %v1532, 1.442695
    %v1624 = vpow.pop %v1623
    %v1625 = vmul.f32 %v1533, 1.442695
    %v1626 = vpow.pop %v1625
    %v1627 = vmul.f32 %v1534, 1.442695
    %v1628 = vpow.pop %v1627
    %v1629 = vmul.f32 %v1535, 1.442695
    %v1630 = vpow.pop %v1629
    %v1631 = vmul.f32 %v1536, 1.442695
    %v1632 = vpow.pop %v1631
    %v1633 = vadd.f32 %v1538, 1.0
    %v1634 = vadd.f32 %v1540, 1.0
    %v1635 = vadd.f32 %v1542, 1.0
    %v1636 = vadd.f32 %v1544, 1.0
    %v1637 = vadd.f32 %v1546, 1.0
    %v1638 = vadd.f32 %v1548, 1.0
    %v1639 = vadd.f32 %v1550, 1.0
    %v1640 = vadd.f32 %v1552, 1.0
    %v1641 = vadd.f32 %v1554, 1.0
    %v1642 = vadd.f32 %v1556, 1.0
    %v1643 = vadd.f32 %v1558, 1.0
    %v1644 = vadd.f32 %v1560, 1.0
    %v1645 = vadd.f32 %v1562, 1.0
    %v1646 = vadd.f32 %v1564, 1.0
    %v1647 = vadd.f32 %v1566, 1.0
    %v1648 = vadd.f32 %v1568, 1.0
    %v1649 = vadd.f32 %v1570, 1.0
    %v1650 = vadd.f32 %v1572, 1.0
    %v1651 = vadd.f32 %v1574, 1.0
    %v1652 = vadd.f32 %v1576, 1.0
    %v1653 = vadd.f32 %v1578, 1.0
    %v1654 = vadd.f32 %v1580, 1.0
    %v1655 = vadd.f32 %v1582, 1.0
    %v1656 = vadd.f32 %v1584, 1.0
    %v1657 = vadd.f32 %v1586, 1.0
    %v1658 = vadd.f32 %v1588, 1.0
    %v1659 = vadd.f32 %v1590, 1.0
    %v1660 = vadd.f32 %v1592, 1.0
    %v1661 = vadd.f32 %v1594, 1.0
    %v1662 = vadd.f32 %v1596, 1.0
    %v1663 = vadd.f32 %v1598, 1.0
    %v1664 = vadd.f32 %v1600, 1.0
    %v1665 = vadd.f32 %v1602, 1.0
    %v1666 = vadd.f32 %v1604, 1.0
    %v1667 = vadd.f32 %v1606, 1.0
    %v1668 = vadd.f32 %v1608, 1.0
    %v1669 = vadd.f32 %v1610, 1.0
    %v1670 = vadd.f32 %v1612, 1.0
    %v1671 = vadd.f32 %v1614, 1.0
    %v1672 = vadd.f32 %v1616, 1.0
    %v1673 = vadd.f32 %v1618, 1.0
    %v1674 = vadd.f32 %v1620, 1.0
    %v1675 = vadd.f32 %v1622, 1.0
    %v1676 = vadd.f32 %v1624, 1.0
    %v1677 = vadd.f32 %v1626, 1.0
    %v1678 = vadd.f32 %v1628, 1.0
    %v1679 = vadd.f32 %v1630, 1.0
    %v1680 = vadd.f32 %v1632, 1.0
    %v1681 = vrcp.pop %v1633
    %v1682 = vmul.f32 1.0, %v1681
    %v1683 = vrcp.pop %v1634
    %v1684 = vmul.f32 1.0, %v1683
    %v1685 = vrcp.pop %v1635
    %v1686 = vmul.f32 1.0, %v1685
    %v1687 = vrcp.pop %v1636
    %v1688 = vmul.f32 1.0, %v1687
    %v1689 = vrcp.pop %v1637
    %v1690 = vmul.f32 1.0, %v1689
    %v1691 = vrcp.pop %v1638
    %v1692 = vmul.f32 1.0, %v1691
    %v1693 = vrcp.pop %v1639
    %v1694 = vmul.f32 1.0, %v1693
    %v1695 = vrcp.pop %v1640
    %v1696 = vmul.f32 1.0, %v1695
    %v1697 = vrcp.pop %v1641
    %v1698 = vmul.f32 1.0, %v1697
    %v1699 = vrcp.pop %v1642
    %v1700 = vmul.f32 1.0, %v1699
    %v1701 = vrcp.pop %v1643
    %v1702 = vmul.f32 1.0, %v1701
    %v1703 = vrcp.pop %v1644
    %v1704 = vmul.f32 1.0, %v1703
    %v1705 = vrcp.pop %v1645
    %v1706 = vmul.f32 1.0, %v1705
    %v1707 = vrcp.pop %v1646
    %v1708 = vmul.f32 1.0, %v1707
    %v1709 = vrcp.pop %v1647
    %v1710 = vmul.f32 1.0, %v1709
    %v1711 = vrcp.pop %v1648
    %v1712 = vmul.f32 1.0, %v1711
    %v1713 = vrcp.pop %v1649
    %v1714 = vmul.f32 1.0, %v1713
    %v1715 = vrcp.pop %v1650
    %v1716 = vmul.f32 1.0, %v1715
    %v1717 = vrcp.pop %v1651
    %v1718 = vmul.f32 1.0, %v1717
    %v1719 = vrcp.pop %v1652
    %v1720 = vmul.f32 1.0, %v1719
    %v1721 = vrcp.pop %v1653
    %v1722 = vmul.f32 1.0, %v1721
    %v1723 = vrcp.pop %v1654
    %v1724 = vmul.f32 1.0, %v1723
    %v1725 = vrcp.pop %v1655
    %v1726 = vmul.f32 1.0, %v1725
    %v1727 = vrcp.pop %v1656
    %v1728 = vmul.f32 1.0, %v1727
    %v1729 = vrcp.pop %v1657
    %v1730 = vmul.f32 1.0, %v1729
    %v1731 = vrcp.pop %v1658
    %v1732 = vmul.f32 1.0, %v1731
    %v1733 = vrcp.pop %v1659
    %v1734 = vmul.f32 1.0, %v1733
    %v1735 = vrcp.pop %v1660
    %v1736 = vmul.f32 1.0, %v1735
    %v1737 = vrcp.pop %v1661
    %v1738 = vmul.f32 1.0, %v1737
    %v1739 = vrcp.pop %v1662
    %v1740 = vmul.f32 1.0, %v1739
    %v1741 = vrcp.pop %v1663
    %v1742 = vmul.f32 1.0, %v1741
    %v1743 = vrcp.pop %v1664
    %v1744 = vmul.f32 1.0, %v1743
    %v1745 = vrcp.pop %v1665
    %v1746 = vmul.f32 1.0, %v1745
    %v1747 = vrcp.pop %v1666
    %v1748 = vmul.f32 1.0, %v1747
    %v1749 = vrcp.pop %v1667
    %v1750 = vmul.f32 1.0, %v1749
    %v1751 = vrcp.pop %v1668
    %v1752 = vmul.f32 1.0, %v1751
    %v1753 = vrcp.pop %v1669
    %v1754 = vmul.f32 1.0, %v1753
    %v1755 = vrcp.pop %v1670
    %v1756 = vmul.f32 1.0, %v1755
    %v1757 = vrcp.pop %v1671
    %v1758 = vmul.f32 1.0, %v1757
    %v1759 = vrcp.pop %v1672
    %v1760 = vmul.f32 1.0, %v1759
    %v1761 = vrcp.pop %v1673
    %v1762 = vmul.f32 1.0, %v1761
    %v1763 = vrcp.pop %v1674
    %v1764 = vmul.f32 1.0, %v1763
    %v1765 = vrcp.pop %v1675
    %v1766 = vmul.f32 1.0, %v1765
    %v1767 = vrcp.pop %v1676
    %v1768 = vmul.f32 1.0, %v1767
    %v1769 = vrcp.pop %v1677
    %v1770 = vmul.f32 1.0, %v1769
    %v1771 = vrcp.pop %v1678
    %v1772 = vmul.f32 1.0, %v1771
    %v1773 = vrcp.pop %v1679
    %v1774 = vmul.f32 1.0, %v1773
    %v1775 = vrcp.pop %v1680
    %v1776 = vmul.f32 1.0, %v1775
    %v1825 = vlaneseq
    %v1826 = vand.u32 %v1825, 127
    %v1827 = vlaneseq
    %v1828 = vshrl.u32 %v1827, 7
    %v1829 = vsub.s32 %v1826, %v1828
    %v1830 = vrot.slane %v1682, %v1829
    %v1831 = vadd.s32 %v1826, 4294967288
    %v1832 = vlaneseq
    %v1833 = vshrl.u32 %v1832, 7
    %v1834 = vsub.s32 %v1831, %v1833
    %v1835 = vrot.slane %v1684, %v1834
    %vm1836 = vcmask 130112
    %v1837 = vsel %vm1836, %v1835, %v1830
    %v1838 = vadd.s32 %v1826, 4294967280
    %v1839 = vlaneseq
    %v1840 = vshrl.u32 %v1839, 7
    %v1841 = vsub.s32 %v1838, %v1840
    %v1842 = vrot.slane %v1686, %v1841
    %vm1843 = vcmask 195712
    %v1844 = vsel %vm1843, %v1842, %v1837
    %v1845 = vadd.s32 %v1826, 4294967272
    %v1846 = vlaneseq
    %v1847 = vshrl.u32 %v1846, 7
    %v1848 = vsub.s32 %v1845, %v1847
    %v1849 = vrot.slane %v1688, %v1848
    %vm1850 = vcmask 261312
    %v1851 = vsel %vm1850, %v1849, %v1844
    %v1852 = vadd.s32 %v1826, 4294967264
    %v1853 = vlaneseq
    %v1854 = vshrl.u32 %v1853, 7
    %v1855 = vsub.s32 %v1852, %v1854
    %v1856 = vrot.slane %v1690, %v1855
    %vm1857 = vcmask 326912
    %v1858 = vsel %vm1857, %v1856, %v1851
    %v1859 = vadd.s32 %v1826, 4294967256
    %v1860 = vlaneseq
    %v1861 = vshrl.u32 %v1860, 7
    %v1862 = vsub.s32 %v1859, %v1861
    %v1863 = vrot.slane %v1692, %v1862
    %vm1864 = vcmask 392512
    %v1865 = vsel %vm1864, %v1863, %v1858
    %v1866 = vadd.s32 %v1826, 4294967248
    %v1867 = vlaneseq
    %v1868 = vshrl.u32 %v1867, 7
    %v1869 = vsub.s32 %v1866, %v1868
    %v1870 = vrot.slane %v1694, %v1869
    %vm1871 = vcmask 458112
    %v1872 = vsel %vm1871, %v1870, %v1865
    %v1873 = vadd.s32 %v1826, 4294967240
    %v1874 = vlaneseq
    %v1875 = vshrl.u32 %v1874, 7
    %v1876 = vsub.s32 %v1873, %v1875
    %v1877 = vrot.slane %v1696, %v1876
    %vm1878 = vcmask 523712
    %v1879 = vsel %vm1878, %v1877, %v1872
    %v1880 = vadd.s32 %v1826, 4294967232
    %v1881 = vlaneseq
    %v1882 = vshrl.u32 %v1881, 7
    %v1883 = vsub.s32 %v1880, %v1882
    %v1884 = vrot.slane %v1698, %v1883
    %vm1885 = vcmask 589312
    %v1886 = vsel %vm1885, %v1884, %v1879
    %v1887 = vadd.s32 %v1826, 4294967224
    %v1888 = vlaneseq
    %v1889 = vshrl.u32 %v1888, 7
    %v1890 = vsub.s32 %v1887, %v1889
    %v1891 = vrot.slane %v1700, %v1890
    %vm1892 = vcmask 654912
    %v1893 = vsel %vm1892, %v1891, %v1886
    %v1894 = vadd.s32 %v1826, 4294967216
    %v1895 = vlaneseq
    %v1896 = vshrl.u32 %v1895, 7
    %v1897 = vsub.s32 %v1894, %v1896
    %v1898 = vrot.slane %v1702, %v1897
    %vm1899 = vcmask 720512
    %v1900 = vsel %vm1899, %v1898, %v1893
    %v1901 = vadd.s32 %v1826, 4294967208
    %v1902 = vlaneseq
    %v1903 = vshrl.u32 %v1902, 7
    %v1904 = vsub.s32 %v1901, %v1903
    %v1905 = vrot.slane %v1704, %v1904
    %vm1906 = vcmask 786112
    %v1907 = vsel %vm1906, %v1905, %v1900
    %v1908 = vadd.s32 %v1826, 4294967200
    %v1909 = vlaneseq
    %v1910 = vshrl.u32 %v1909, 7
    %v1911 = vsub.s32 %v1908, %v1910
    %v1912 = vrot.slane %v1706, %v1911
    %vm1913 = vcmask 851712
    %v1914 = vsel %vm1913, %v1912, %v1907
    %v1915 = vadd.s32 %v1826, 4294967192
    %v1916 = vlaneseq
    %v1917 = vshrl.u32 %v1916, 7
    %v1918 = vsub.s32 %v1915, %v1917
    %v1919 = vrot.slane %v1708, %v1918
    %vm1920 = vcmask 917312
    %v1921 = vsel %vm1920, %v1919, %v1914
    %v1922 = vadd.s32 %v1826, 4294967184
    %v1923 = vlaneseq
    %v1924 = vshrl.u32 %v1923, 7
    %v1925 = vsub.s32 %v1922, %v1924
    %v1926 = vrot.slane %v1710, %v1925
    %vm1927 = vcmask 982912
    %v1928 = vsel %vm1927, %v1926, %v1921
    %v1929 = vadd.s32 %v1826, 4294967176
    %v1930 = vlaneseq
    %v1931 = vshrl.u32 %v1930, 7
    %v1932 = vsub.s32 %v1929, %v1931
    %v1933 = vrot.slane %v1712, %v1932
    %vm1934 = vcmask 1048512
    %v1935 = vsel %vm1934, %v1933, %v1928
    %v1936 = vlaneseq
    %v1937 = vshrl.u32 %v1936, 7
    %v1938 = vsub.s32 %v1826, %v1937
    %v1939 = vrot.slane %v1714, %v1938
    %v1940 = vlaneseq
    %v1941 = vshrl.u32 %v1940, 7
    %v1942 = vsub.s32 %v1831, %v1941
    %v1943 = vrot.slane %v1716, %v1942
    %v1944 = vsel %vm1836, %v1943, %v1939
    %v1945 = vlaneseq
    %v1946 = vshrl.u32 %v1945, 7
    %v1947 = vsub.s32 %v1838, %v1946
    %v1948 = vrot.slane %v1718, %v1947
    %v1949 = vsel %vm1843, %v1948, %v1944
    %v1950 = vlaneseq
    %v1951 = vshrl.u32 %v1950, 7
    %v1952 = vsub.s32 %v1845, %v1951
    %v1953 = vrot.slane %v1720, %v1952
    %v1954 = vsel %vm1850, %v1953, %v1949
    %v1955 = vlaneseq
    %v1956 = vshrl.u32 %v1955, 7
    %v1957 = vsub.s32 %v1852, %v1956
    %v1958 = vrot.slane %v1722, %v1957
    %v1959 = vsel %vm1857, %v1958, %v1954
    %v1960 = vlaneseq
    %v1961 = vshrl.u32 %v1960, 7
    %v1962 = vsub.s32 %v1859, %v1961
    %v1963 = vrot.slane %v1724, %v1962
    %v1964 = vsel %vm1864, %v1963, %v1959
    %v1965 = vlaneseq
    %v1966 = vshrl.u32 %v1965, 7
    %v1967 = vsub.s32 %v1866, %v1966
    %v1968 = vrot.slane %v1726, %v1967
    %v1969 = vsel %vm1871, %v1968, %v1964
    %v1970 = vlaneseq
    %v1971 = vshrl.u32 %v1970, 7
    %v1972 = vsub.s32 %v1873, %v1971
    %v1973 = vrot.slane %v1728, %v1972
    %v1974 = vsel %vm1878, %v1973, %v1969
    %v1975 = vlaneseq
    %v1976 = vshrl.u32 %v1975, 7
    %v1977 = vsub.s32 %v1880, %v1976
    %v1978 = vrot.slane %v1730, %v1977
    %v1979 = vsel %vm1885, %v1978, %v1974
    %v1980 = vlaneseq
    %v1981 = vshrl.u32 %v1980, 7
    %v1982 = vsub.s32 %v1887, %v1981
    %v1983 = vrot.slane %v1732, %v1982
    %v1984 = vsel %vm1892, %v1983, %v1979
    %v1985 = vlaneseq
    %v1986 = vshrl.u32 %v1985, 7
    %v1987 = vsub.s32 %v1894, %v1986
    %v1988 = vrot.slane %v1734, %v1987
    %v1989 = vsel %vm1899, %v1988, %v1984
    %v1990 = vlaneseq
    %v1991 = vshrl.u32 %v1990, 7
    %v1992 = vsub.s32 %v1901, %v1991
    %v1993 = vrot.slane %v1736, %v1992
    %v1994 = vsel %vm1906, %v1993, %v1989
    %v1995 = vlaneseq
    %v1996 = vshrl.u32 %v1995, 7
    %v1997 = vsub.s32 %v1908, %v1996
    %v1998 = vrot.slane %v1738, %v1997
    %v1999 = vsel %vm1913, %v1998, %v1994
    %v2000 = vlaneseq
    %v2001 = vshrl.u32 %v2000, 7
    %v2002 = vsub.s32 %v1915, %v2001
    %v2003 = vrot.slane %v1740, %v2002
    %v2004 = vsel %vm1920, %v2003, %v1999
    %v2005 = vlaneseq
    %v2006 = vshrl.u32 %v2005, 7
    %v2007 = vsub.s32 %v1922, %v2006
    %v2008 = vrot.slane %v1742, %v2007
    %v2009 = vsel %vm1927, %v2008, %v2004
    %v2010 = vlaneseq
    %v2011 = vshrl.u32 %v2010, 7
    %v2012 = vsub.s32 %v1929, %v2011
    %v2013 = vrot.slane %v1744, %v2012
    %v2014 = vsel %vm1934, %v2013, %v2009
    %v2015 = vlaneseq
    %v2016 = vshrl.u32 %v2015, 7
    %v2017 = vsub.s32 %v1826, %v2016
    %v2018 = vrot.slane %v1746, %v2017
    %v2019 = vlaneseq
    %v2020 = vshrl.u32 %v2019, 7
    %v2021 = vsub.s32 %v1831, %v2020
    %v2022 = vrot.slane %v1748, %v2021
    %v2023 = vsel %vm1836, %v2022, %v2018
    %v2024 = vlaneseq
    %v2025 = vshrl.u32 %v2024, 7
    %v2026 = vsub.s32 %v1838, %v2025
    %v2027 = vrot.slane %v1750, %v2026
    %v2028 = vsel %vm1843, %v2027, %v2023
    %v2029 = vlaneseq
    %v2030 = vshrl.u32 %v2029, 7
    %v2031 = vsub.s32 %v1845, %v2030
    %v2032 = vrot.slane %v1752, %v2031
    %v2033 = vsel %vm1850, %v2032, %v2028
    %v2034 = vlaneseq
    %v2035 = vshrl.u32 %v2034, 7
    %v2036 = vsub.s32 %v1852, %v2035
    %v2037 = vrot.slane %v1754, %v2036
    %v2038 = vsel %vm1857, %v2037, %v2033
    %v2039 = vlaneseq
    %v2040 = vshrl.u32 %v2039, 7
    %v2041 = vsub.s32 %v1859, %v2040
    %v2042 = vrot.slane %v1756, %v2041
    %v2043 = vsel %vm1864, %v2042, %v2038
    %v2044 = vlaneseq
    %v2045 = vshrl.u32 %v2044, 7
    %v2046 = vsub.s32 %v1866, %v2045
    %v2047 = vrot.slane %v1758, %v2046
    %v2048 = vsel %vm1871, %v2047, %v2043
    %v2049 = vlaneseq
    %v2050 = vshrl.u32 %v2049, 7
    %v2051 = vsub.s32 %v1873, %v2050
    %v2052 = vrot.slane %v1760, %v2051
    %v2053 = vsel %vm1878, %v2052, %v2048
    %v2054 = vlaneseq
    %v2055 = vshrl.u32 %v2054, 7
    %v2056 = vsub.s32 %v1880, %v2055
    %v2057 = vrot.slane %v1762, %v2056
    %v2058 = vsel %vm1885, %v2057, %v2053
    %v2059 = vlaneseq
    %v2060 = vshrl.u32 %v2059, 7
    %v2061 = vsub.s32 %v1887, %v2060
    %v2062 = vrot.slane %v1764, %v2061
    %v2063 = vsel %vm1892, %v2062, %v2058
    %v2064 = vlaneseq
    %v2065 = vshrl.u32 %v2064, 7
    %v2066 = vsub.s32 %v1894, %v2065
    %v2067 = vrot.slane %v1766, %v2066
    %v2068 = vsel %vm1899, %v2067, %v2063
    %v2069 = vlaneseq
    %v2070 = vshrl.u32 %v2069, 7
    %v2071 = vsub.s32 %v1901, %v2070
    %v2072 = vrot.slane %v1768, %v2071
    %v2073 = vsel %vm1906, %v2072, %v2068
    %v2074 = vlaneseq
    %v2075 = vshrl.u32 %v2074, 7
    %v2076 = vsub.s32 %v1908, %v2075
    %v2077 = vrot.slane %v1770, %v2076
    %v2078 = vsel %vm1913, %v2077, %v2073
    %v2079 = vlaneseq
    %v2080 = vshrl.u32 %v2079, 7
    %v2081 = vsub.s32 %v1915, %v2080
    %v2082 = vrot.slane %v1772, %v2081
    %v2083 = vsel %vm1920, %v2082, %v2078
    %v2084 = vlaneseq
    %v2085 = vshrl.u32 %v2084, 7
    %v2086 = vsub.s32 %v1922, %v2085
    %v2087 = vrot.slane %v1774, %v2086
    %v2088 = vsel %vm1927, %v2087, %v2083
    %v2089 = vlaneseq
    %v2090 = vshrl.u32 %v2089, 7
    %v2091 = vsub.s32 %v1929, %v2090
    %v2092 = vrot.slane %v1776, %v2091
    %v2093 = vsel %vm1934, %v2092, %v2088
    %vm2094 = vcmask 1041409
    %v2095 = vsel %vm2094, %v2014, %v1935
    %vm2096 = vcmask 1042434
    %v2097 = vsel %vm2096, %v2093, %v2095
    %2099 = vst [vmem:[#allocation3] sm:$0x7] %v2097
    // Predicated region
    $region38: #{tpu_custom_call.1} parent=1 // pred_check
      _
    $region39: #{tpu_custom_call.1} parent=1 // pred_check_branch
      %2101 = sbr.rel (0) target = $region41
    $region40: #{tpu_custom_call.1} parent=1 // pred_region
      %s2103 = ssub.s32 64, 64
      %2104 = vsyncadd [#allocation4], %s2103
      %s2106 = sshll.u32 [#allocation3], 4
      %s2107 = int_to_ptr.vmem [resolvable:$true] %s2106
      %2109 = dma.vmem_to_hbm [thread:$0]  %s2107, 64, %s9, [#allocation4]
    $region41: #{tpu_custom_call.1} parent=1 // pred_fallthru
      _
    // Predicated region
    $region42: #{tpu_custom_call.1} parent=1 // pred_check
      _
    $region43: #{tpu_custom_call.1} parent=1 // pred_check_branch
      %2111 = sbr.rel (0) target = $region45
    $region44: #{tpu_custom_call.1} parent=1 // pred_region
      %2112 = dma.done [#allocation4], 64
    $region45: #{tpu_custom_call.1} parent=1 // pred_fallthru
      _
    %2113 = vsyncpa [#allocation4], 1

</llo_original>
